<compile_context>
chip_gen: v7x
topology: tpu7x:2x2x1
jax: 0.10.0
libtpu: 0.0.40
codegen_flags: <defaults>
</compile_context>

<pallas_src>
import jax
import jax.numpy as jnp
import numpy as np
from jax.experimental import pallas as pl
from jax.experimental.pallas import tpu as pltpu

INPUT_FEATURES = 32
OUTPUT_FEATURES = 64


def dummy_rnn_forward(x, W_w, W_b, U_w, U_b, b, concatenate=True):
    """x: (seq, batch, input_features) float32.
    W_w: (out, in), W_b: (out,), U_w: (out, out), U_b: (out,), b: (out,)."""
    seq, batch, in_f = x.shape
    out_f = W_w.shape[0]

    # Wrapper-side (free) prep: flatten time*batch, pre-transpose weights to
    # (in, out), fold the three biases into one row, and pack everything into
    # a single contiguous operand so the kernel prologue is 2 input DMAs.
    x_flat = x.reshape(seq * batch, in_f).astype(jnp.float32)      # (seq*batch, in_f)
    wt = W_w.T.astype(jnp.float32)                                 # (in_f, out_f)
    ut = U_w.T.astype(jnp.float32)                                 # (out_f, out_f)
    bias = (W_b + U_b + b).reshape(1, out_f).astype(jnp.float32)   # (1, out_f)
    bias_pad = jnp.concatenate(
        [bias, jnp.zeros((7, out_f), jnp.float32)], axis=0)        # sublane-align
    params = jnp.concatenate([wt, ut, bias_pad], axis=0)           # (in_f+out_f+8, out_f)

    hi = jax.lax.Precision.HIGHEST  # pin full-f32 MXU path in-kernel

    def rnn_kernel(x_ref, p_ref, o_ref):
        # Static, sublane-aligned views into the packed parameter slab.
        wt_v = p_ref[0:in_f, :]                               # (in_f, out_f)
        u_t = p_ref[in_f:in_f + out_f, :]                     # (out_f, out_f)
        bias_v = p_ref[in_f + out_f:in_f + out_f + 1, :]      # (1, out_f)

        # Hoisted input projection + fused bias: one MXU matmul for all steps.
        xw = jnp.dot(x_ref[...], wt_v,
                     preferred_element_type=jnp.float32, precision=hi) + bias_v

        # Step 0: state is zero, so skip the recurrent matmul entirely
        # (U_b is already inside the fused bias).
        state = jnp.tanh(xw[0:batch, :])
        states = [state]

        # seq is small & static: unrolled Python loop with static indices.
        # Only the state-dependent (batch, out_f) x (out_f, out_f) matmul sits
        # on the serial chain.
        for t in range(1, seq):
            h = xw[t * batch:(t + 1) * batch, :] + jnp.dot(
                state, u_t, preferred_element_type=jnp.float32, precision=hi)
            state = jnp.tanh(h)
            states.append(state)

        # Single coalesced store of the whole (seq*batch, out_f) output slab.
        o_ref[...] = jnp.concatenate(states, axis=0)

    vmem = pl.BlockSpec(memory_space=pltpu.MemorySpace.VMEM)

    mem = pl.pallas_call(
        rnn_kernel,
        out_shape=jax.ShapeDtypeStruct((seq * batch, out_f), jnp.float32),
        in_specs=[vmem, vmem],
        out_specs=vmem,
    )(x_flat, params)

    if concatenate:
        # Already equals torch.cat(memory, axis=0).
        return mem
    else:
        return [mem[t * batch:(t + 1) * batch] for t in range(seq)]


def _reference_numpy(x, W_w, W_b, U_w, U_b, b):
    """Exact float64 host reference mirroring the PyTorch forward."""
    x = np.asarray(x, np.float64)
    W = np.asarray(W_w, np.float64)
    Wb = np.asarray(W_b, np.float64)
    U = np.asarray(U_w, np.float64)
    Ub = np.asarray(U_b, np.float64)
    bb = np.asarray(b, np.float64)
    seq = x.shape[0]
    out_f = W.shape[0]
    state = np.zeros((out_f,), np.float64)   # broadcasts over batch like torch
    memory = []
    for t in range(seq):
        out_t = np.tanh(x[t] @ W.T + Wb + state @ U.T + Ub + bb)
        memory.append(out_t)
        state = out_t
    return np.concatenate(memory, axis=0)


if __name__ == "__main__":
    key = jax.random.PRNGKey(0)
    k_x, k_ww, k_wb, k_uw, k_ub, k_b = jax.random.split(key, 6)

    seq, batch = 8, 2
    in_f, out_f = INPUT_FEATURES, OUTPUT_FEATURES

    x = jax.random.normal(k_x, (seq, batch, in_f), jnp.float32)

    # Deterministic parameter init (shapes match nn.Linear / nn.Parameter).
    W_w = jax.random.normal(k_ww, (out_f, in_f), jnp.float32) * 0.1
    W_b = jax.random.normal(k_wb, (out_f,), jnp.float32) * 0.1
    U_w = jax.random.normal(k_uw, (out_f, out_f), jnp.float32) * 0.1
    U_b = jax.random.normal(k_ub, (out_f,), jnp.float32) * 0.1
    b = jax.random.normal(k_b, (out_f,), jnp.float32) * 0.1

    out = dummy_rnn_forward(x, W_w, W_b, U_w, U_b, b, concatenate=True)
    out = jax.block_until_ready(out)

    ref = _reference_numpy(x, W_w, W_b, U_w, U_b, b)
    assert out.shape == (seq * batch, out_f), out.shape
    assert np.allclose(np.asarray(out), ref, atol=2e-5, rtol=1e-4), \
        "mismatch vs reference"

    print("KERNEL_OK")
</pallas_src>

<mosaic_0001>
module attributes {stable_mosaic.version = 11 : i64} {
  func.func @rnn_kernel(%arg0: memref<16x32xf32, #tpu.memory_space<vmem>>, %arg1: memref<104x64xf32, #tpu.memory_space<vmem>>, %arg2: memref<16x64xf32, #tpu.memory_space<vmem>>) attributes {dimension_semantics = [], scalar_prefetch = 0 : i64, scratch_operands = 0 : i64, tpu.core_type = #tpu.core_type<tc>} {
    %c0 = arith.constant 0 : index
    %c0_0 = arith.constant 0 : index
    %0 = vector.load %arg1[%c0, %c0_0] : memref<104x64xf32, #tpu.memory_space<vmem>>, vector<32x64xf32>
    %c32 = arith.constant 32 : index
    %c0_1 = arith.constant 0 : index
    %1 = vector.load %arg1[%c32, %c0_1] : memref<104x64xf32, #tpu.memory_space<vmem>>, vector<64x64xf32>
    %c96 = arith.constant 96 : index
    %c0_2 = arith.constant 0 : index
    %2 = vector.load %arg1[%c96, %c0_2] : memref<104x64xf32, #tpu.memory_space<vmem>>, vector<1x64xf32>
    %c0_3 = arith.constant 0 : index
    %c0_4 = arith.constant 0 : index
    %3 = vector.load %arg0[%c0_3, %c0_4] : memref<16x32xf32, #tpu.memory_space<vmem>>, vector<16x32xf32>
    %cst = arith.constant dense<0.000000e+00> : vector<16x64xf32>
    %4 = tpu.matmul %3, %0, %cst {dimension_numbers = #tpu.dot_dimension_numbers<[1], [0], [0], [1], [0, 0, 1, 1], [], []>, precision = #tpu.contract_precision<fp32>} : vector<16x32xf32>, vector<32x64xf32>, vector<16x64xf32> -> vector<16x64xf32>
    %5 = vector.broadcast %2 : vector<1x64xf32> to vector<16x64xf32>
    %6 = arith.addf %4, %5 : vector<16x64xf32>
    %7 = vector.extract_strided_slice %6 {offsets = [0, 0], sizes = [2, 64], strides = [1, 1]} : vector<16x64xf32> to vector<2x64xf32>
    %8 = math.tanh %7 : vector<2x64xf32>
    %9 = vector.extract_strided_slice %6 {offsets = [2, 0], sizes = [2, 64], strides = [1, 1]} : vector<16x64xf32> to vector<2x64xf32>
    %cst_5 = arith.constant dense<0.000000e+00> : vector<2x64xf32>
    %10 = tpu.matmul %8, %1, %cst_5 {dimension_numbers = #tpu.dot_dimension_numbers<[1], [0], [0], [1], [0, 0, 1, 1], [], []>, precision = #tpu.contract_precision<fp32>} : vector<2x64xf32>, vector<64x64xf32>, vector<2x64xf32> -> vector<2x64xf32>
    %11 = arith.addf %9, %10 : vector<2x64xf32>
    %12 = math.tanh %11 : vector<2x64xf32>
    %13 = vector.extract_strided_slice %6 {offsets = [4, 0], sizes = [2, 64], strides = [1, 1]} : vector<16x64xf32> to vector<2x64xf32>
    %cst_6 = arith.constant dense<0.000000e+00> : vector<2x64xf32>
    %14 = tpu.matmul %12, %1, %cst_6 {dimension_numbers = #tpu.dot_dimension_numbers<[1], [0], [0], [1], [0, 0, 1, 1], [], []>, precision = #tpu.contract_precision<fp32>} : vector<2x64xf32>, vector<64x64xf32>, vector<2x64xf32> -> vector<2x64xf32>
    %15 = arith.addf %13, %14 : vector<2x64xf32>
    %16 = math.tanh %15 : vector<2x64xf32>
    %17 = vector.extract_strided_slice %6 {offsets = [6, 0], sizes = [2, 64], strides = [1, 1]} : vector<16x64xf32> to vector<2x64xf32>
    %cst_7 = arith.constant dense<0.000000e+00> : vector<2x64xf32>
    %18 = tpu.matmul %16, %1, %cst_7 {dimension_numbers = #tpu.dot_dimension_numbers<[1], [0], [0], [1], [0, 0, 1, 1], [], []>, precision = #tpu.contract_precision<fp32>} : vector<2x64xf32>, vector<64x64xf32>, vector<2x64xf32> -> vector<2x64xf32>
    %19 = arith.addf %17, %18 : vector<2x64xf32>
    %20 = math.tanh %19 : vector<2x64xf32>
    %21 = vector.extract_strided_slice %6 {offsets = [8, 0], sizes = [2, 64], strides = [1, 1]} : vector<16x64xf32> to vector<2x64xf32>
    %cst_8 = arith.constant dense<0.000000e+00> : vector<2x64xf32>
    %22 = tpu.matmul %20, %1, %cst_8 {dimension_numbers = #tpu.dot_dimension_numbers<[1], [0], [0], [1], [0, 0, 1, 1], [], []>, precision = #tpu.contract_precision<fp32>} : vector<2x64xf32>, vector<64x64xf32>, vector<2x64xf32> -> vector<2x64xf32>
    %23 = arith.addf %21, %22 : vector<2x64xf32>
    %24 = math.tanh %23 : vector<2x64xf32>
    %25 = vector.extract_strided_slice %6 {offsets = [10, 0], sizes = [2, 64], strides = [1, 1]} : vector<16x64xf32> to vector<2x64xf32>
    %cst_9 = arith.constant dense<0.000000e+00> : vector<2x64xf32>
    %26 = tpu.matmul %24, %1, %cst_9 {dimension_numbers = #tpu.dot_dimension_numbers<[1], [0], [0], [1], [0, 0, 1, 1], [], []>, precision = #tpu.contract_precision<fp32>} : vector<2x64xf32>, vector<64x64xf32>, vector<2x64xf32> -> vector<2x64xf32>
    %27 = arith.addf %25, %26 : vector<2x64xf32>
    %28 = math.tanh %27 : vector<2x64xf32>
    %29 = vector.extract_strided_slice %6 {offsets = [12, 0], sizes = [2, 64], strides = [1, 1]} : vector<16x64xf32> to vector<2x64xf32>
    %cst_10 = arith.constant dense<0.000000e+00> : vector<2x64xf32>
    %30 = tpu.matmul %28, %1, %cst_10 {dimension_numbers = #tpu.dot_dimension_numbers<[1], [0], [0], [1], [0, 0, 1, 1], [], []>, precision = #tpu.contract_precision<fp32>} : vector<2x64xf32>, vector<64x64xf32>, vector<2x64xf32> -> vector<2x64xf32>
    %31 = arith.addf %29, %30 : vector<2x64xf32>
    %32 = math.tanh %31 : vector<2x64xf32>
    %33 = vector.extract_strided_slice %6 {offsets = [14, 0], sizes = [2, 64], strides = [1, 1]} : vector<16x64xf32> to vector<2x64xf32>
    %cst_11 = arith.constant dense<0.000000e+00> : vector<2x64xf32>
    %34 = tpu.matmul %32, %1, %cst_11 {dimension_numbers = #tpu.dot_dimension_numbers<[1], [0], [0], [1], [0, 0, 1, 1], [], []>, precision = #tpu.contract_precision<fp32>} : vector<2x64xf32>, vector<64x64xf32>, vector<2x64xf32> -> vector<2x64xf32>
    %35 = arith.addf %33, %34 : vector<2x64xf32>
    %36 = math.tanh %35 : vector<2x64xf32>
    %37 = tpu.concatenate %8, %12, %16, %20, %24, %28, %32, %36 in 0 : vector<2x64xf32>, vector<2x64xf32>, vector<2x64xf32>, vector<2x64xf32>, vector<2x64xf32>, vector<2x64xf32>, vector<2x64xf32>, vector<2x64xf32> -> vector<16x64xf32>
    %c0_12 = arith.constant 0 : index
    %c0_13 = arith.constant 0 : index
    %38 = vector.load %arg2[%c0_12, %c0_13] : memref<16x64xf32, #tpu.memory_space<vmem>>, vector<16x64xf32>
    tpu.vector_store %arg2[%c0_12, %c0_13], %37 {strides = array<i32>} : memref<16x64xf32, #tpu.memory_space<vmem>>, vector<16x64xf32>,
    return
  }
}

</mosaic_0001>

<llo_original>
// kernel: tpu_custom_call.1
$region0: #{tpu_custom_call.1}
  #allocation0 [shape = 'u32[]', space=smem, size = 0x4, offset = 0x4, fixed_abs, tag = 'smem constant byte address 0x4 - core index']
  #allocation1 [shape = 'u32[144,128]{1,0:T(1,128)}', space=vmem, size = 0x12000, scoped, tag = 'internal scratch']
  %s0 = inlined_call_operand.vmem [shape: f32[16,32], index: 0, kind: input, shape index: {}]
  %s1 = inlined_call_operand.vmem [shape: f32[104,64], index: 1, kind: input, shape index: {}]
  %s2 = inlined_call_operand.hbm [shape: f32[16,64], index: 2, kind: output, shape index: {}]
  %s3 = sld [smem:[#allocation0]]
  $region18: #{tpu_custom_call.1} parent=0
    _
  %s5 = ssub.s32 1, %s3
  %s6 = scalar_select 0, %s5, %s3
  $region1: #{tpu_custom_call.1} parent=0
    #allocation2 [shape = 'u8[8192]{0}', space=vmem, size = 0x2000, scoped, tag = 'output window, operand 0, single buffered']
    #allocation3 [shape = 's32[1]{0}', space=sflag, size = 0x4, scoped, tag = 'scoped memory for tpu_custom_call.1']
    %7 = vsyncpa [#allocation3], 0
    // Predicated region
    $region2: #{tpu_custom_call.1} parent=1 // pred_check
      _
    $region3: #{tpu_custom_call.1} parent=1 // pred_check_branch
      %9 = sbr.rel (0) target = $region5
    $region4: #{tpu_custom_call.1} parent=1 // pred_region
      _
    $region5: #{tpu_custom_call.1} parent=1 // pred_fallthru
      _
    // Predicated region
    $region6: #{tpu_custom_call.1} parent=1 // pred_check
      _
    $region7: #{tpu_custom_call.1} parent=1 // pred_check_branch
      %11 = sbr.rel (0) target = $region9
    $region8: #{tpu_custom_call.1} parent=1 // pred_region
      _
    $region9: #{tpu_custom_call.1} parent=1 // pred_fallthru
      _
    %v12 = vld [vmem:[%s1] sm:$0xff]
    %v13 = vld [vmem:[%s1 + $0x8] sm:$0xff]
    %v14 = vld [vmem:[%s1 + $0x10] sm:$0xff]
    %v15 = vld [vmem:[%s1 + $0x18] sm:$0xff]
    %v16 = vld [vmem:[%s1 + $0x20] sm:$0xff]
    %v17 = vld [vmem:[%s1 + $0x28] sm:$0xff]
    %v18 = vld [vmem:[%s1 + $0x30] sm:$0xff]
    %v19 = vld [vmem:[%s1 + $0x38] sm:$0xff]
    %v20 = vld [vmem:[%s1 + $0x40] sm:$0xff]
    %v21 = vld [vmem:[%s1 + $0x48] sm:$0xff]
    %v22 = vld [vmem:[%s1 + $0x50] sm:$0xff]
    %v23 = vld [vmem:[%s1 + $0x58] sm:$0xff]
    %v24 = vld [vmem:[%s1 + $0x60] sm:$0x1]
    %v25 = vld [vmem:[%s0] sm:$0xff]
    %v26 = vld [vmem:[%s0 + $0x8] sm:$0xff]
    %v27 = vlaneseq
    %v28 = vshrl.u32 %v27, 7
    %v29 = vsub.s32 0, %v28
    %v30 = vrot.slane %v24, %v29
    %vm31 = vcmask 261120
    %v33 = vsel %vm31, %v25, 0
    %v36 = vsel %vm31, %v26, 0
    %38 = vmatprep.subr.mxu0 0.0
    %v39 = vand.u32 %v12, 4294901760
    %40 = vmatpush1.msra.mxu0 %v39
    %41 = vmatprep.subr.mxu0 0.0
    %v42 = vand.u32 %v13, 4294901760
    %43 = vmatpush1.msra.mxu0 %v42
    %44 = vmatprep.subr.mxu0 0.0
    %v45 = vand.u32 %v14, 4294901760
    %46 = vmatpush1.msra.mxu0 %v45
    %47 = vmatprep.subr.mxu0 0.0
    %v48 = vand.u32 %v15, 4294901760
    %49 = vmatpush1.msra.mxu0 %v48
    %50 = vmatprep.subr.mxu0 0.0
    %51 = vmatpush1.msra.mxu0 0.0
    %52 = vmatprep.subr.mxu0 0.0
    %53 = vmatpush1.msra.mxu0 0.0
    %54 = vmatprep.subr.mxu0 0.0
    %55 = vmatpush1.msra.mxu0 0.0
    %56 = vmatprep.subr.mxu0 0.0
    %57 = vmatpush1.msra.mxu0 0.0
    %58 = vmatprep.subr.mxu0 0.0
    %59 = vmatpush1.msra.mxu0 0.0
    %60 = vmatprep.subr.mxu0 0.0
    %61 = vmatpush1.msra.mxu0 0.0
    %62 = vmatprep.subr.mxu0 0.0
    %63 = vmatpush1.msra.mxu0 0.0
    %64 = vmatprep.subr.mxu0 0.0
    %65 = vmatpush1.msra.mxu0 0.0
    %66 = vmatprep.subr.mxu0 0.0
    %67 = vmatpush1.msra.mxu0 0.0
    %68 = vmatprep.subr.mxu0 0.0
    %69 = vmatpush1.msra.mxu0 0.0
    %70 = vmatprep.subr.mxu0 0.0
    %71 = vmatpush1.msra.mxu0 0.0
    %72 = vmatprep.subr.mxu0 0.0
    %73 = vmatpush1.msra.mxu0 0.0
    %74 = vmatprep.subr.mxu0 0.0
    %75 = vmatpush1.msra.mxu0 0.0
    %76 = vmatprep.subr.mxu0 0.0
    %77 = vmatpush1.msra.mxu0 0.0
    %78 = vmatprep.subr.mxu0 0.0
    %79 = vmatpush1.msra.mxu0 0.0
    %80 = vmatprep.subr.mxu0 0.0
    %81 = vmatpush1.msra.mxu0 0.0
    %82 = vmatprep.subr.mxu0 0.0
    %83 = vmatpush1.msra.mxu0 0.0
    %84 = vmatprep.subr.mxu0 0.0
    %85 = vmatpush1.msra.mxu0 0.0
    %86 = vmatprep.subr.mxu0 0.0
    %87 = vmatpush1.msra.mxu0 0.0
    %88 = vmatprep.subr.mxu0 0.0
    %89 = vmatpush1.msra.mxu0 0.0
    %90 = vmatprep.subr.mxu0 0.0
    %91 = vmatpush1.msra.mxu0 0.0
    %92 = vmatprep.subr.mxu0 0.0
    %93 = vmatpush1.msra.mxu0 0.0
    %94 = vmatprep.subr.mxu0 0.0
    %95 = vmatpush1.msra.mxu0 0.0
    %96 = vmatprep.subr.mxu0 0.0
    %97 = vmatpush1.msra.mxu0 0.0
    %98 = vmatprep.subr.mxu0 0.0
    %99 = vmatpush1.msra.mxu0 0.0
    %100 = vmatprep.subr.mxu0 0.0
    %101 = vmatpush1.msra.mxu0 0.0
    %102 = vmatprep.subr.mxu0 0.0
    %103 = vmatpush1.msra.mxu0 0.0
    %104 = vmatprep.subr.mxu0 0.0
    %105 = vmatpush1.msra.mxu0 0.0
    %106 = vmatprep.mubr.f32.mxu0 0.0
    %v107 = vand.u32 %v33, 4294901760
    %v108 = vsub.f32 %v33, %v107
    %v109 = vand.u32 %v108, 4294901760
    %v110 = vsub.f32 %v108, %v109
    %v111 = vand.u32 %v110, 4294901760
    %112 = vmatmul.mubr.f32.gmra.mrb[0].mxu0 %v111
    %v113 = vpop.f32.mrb[0].mxu0
    %v114 = vadd.f32 %v30, %v113
    %v115 = vpop.f32.mrb[0].mxu0
    %116 = vmatprep.mubr.f32.mxu0 0.0
    %v117 = vand.u32 %v36, 4294901760
    %v118 = vsub.f32 %v36, %v117
    %v119 = vand.u32 %v118, 4294901760
    %v120 = vsub.f32 %v118, %v119
    %v121 = vand.u32 %v120, 4294901760
    %122 = vmatmul.mubr.f32.gmra.mrb[0].mxu0 %v121
    %v123 = vpop.f32.mrb[0].mxu0
    %v124 = vadd.f32 %v30, %v123
    %v125 = vpop.f32.mrb[0].mxu0
    %126 = vdwg.mxu0
    %127 = vmatprep.subr.mxu0 0.0
    %v128 = vand.u32 %v12, 4294901760
    %v129 = vsub.f32 %v12, %v128
    %v130 = vand.u32 %v129, 4294901760
    %v131 = vsub.f32 %v129, %v130
    %v132 = vand.u32 %v131, 4294901760
    %133 = vmatpush1.msra.mxu0 %v132
    %134 = vmatprep.subr.mxu0 0.0
    %v135 = vand.u32 %v13, 4294901760
    %v136 = vsub.f32 %v13, %v135
    %v137 = vand.u32 %v136, 4294901760
    %v138 = vsub.f32 %v136, %v137
    %v139 = vand.u32 %v138, 4294901760
    %140 = vmatpush1.msra.mxu0 %v139
    %141 = vmatprep.subr.mxu0 0.0
    %v142 = vand.u32 %v14, 4294901760
    %v143 = vsub.f32 %v14, %v142
    %v144 = vand.u32 %v143, 4294901760
    %v145 = vsub.f32 %v143, %v144
    %v146 = vand.u32 %v145, 4294901760
    %147 = vmatpush1.msra.mxu0 %v146
    %148 = vmatprep.subr.mxu0 0.0
    %v149 = vand.u32 %v15, 4294901760
    %v150 = vsub.f32 %v15, %v149
    %v151 = vand.u32 %v150, 4294901760
    %v152 = vsub.f32 %v150, %v151
    %v153 = vand.u32 %v152, 4294901760
    %154 = vmatpush1.msra.mxu0 %v153
    %155 = vmatprep.subr.mxu0 0.0
    %156 = vmatpush1.msra.mxu0 0.0
    %157 = vmatprep.subr.mxu0 0.0
    %158 = vmatpush1.msra.mxu0 0.0
    %159 = vmatprep.subr.mxu0 0.0
    %160 = vmatpush1.msra.mxu0 0.0
    %161 = vmatprep.subr.mxu0 0.0
    %162 = vmatpush1.msra.mxu0 0.0
    %163 = vmatprep.subr.mxu0 0.0
    %164 = vmatpush1.msra.mxu0 0.0
    %165 = vmatprep.subr.mxu0 0.0
    %166 = vmatpush1.msra.mxu0 0.0
    %167 = vmatprep.subr.mxu0 0.0
    %168 = vmatpush1.msra.mxu0 0.0
    %169 = vmatprep.subr.mxu0 0.0
    %170 = vmatpush1.msra.mxu0 0.0
    %171 = vmatprep.subr.mxu0 0.0
    %172 = vmatpush1.msra.mxu0 0.0
    %173 = vmatprep.subr.mxu0 0.0
    %174 = vmatpush1.msra.mxu0 0.0
    %175 = vmatprep.subr.mxu0 0.0
    %176 = vmatpush1.msra.mxu0 0.0
    %177 = vmatprep.subr.mxu0 0.0
    %178 = vmatpush1.msra.mxu0 0.0
    %179 = vmatprep.subr.mxu0 0.0
    %180 = vmatpush1.msra.mxu0 0.0
    %181 = vmatprep.subr.mxu0 0.0
    %182 = vmatpush1.msra.mxu0 0.0
    %183 = vmatprep.subr.mxu0 0.0
    %184 = vmatpush1.msra.mxu0 0.0
    %185 = vmatprep.subr.mxu0 0.0
    %186 = vmatpush1.msra.mxu0 0.0
    %187 = vmatprep.subr.mxu0 0.0
    %188 = vmatpush1.msra.mxu0 0.0
    %189 = vmatprep.subr.mxu0 0.0
    %190 = vmatpush1.msra.mxu0 0.0
    %191 = vmatprep.subr.mxu0 0.0
    %192 = vmatpush1.msra.mxu0 0.0
    %193 = vmatprep.subr.mxu0 0.0
    %194 = vmatpush1.msra.mxu0 0.0
    %195 = vmatprep.subr.mxu0 0.0
    %196 = vmatpush1.msra.mxu0 0.0
    %197 = vmatprep.subr.mxu0 0.0
    %198 = vmatpush1.msra.mxu0 0.0
    %199 = vmatprep.subr.mxu0 0.0
    %200 = vmatpush1.msra.mxu0 0.0
    %201 = vmatprep.subr.mxu0 0.0
    %202 = vmatpush1.msra.mxu0 0.0
    %203 = vmatprep.subr.mxu0 0.0
    %204 = vmatpush1.msra.mxu0 0.0
    %205 = vmatprep.subr.mxu0 0.0
    %206 = vmatpush1.msra.mxu0 0.0
    %207 = vmatprep.subr.mxu0 0.0
    %208 = vmatpush1.msra.mxu0 0.0
    %209 = vmatprep.subr.mxu0 0.0
    %210 = vmatpush1.msra.mxu0 0.0
    %211 = vmatprep.mubr.f32.mxu0 0.0
    %v212 = vand.u32 %v33, 4294901760
    %213 = vmatmul.mubr.f32.gmra.mrb[0].mxu0 %v212
    %v214 = vpop.f32.mrb[0].mxu0
    %v215 = vadd.f32 %v114, %v214
    %v216 = vpop.f32.mrb[0].mxu0
    %217 = vmatprep.mubr.f32.mxu0 0.0
    %v218 = vand.u32 %v36, 4294901760
    %219 = vmatmul.mubr.f32.gmra.mrb[0].mxu0 %v218
    %v220 = vpop.f32.mrb[0].mxu0
    %v221 = vadd.f32 %v124, %v220
    %v222 = vpop.f32.mrb[0].mxu0
    %223 = vdwg.mxu0
    %224 = vmatprep.subr.mxu0 0.0
    %v225 = vand.u32 %v12, 4294901760
    %v226 = vsub.f32 %v12, %v225
    %227 = vmatpush1.msra.mxu0 %v226
    %228 = vmatprep.subr.mxu0 0.0
    %v229 = vand.u32 %v13, 4294901760
    %v230 = vsub.f32 %v13, %v229
    %231 = vmatpush1.msra.mxu0 %v230
    %232 = vmatprep.subr.mxu0 0.0
    %v233 = vand.u32 %v14, 4294901760
    %v234 = vsub.f32 %v14, %v233
    %235 = vmatpush1.msra.mxu0 %v234
    %236 = vmatprep.subr.mxu0 0.0
    %v237 = vand.u32 %v15, 4294901760
    %v238 = vsub.f32 %v15, %v237
    %239 = vmatpush1.msra.mxu0 %v238
    %240 = vmatprep.subr.mxu0 0.0
    %241 = vmatpush1.msra.mxu0 0.0
    %242 = vmatprep.subr.mxu0 0.0
    %243 = vmatpush1.msra.mxu0 0.0
    %244 = vmatprep.subr.mxu0 0.0
    %245 = vmatpush1.msra.mxu0 0.0
    %246 = vmatprep.subr.mxu0 0.0
    %247 = vmatpush1.msra.mxu0 0.0
    %248 = vmatprep.subr.mxu0 0.0
    %249 = vmatpush1.msra.mxu0 0.0
    %250 = vmatprep.subr.mxu0 0.0
    %251 = vmatpush1.msra.mxu0 0.0
    %252 = vmatprep.subr.mxu0 0.0
    %253 = vmatpush1.msra.mxu0 0.0
    %254 = vmatprep.subr.mxu0 0.0
    %255 = vmatpush1.msra.mxu0 0.0
    %256 = vmatprep.subr.mxu0 0.0
    %257 = vmatpush1.msra.mxu0 0.0
    %258 = vmatprep.subr.mxu0 0.0
    %259 = vmatpush1.msra.mxu0 0.0
    %260 = vmatprep.subr.mxu0 0.0
    %261 = vmatpush1.msra.mxu0 0.0
    %262 = vmatprep.subr.mxu0 0.0
    %263 = vmatpush1.msra.mxu0 0.0
    %264 = vmatprep.subr.mxu0 0.0
    %265 = vmatpush1.msra.mxu0 0.0
    %266 = vmatprep.subr.mxu0 0.0
    %267 = vmatpush1.msra.mxu0 0.0
    %268 = vmatprep.subr.mxu0 0.0
    %269 = vmatpush1.msra.mxu0 0.0
    %270 = vmatprep.subr.mxu0 0.0
    %271 = vmatpush1.msra.mxu0 0.0
    %272 = vmatprep.subr.mxu0 0.0
    %273 = vmatpush1.msra.mxu0 0.0
    %274 = vmatprep.subr.mxu0 0.0
    %275 = vmatpush1.msra.mxu0 0.0
    %276 = vmatprep.subr.mxu0 0.0
    %277 = vmatpush1.msra.mxu0 0.0
    %278 = vmatprep.subr.mxu0 0.0
    %279 = vmatpush1.msra.mxu0 0.0
    %280 = vmatprep.subr.mxu0 0.0
    %281 = vmatpush1.msra.mxu0 0.0
    %282 = vmatprep.subr.mxu0 0.0
    %283 = vmatpush1.msra.mxu0 0.0
    %284 = vmatprep.subr.mxu0 0.0
    %285 = vmatpush1.msra.mxu0 0.0
    %286 = vmatprep.subr.mxu0 0.0
    %287 = vmatpush1.msra.mxu0 0.0
    %288 = vmatprep.subr.mxu0 0.0
    %289 = vmatpush1.msra.mxu0 0.0
    %290 = vmatprep.subr.mxu0 0.0
    %291 = vmatpush1.msra.mxu0 0.0
    %292 = vmatprep.subr.mxu0 0.0
    %293 = vmatpush1.msra.mxu0 0.0
    %294 = vmatprep.subr.mxu0 0.0
    %295 = vmatpush1.msra.mxu0 0.0
    %296 = vmatprep.mubr.f32.mxu0 0.0
    %v297 = vand.u32 %v33, 4294901760
    %v298 = vsub.f32 %v33, %v297
    %299 = vmatmul.mubr.f32.gmra.mrb[0].mxu0 %v298
    %v300 = vpop.f32.mrb[0].mxu0
    %v301 = vadd.f32 %v215, %v300
    %v302 = vpop.f32.mrb[0].mxu0
    %303 = vmatprep.mubr.f32.mxu0 0.0
    %v304 = vand.u32 %v36, 4294901760
    %v305 = vsub.f32 %v36, %v304
    %306 = vmatmul.mubr.f32.gmra.mrb[0].mxu0 %v305
    %v307 = vpop.f32.mrb[0].mxu0
    %v308 = vadd.f32 %v221, %v307
    %v309 = vpop.f32.mrb[0].mxu0
    %310 = vdwg.mxu0
    %311 = vmatprep.subr.mxu0 0.0
    %v312 = vand.u32 %v12, 4294901760
    %313 = vmatpush1.msra.mxu0 %v312
    %314 = vmatprep.subr.mxu0 0.0
    %v315 = vand.u32 %v13, 4294901760
    %316 = vmatpush1.msra.mxu0 %v315
    %317 = vmatprep.subr.mxu0 0.0
    %v318 = vand.u32 %v14, 4294901760
    %319 = vmatpush1.msra.mxu0 %v318
    %320 = vmatprep.subr.mxu0 0.0
    %v321 = vand.u32 %v15, 4294901760
    %322 = vmatpush1.msra.mxu0 %v321
    %323 = vmatprep.subr.mxu0 0.0
    %324 = vmatpush1.msra.mxu0 0.0
    %325 = vmatprep.subr.mxu0 0.0
    %326 = vmatpush1.msra.mxu0 0.0
    %327 = vmatprep.subr.mxu0 0.0
    %328 = vmatpush1.msra.mxu0 0.0
    %329 = vmatprep.subr.mxu0 0.0
    %330 = vmatpush1.msra.mxu0 0.0
    %331 = vmatprep.subr.mxu0 0.0
    %332 = vmatpush1.msra.mxu0 0.0
    %333 = vmatprep.subr.mxu0 0.0
    %334 = vmatpush1.msra.mxu0 0.0
    %335 = vmatprep.subr.mxu0 0.0
    %336 = vmatpush1.msra.mxu0 0.0
    %337 = vmatprep.subr.mxu0 0.0
    %338 = vmatpush1.msra.mxu0 0.0
    %339 = vmatprep.subr.mxu0 0.0
    %340 = vmatpush1.msra.mxu0 0.0
    %341 = vmatprep.subr.mxu0 0.0
    %342 = vmatpush1.msra.mxu0 0.0
    %343 = vmatprep.subr.mxu0 0.0
    %344 = vmatpush1.msra.mxu0 0.0
    %345 = vmatprep.subr.mxu0 0.0
    %346 = vmatpush1.msra.mxu0 0.0
    %347 = vmatprep.subr.mxu0 0.0
    %348 = vmatpush1.msra.mxu0 0.0
    %349 = vmatprep.subr.mxu0 0.0
    %350 = vmatpush1.msra.mxu0 0.0
    %351 = vmatprep.subr.mxu0 0.0
    %352 = vmatpush1.msra.mxu0 0.0
    %353 = vmatprep.subr.mxu0 0.0
    %354 = vmatpush1.msra.mxu0 0.0
    %355 = vmatprep.subr.mxu0 0.0
    %356 = vmatpush1.msra.mxu0 0.0
    %357 = vmatprep.subr.mxu0 0.0
    %358 = vmatpush1.msra.mxu0 0.0
    %359 = vmatprep.subr.mxu0 0.0
    %360 = vmatpush1.msra.mxu0 0.0
    %361 = vmatprep.subr.mxu0 0.0
    %362 = vmatpush1.msra.mxu0 0.0
    %363 = vmatprep.subr.mxu0 0.0
    %364 = vmatpush1.msra.mxu0 0.0
    %365 = vmatprep.subr.mxu0 0.0
    %366 = vmatpush1.msra.mxu0 0.0
    %367 = vmatprep.subr.mxu0 0.0
    %368 = vmatpush1.msra.mxu0 0.0
    %369 = vmatprep.subr.mxu0 0.0
    %370 = vmatpush1.msra.mxu0 0.0
    %371 = vmatprep.subr.mxu0 0.0
    %372 = vmatpush1.msra.mxu0 0.0
    %373 = vmatprep.subr.mxu0 0.0
    %374 = vmatpush1.msra.mxu0 0.0
    %375 = vmatprep.subr.mxu0 0.0
    %376 = vmatpush1.msra.mxu0 0.0
    %377 = vmatprep.subr.mxu0 0.0
    %378 = vmatpush1.msra.mxu0 0.0
    %379 = vmatprep.mubr.f32.mxu0 0.0
    %v380 = vand.u32 %v33, 4294901760
    %v381 = vsub.f32 %v33, %v380
    %v382 = vand.u32 %v381, 4294901760
    %383 = vmatmul.mubr.f32.gmra.mrb[0].mxu0 %v382
    %v384 = vpop.f32.mrb[0].mxu0
    %v385 = vadd.f32 %v301, %v384
    %v386 = vpop.f32.mrb[0].mxu0
    %387 = vmatprep.mubr.f32.mxu0 0.0
    %v388 = vand.u32 %v36, 4294901760
    %v389 = vsub.f32 %v36, %v388
    %v390 = vand.u32 %v389, 4294901760
    %391 = vmatmul.mubr.f32.gmra.mrb[0].mxu0 %v390
    %v392 = vpop.f32.mrb[0].mxu0
    %v393 = vadd.f32 %v308, %v392
    %v394 = vpop.f32.mrb[0].mxu0
    %395 = vdwg.mxu0
    %396 = vmatprep.subr.mxu0 0.0
    %v397 = vand.u32 %v12, 4294901760
    %v398 = vsub.f32 %v12, %v397
    %v399 = vand.u32 %v398, 4294901760
    %400 = vmatpush1.msra.mxu0 %v399
    %401 = vmatprep.subr.mxu0 0.0
    %v402 = vand.u32 %v13, 4294901760
    %v403 = vsub.f32 %v13, %v402
    %v404 = vand.u32 %v403, 4294901760
    %405 = vmatpush1.msra.mxu0 %v404
    %406 = vmatprep.subr.mxu0 0.0
    %v407 = vand.u32 %v14, 4294901760
    %v408 = vsub.f32 %v14, %v407
    %v409 = vand.u32 %v408, 4294901760
    %410 = vmatpush1.msra.mxu0 %v409
    %411 = vmatprep.subr.mxu0 0.0
    %v412 = vand.u32 %v15, 4294901760
    %v413 = vsub.f32 %v15, %v412
    %v414 = vand.u32 %v413, 4294901760
    %415 = vmatpush1.msra.mxu0 %v414
    %416 = vmatprep.subr.mxu0 0.0
    %417 = vmatpush1.msra.mxu0 0.0
    %418 = vmatprep.subr.mxu0 0.0
    %419 = vmatpush1.msra.mxu0 0.0
    %420 = vmatprep.subr.mxu0 0.0
    %421 = vmatpush1.msra.mxu0 0.0
    %422 = vmatprep.subr.mxu0 0.0
    %423 = vmatpush1.msra.mxu0 0.0
    %424 = vmatprep.subr.mxu0 0.0
    %425 = vmatpush1.msra.mxu0 0.0
    %426 = vmatprep.subr.mxu0 0.0
    %427 = vmatpush1.msra.mxu0 0.0
    %428 = vmatprep.subr.mxu0 0.0
    %429 = vmatpush1.msra.mxu0 0.0
    %430 = vmatprep.subr.mxu0 0.0
    %431 = vmatpush1.msra.mxu0 0.0
    %432 = vmatprep.subr.mxu0 0.0
    %433 = vmatpush1.msra.mxu0 0.0
    %434 = vmatprep.subr.mxu0 0.0
    %435 = vmatpush1.msra.mxu0 0.0
    %436 = vmatprep.subr.mxu0 0.0
    %437 = vmatpush1.msra.mxu0 0.0
    %438 = vmatprep.subr.mxu0 0.0
    %439 = vmatpush1.msra.mxu0 0.0
    %440 = vmatprep.subr.mxu0 0.0
    %441 = vmatpush1.msra.mxu0 0.0
    %442 = vmatprep.subr.mxu0 0.0
    %443 = vmatpush1.msra.mxu0 0.0
    %444 = vmatprep.subr.mxu0 0.0
    %445 = vmatpush1.msra.mxu0 0.0
    %446 = vmatprep.subr.mxu0 0.0
    %447 = vmatpush1.msra.mxu0 0.0
    %448 = vmatprep.subr.mxu0 0.0
    %449 = vmatpush1.msra.mxu0 0.0
    %450 = vmatprep.subr.mxu0 0.0
    %451 = vmatpush1.msra.mxu0 0.0
    %452 = vmatprep.subr.mxu0 0.0
    %453 = vmatpush1.msra.mxu0 0.0
    %454 = vmatprep.subr.mxu0 0.0
    %455 = vmatpush1.msra.mxu0 0.0
    %456 = vmatprep.subr.mxu0 0.0
    %457 = vmatpush1.msra.mxu0 0.0
    %458 = vmatprep.subr.mxu0 0.0
    %459 = vmatpush1.msra.mxu0 0.0
    %460 = vmatprep.subr.mxu0 0.0
    %461 = vmatpush1.msra.mxu0 0.0
    %462 = vmatprep.subr.mxu0 0.0
    %463 = vmatpush1.msra.mxu0 0.0
    %464 = vmatprep.subr.mxu0 0.0
    %465 = vmatpush1.msra.mxu0 0.0
    %466 = vmatprep.subr.mxu0 0.0
    %467 = vmatpush1.msra.mxu0 0.0
    %468 = vmatprep.subr.mxu0 0.0
    %469 = vmatpush1.msra.mxu0 0.0
    %470 = vmatprep.subr.mxu0 0.0
    %471 = vmatpush1.msra.mxu0 0.0
    %472 = vmatprep.mubr.f32.mxu0 0.0
    %v473 = vand.u32 %v33, 4294901760
    %474 = vmatmul.mubr.f32.gmra.mrb[0].mxu0 %v473
    %v475 = vpop.f32.mrb[0].mxu0
    %v476 = vadd.f32 %v385, %v475
    %v477 = vpop.f32.mrb[0].mxu0
    %478 = vmatprep.mubr.f32.mxu0 0.0
    %v479 = vand.u32 %v36, 4294901760
    %480 = vmatmul.mubr.f32.gmra.mrb[0].mxu0 %v479
    %v481 = vpop.f32.mrb[0].mxu0
    %v482 = vadd.f32 %v393, %v481
    %v483 = vpop.f32.mrb[0].mxu0
    %484 = vdwg.mxu0
    %485 = vmatprep.subr.mxu0 0.0
    %v486 = vand.u32 %v12, 4294901760
    %487 = vmatpush1.msra.mxu0 %v486
    %488 = vmatprep.subr.mxu0 0.0
    %v489 = vand.u32 %v13, 4294901760
    %490 = vmatpush1.msra.mxu0 %v489
    %491 = vmatprep.subr.mxu0 0.0
    %v492 = vand.u32 %v14, 4294901760
    %493 = vmatpush1.msra.mxu0 %v492
    %494 = vmatprep.subr.mxu0 0.0
    %v495 = vand.u32 %v15, 4294901760
    %496 = vmatpush1.msra.mxu0 %v495
    %497 = vmatprep.subr.mxu0 0.0
    %498 = vmatpush1.msra.mxu0 0.0
    %499 = vmatprep.subr.mxu0 0.0
    %500 = vmatpush1.msra.mxu0 0.0
    %501 = vmatprep.subr.mxu0 0.0
    %502 = vmatpush1.msra.mxu0 0.0
    %503 = vmatprep.subr.mxu0 0.0
    %504 = vmatpush1.msra.mxu0 0.0
    %505 = vmatprep.subr.mxu0 0.0
    %506 = vmatpush1.msra.mxu0 0.0
    %507 = vmatprep.subr.mxu0 0.0
    %508 = vmatpush1.msra.mxu0 0.0
    %509 = vmatprep.subr.mxu0 0.0
    %510 = vmatpush1.msra.mxu0 0.0
    %511 = vmatprep.subr.mxu0 0.0
    %512 = vmatpush1.msra.mxu0 0.0
    %513 = vmatprep.subr.mxu0 0.0
    %514 = vmatpush1.msra.mxu0 0.0
    %515 = vmatprep.subr.mxu0 0.0
    %516 = vmatpush1.msra.mxu0 0.0
    %517 = vmatprep.subr.mxu0 0.0
    %518 = vmatpush1.msra.mxu0 0.0
    %519 = vmatprep.subr.mxu0 0.0
    %520 = vmatpush1.msra.mxu0 0.0
    %521 = vmatprep.subr.mxu0 0.0
    %522 = vmatpush1.msra.mxu0 0.0
    %523 = vmatprep.subr.mxu0 0.0
    %524 = vmatpush1.msra.mxu0 0.0
    %525 = vmatprep.subr.mxu0 0.0
    %526 = vmatpush1.msra.mxu0 0.0
    %527 = vmatprep.subr.mxu0 0.0
    %528 = vmatpush1.msra.mxu0 0.0
    %529 = vmatprep.subr.mxu0 0.0
    %530 = vmatpush1.msra.mxu0 0.0
    %531 = vmatprep.subr.mxu0 0.0
    %532 = vmatpush1.msra.mxu0 0.0
    %533 = vmatprep.subr.mxu0 0.0
    %534 = vmatpush1.msra.mxu0 0.0
    %535 = vmatprep.subr.mxu0 0.0
    %536 = vmatpush1.msra.mxu0 0.0
    %537 = vmatprep.subr.mxu0 0.0
    %538 = vmatpush1.msra.mxu0 0.0
    %539 = vmatprep.subr.mxu0 0.0
    %540 = vmatpush1.msra.mxu0 0.0
    %541 = vmatprep.subr.mxu0 0.0
    %542 = vmatpush1.msra.mxu0 0.0
    %543 = vmatprep.subr.mxu0 0.0
    %544 = vmatpush1.msra.mxu0 0.0
    %545 = vmatprep.subr.mxu0 0.0
    %546 = vmatpush1.msra.mxu0 0.0
    %547 = vmatprep.subr.mxu0 0.0
    %548 = vmatpush1.msra.mxu0 0.0
    %549 = vmatprep.subr.mxu0 0.0
    %550 = vmatpush1.msra.mxu0 0.0
    %551 = vmatprep.subr.mxu0 0.0
    %552 = vmatpush1.msra.mxu0 0.0
    %553 = vmatprep.mubr.f32.mxu0 0.0
    %v554 = vand.u32 %v33, 4294901760
    %555 = vmatmul.mubr.f32.gmra.mrb[0].mxu0 %v554
    %v556 = vpop.f32.mrb[0].mxu0
    %v557 = vadd.f32 %v476, %v556
    %v558 = vpop.f32.mrb[0].mxu0
    %559 = vmatprep.mubr.f32.mxu0 0.0
    %v560 = vand.u32 %v36, 4294901760
    %561 = vmatmul.mubr.f32.gmra.mrb[0].mxu0 %v560
    %v562 = vpop.f32.mrb[0].mxu0
    %v563 = vadd.f32 %v482, %v562
    %v564 = vpop.f32.mrb[0].mxu0
    %565 = vdwg.mxu0
    %v566 = vtanh.pop %v557
    %vm567 = vcmask 523264
    %v569 = vsel %vm567, %v566, 0
    %571 = vmatprep.subr.mxu0 0.0
    %v572 = vand.u32 %v16, 4294901760
    %573 = vmatpush1.msra.mxu0 %v572
    %574 = vmatprep.subr.mxu0 0.0
    %v575 = vand.u32 %v17, 4294901760
    %576 = vmatpush1.msra.mxu0 %v575
    %577 = vmatprep.subr.mxu0 0.0
    %v578 = vand.u32 %v18, 4294901760
    %579 = vmatpush1.msra.mxu0 %v578
    %580 = vmatprep.subr.mxu0 0.0
    %v581 = vand.u32 %v19, 4294901760
    %582 = vmatpush1.msra.mxu0 %v581
    %583 = vmatprep.subr.mxu0 0.0
    %v584 = vand.u32 %v20, 4294901760
    %585 = vmatpush1.msra.mxu0 %v584
    %586 = vmatprep.subr.mxu0 0.0
    %v587 = vand.u32 %v21, 4294901760
    %588 = vmatpush1.msra.mxu0 %v587
    %589 = vmatprep.subr.mxu0 0.0
    %v590 = vand.u32 %v22, 4294901760
    %591 = vmatpush1.msra.mxu0 %v590
    %592 = vmatprep.subr.mxu0 0.0
    %v593 = vand.u32 %v23, 4294901760
    %594 = vmatpush1.msra.mxu0 %v593
    %595 = vmatprep.subr.mxu0 0.0
    %596 = vmatpush1.msra.mxu0 0.0
    %597 = vmatprep.subr.mxu0 0.0
    %598 = vmatpush1.msra.mxu0 0.0
    %599 = vmatprep.subr.mxu0 0.0
    %600 = vmatpush1.msra.mxu0 0.0
    %601 = vmatprep.subr.mxu0 0.0
    %602 = vmatpush1.msra.mxu0 0.0
    %603 = vmatprep.subr.mxu0 0.0
    %604 = vmatpush1.msra.mxu0 0.0
    %605 = vmatprep.subr.mxu0 0.0
    %606 = vmatpush1.msra.mxu0 0.0
    %607 = vmatprep.subr.mxu0 0.0
    %608 = vmatpush1.msra.mxu0 0.0
    %609 = vmatprep.subr.mxu0 0.0
    %610 = vmatpush1.msra.mxu0 0.0
    %611 = vmatprep.subr.mxu0 0.0
    %612 = vmatpush1.msra.mxu0 0.0
    %613 = vmatprep.subr.mxu0 0.0
    %614 = vmatpush1.msra.mxu0 0.0
    %615 = vmatprep.subr.mxu0 0.0
    %616 = vmatpush1.msra.mxu0 0.0
    %617 = vmatprep.subr.mxu0 0.0
    %618 = vmatpush1.msra.mxu0 0.0
    %619 = vmatprep.subr.mxu0 0.0
    %620 = vmatpush1.msra.mxu0 0.0
    %621 = vmatprep.subr.mxu0 0.0
    %622 = vmatpush1.msra.mxu0 0.0
    %623 = vmatprep.subr.mxu0 0.0
    %624 = vmatpush1.msra.mxu0 0.0
    %625 = vmatprep.subr.mxu0 0.0
    %626 = vmatpush1.msra.mxu0 0.0
    %627 = vmatprep.subr.mxu0 0.0
    %628 = vmatpush1.msra.mxu0 0.0
    %629 = vmatprep.subr.mxu0 0.0
    %630 = vmatpush1.msra.mxu0 0.0
    %631 = vmatprep.subr.mxu0 0.0
    %632 = vmatpush1.msra.mxu0 0.0
    %633 = vmatprep.subr.mxu0 0.0
    %634 = vmatpush1.msra.mxu0 0.0
    %635 = vmatprep.subr.mxu0 0.0
    %636 = vmatpush1.msra.mxu0 0.0
    %637 = vmatprep.subr.mxu0 0.0
    %638 = vmatpush1.msra.mxu0 0.0
    %639 = vmatprep.subr.mxu0 0.0
    %640 = vmatpush1.msra.mxu0 0.0
    %641 = vmatprep.subr.mxu0 0.0
    %642 = vmatpush1.msra.mxu0 0.0
    %643 = vmatprep.mubr.f32.mxu0 0.0
    %v644 = vand.u32 %v569, 4294901760
    %v645 = vsub.f32 %v569, %v644
    %v646 = vand.u32 %v645, 4294901760
    %v647 = vsub.f32 %v645, %v646
    %v648 = vand.u32 %v647, 4294901760
    %649 = vmatmul.mubr.f32.gmra.mrb[0].mxu0 %v648
    %v650 = vpop.f32.mrb[0].mxu0
    %v651 = vadd.f32 0.0, %v650
    %v652 = vpop.f32.mrb[0].mxu0
    %653 = vdwg.mxu0
    %654 = vmatprep.subr.mxu0 0.0
    %v655 = vand.u32 %v16, 4294901760
    %v656 = vsub.f32 %v16, %v655
    %v657 = vand.u32 %v656, 4294901760
    %v658 = vsub.f32 %v656, %v657
    %v659 = vand.u32 %v658, 4294901760
    %660 = vmatpush1.msra.mxu0 %v659
    %661 = vmatprep.subr.mxu0 0.0
    %v662 = vand.u32 %v17, 4294901760
    %v663 = vsub.f32 %v17, %v662
    %v664 = vand.u32 %v663, 4294901760
    %v665 = vsub.f32 %v663, %v664
    %v666 = vand.u32 %v665, 4294901760
    %667 = vmatpush1.msra.mxu0 %v666
    %668 = vmatprep.subr.mxu0 0.0
    %v669 = vand.u32 %v18, 4294901760
    %v670 = vsub.f32 %v18, %v669
    %v671 = vand.u32 %v670, 4294901760
    %v672 = vsub.f32 %v670, %v671
    %v673 = vand.u32 %v672, 4294901760
    %674 = vmatpush1.msra.mxu0 %v673
    %675 = vmatprep.subr.mxu0 0.0
    %v676 = vand.u32 %v19, 4294901760
    %v677 = vsub.f32 %v19, %v676
    %v678 = vand.u32 %v677, 4294901760
    %v679 = vsub.f32 %v677, %v678
    %v680 = vand.u32 %v679, 4294901760
    %681 = vmatpush1.msra.mxu0 %v680
    %682 = vmatprep.subr.mxu0 0.0
    %v683 = vand.u32 %v20, 4294901760
    %v684 = vsub.f32 %v20, %v683
    %v685 = vand.u32 %v684, 4294901760
    %v686 = vsub.f32 %v684, %v685
    %v687 = vand.u32 %v686, 4294901760
    %688 = vmatpush1.msra.mxu0 %v687
    %689 = vmatprep.subr.mxu0 0.0
    %v690 = vand.u32 %v21, 4294901760
    %v691 = vsub.f32 %v21, %v690
    %v692 = vand.u32 %v691, 4294901760
    %v693 = vsub.f32 %v691, %v692
    %v694 = vand.u32 %v693, 4294901760
    %695 = vmatpush1.msra.mxu0 %v694
    %696 = vmatprep.subr.mxu0 0.0
    %v697 = vand.u32 %v22, 4294901760
    %v698 = vsub.f32 %v22, %v697
    %v699 = vand.u32 %v698, 4294901760
    %v700 = vsub.f32 %v698, %v699
    %v701 = vand.u32 %v700, 4294901760
    %702 = vmatpush1.msra.mxu0 %v701
    %703 = vmatprep.subr.mxu0 0.0
    %v704 = vand.u32 %v23, 4294901760
    %v705 = vsub.f32 %v23, %v704
    %v706 = vand.u32 %v705, 4294901760
    %v707 = vsub.f32 %v705, %v706
    %v708 = vand.u32 %v707, 4294901760
    %709 = vmatpush1.msra.mxu0 %v708
    %710 = vmatprep.subr.mxu0 0.0
    %711 = vmatpush1.msra.mxu0 0.0
    %712 = vmatprep.subr.mxu0 0.0
    %713 = vmatpush1.msra.mxu0 0.0
    %714 = vmatprep.subr.mxu0 0.0
    %715 = vmatpush1.msra.mxu0 0.0
    %716 = vmatprep.subr.mxu0 0.0
    %717 = vmatpush1.msra.mxu0 0.0
    %718 = vmatprep.subr.mxu0 0.0
    %719 = vmatpush1.msra.mxu0 0.0
    %720 = vmatprep.subr.mxu0 0.0
    %721 = vmatpush1.msra.mxu0 0.0
    %722 = vmatprep.subr.mxu0 0.0
    %723 = vmatpush1.msra.mxu0 0.0
    %724 = vmatprep.subr.mxu0 0.0
    %725 = vmatpush1.msra.mxu0 0.0
    %726 = vmatprep.subr.mxu0 0.0
    %727 = vmatpush1.msra.mxu0 0.0
    %728 = vmatprep.subr.mxu0 0.0
    %729 = vmatpush1.msra.mxu0 0.0
    %730 = vmatprep.subr.mxu0 0.0
    %731 = vmatpush1.msra.mxu0 0.0
    %732 = vmatprep.subr.mxu0 0.0
    %733 = vmatpush1.msra.mxu0 0.0
    %734 = vmatprep.subr.mxu0 0.0
    %735 = vmatpush1.msra.mxu0 0.0
    %736 = vmatprep.subr.mxu0 0.0
    %737 = vmatpush1.msra.mxu0 0.0
    %738 = vmatprep.subr.mxu0 0.0
    %739 = vmatpush1.msra.mxu0 0.0
    %740 = vmatprep.subr.mxu0 0.0
    %741 = vmatpush1.msra.mxu0 0.0
    %742 = vmatprep.subr.mxu0 0.0
    %743 = vmatpush1.msra.mxu0 0.0
    %744 = vmatprep.subr.mxu0 0.0
    %745 = vmatpush1.msra.mxu0 0.0
    %746 = vmatprep.subr.mxu0 0.0
    %747 = vmatpush1.msra.mxu0 0.0
    %748 = vmatprep.subr.mxu0 0.0
    %749 = vmatpush1.msra.mxu0 0.0
    %750 = vmatprep.subr.mxu0 0.0
    %751 = vmatpush1.msra.mxu0 0.0
    %752 = vmatprep.subr.mxu0 0.0
    %753 = vmatpush1.msra.mxu0 0.0
    %754 = vmatprep.subr.mxu0 0.0
    %755 = vmatpush1.msra.mxu0 0.0
    %756 = vmatprep.subr.mxu0 0.0
    %757 = vmatpush1.msra.mxu0 0.0
    %758 = vmatprep.mubr.f32.mxu0 0.0
    %v759 = vand.u32 %v569, 4294901760
    %760 = vmatmul.mubr.f32.gmra.mrb[0].mxu0 %v759
    %v761 = vpop.f32.mrb[0].mxu0
    %v762 = vadd.f32 %v651, %v761
    %v763 = vpop.f32.mrb[0].mxu0
    %764 = vdwg.mxu0
    %765 = vmatprep.subr.mxu0 0.0
    %v766 = vand.u32 %v16, 4294901760
    %v767 = vsub.f32 %v16, %v766
    %768 = vmatpush1.msra.mxu0 %v767
    %769 = vmatprep.subr.mxu0 0.0
    %v770 = vand.u32 %v17, 4294901760
    %v771 = vsub.f32 %v17, %v770
    %772 = vmatpush1.msra.mxu0 %v771
    %773 = vmatprep.subr.mxu0 0.0
    %v774 = vand.u32 %v18, 4294901760
    %v775 = vsub.f32 %v18, %v774
    %776 = vmatpush1.msra.mxu0 %v775
    %777 = vmatprep.subr.mxu0 0.0
    %v778 = vand.u32 %v19, 4294901760
    %v779 = vsub.f32 %v19, %v778
    %780 = vmatpush1.msra.mxu0 %v779
    %781 = vmatprep.subr.mxu0 0.0
    %v782 = vand.u32 %v20, 4294901760
    %v783 = vsub.f32 %v20, %v782
    %784 = vmatpush1.msra.mxu0 %v783
    %785 = vmatprep.subr.mxu0 0.0
    %v786 = vand.u32 %v21, 4294901760
    %v787 = vsub.f32 %v21, %v786
    %788 = vmatpush1.msra.mxu0 %v787
    %789 = vmatprep.subr.mxu0 0.0
    %v790 = vand.u32 %v22, 4294901760
    %v791 = vsub.f32 %v22, %v790
    %792 = vmatpush1.msra.mxu0 %v791
    %793 = vmatprep.subr.mxu0 0.0
    %v794 = vand.u32 %v23, 4294901760
    %v795 = vsub.f32 %v23, %v794
    %796 = vmatpush1.msra.mxu0 %v795
    %797 = vmatprep.subr.mxu0 0.0
    %798 = vmatpush1.msra.mxu0 0.0
    %799 = vmatprep.subr.mxu0 0.0
    %800 = vmatpush1.msra.mxu0 0.0
    %801 = vmatprep.subr.mxu0 0.0
    %802 = vmatpush1.msra.mxu0 0.0
    %803 = vmatprep.subr.mxu0 0.0
    %804 = vmatpush1.msra.mxu0 0.0
    %805 = vmatprep.subr.mxu0 0.0
    %806 = vmatpush1.msra.mxu0 0.0
    %807 = vmatprep.subr.mxu0 0.0
    %808 = vmatpush1.msra.mxu0 0.0
    %809 = vmatprep.subr.mxu0 0.0
    %810 = vmatpush1.msra.mxu0 0.0
    %811 = vmatprep.subr.mxu0 0.0
    %812 = vmatpush1.msra.mxu0 0.0
    %813 = vmatprep.subr.mxu0 0.0
    %814 = vmatpush1.msra.mxu0 0.0
    %815 = vmatprep.subr.mxu0 0.0
    %816 = vmatpush1.msra.mxu0 0.0
    %817 = vmatprep.subr.mxu0 0.0
    %818 = vmatpush1.msra.mxu0 0.0
    %819 = vmatprep.subr.mxu0 0.0
    %820 = vmatpush1.msra.mxu0 0.0
    %821 = vmatprep.subr.mxu0 0.0
    %822 = vmatpush1.msra.mxu0 0.0
    %823 = vmatprep.subr.mxu0 0.0
    %824 = vmatpush1.msra.mxu0 0.0
    %825 = vmatprep.subr.mxu0 0.0
    %826 = vmatpush1.msra.mxu0 0.0
    %827 = vmatprep.subr.mxu0 0.0
    %828 = vmatpush1.msra.mxu0 0.0
    %829 = vmatprep.subr.mxu0 0.0
    %830 = vmatpush1.msra.mxu0 0.0
    %831 = vmatprep.subr.mxu0 0.0
    %832 = vmatpush1.msra.mxu0 0.0
    %833 = vmatprep.subr.mxu0 0.0
    %834 = vmatpush1.msra.mxu0 0.0
    %835 = vmatprep.subr.mxu0 0.0
    %836 = vmatpush1.msra.mxu0 0.0
    %837 = vmatprep.subr.mxu0 0.0
    %838 = vmatpush1.msra.mxu0 0.0
    %839 = vmatprep.subr.mxu0 0.0
    %840 = vmatpush1.msra.mxu0 0.0
    %841 = vmatprep.subr.mxu0 0.0
    %842 = vmatpush1.msra.mxu0 0.0
    %843 = vmatprep.subr.mxu0 0.0
    %844 = vmatpush1.msra.mxu0 0.0
    %845 = vmatprep.mubr.f32.mxu0 0.0
    %v846 = vand.u32 %v569, 4294901760
    %v847 = vsub.f32 %v569, %v846
    %848 = vmatmul.mubr.f32.gmra.mrb[0].mxu0 %v847
    %v849 = vpop.f32.mrb[0].mxu0
    %v850 = vadd.f32 %v762, %v849
    %v851 = vpop.f32.mrb[0].mxu0
    %852 = vdwg.mxu0
    %853 = vmatprep.subr.mxu0 0.0
    %v854 = vand.u32 %v16, 4294901760
    %855 = vmatpush1.msra.mxu0 %v854
    %856 = vmatprep.subr.mxu0 0.0
    %v857 = vand.u32 %v17, 4294901760
    %858 = vmatpush1.msra.mxu0 %v857
    %859 = vmatprep.subr.mxu0 0.0
    %v860 = vand.u32 %v18, 4294901760
    %861 = vmatpush1.msra.mxu0 %v860
    %862 = vmatprep.subr.mxu0 0.0
    %v863 = vand.u32 %v19, 4294901760
    %864 = vmatpush1.msra.mxu0 %v863
    %865 = vmatprep.subr.mxu0 0.0
    %v866 = vand.u32 %v20, 4294901760
    %867 = vmatpush1.msra.mxu0 %v866
    %868 = vmatprep.subr.mxu0 0.0
    %v869 = vand.u32 %v21, 4294901760
    %870 = vmatpush1.msra.mxu0 %v869
    %871 = vmatprep.subr.mxu0 0.0
    %v872 = vand.u32 %v22, 4294901760
    %873 = vmatpush1.msra.mxu0 %v872
    %874 = vmatprep.subr.mxu0 0.0
    %v875 = vand.u32 %v23, 4294901760
    %876 = vmatpush1.msra.mxu0 %v875
    %877 = vmatprep.subr.mxu0 0.0
    %878 = vmatpush1.msra.mxu0 0.0
    %879 = vmatprep.subr.mxu0 0.0
    %880 = vmatpush1.msra.mxu0 0.0
    %881 = vmatprep.subr.mxu0 0.0
    %882 = vmatpush1.msra.mxu0 0.0
    %883 = vmatprep.subr.mxu0 0.0
    %884 = vmatpush1.msra.mxu0 0.0
    %885 = vmatprep.subr.mxu0 0.0
    %886 = vmatpush1.msra.mxu0 0.0
    %887 = vmatprep.subr.mxu0 0.0
    %888 = vmatpush1.msra.mxu0 0.0
    %889 = vmatprep.subr.mxu0 0.0
    %890 = vmatpush1.msra.mxu0 0.0
    %891 = vmatprep.subr.mxu0 0.0
    %892 = vmatpush1.msra.mxu0 0.0
    %893 = vmatprep.subr.mxu0 0.0
    %894 = vmatpush1.msra.mxu0 0.0
    %895 = vmatprep.subr.mxu0 0.0
    %896 = vmatpush1.msra.mxu0 0.0
    %897 = vmatprep.subr.mxu0 0.0
    %898 = vmatpush1.msra.mxu0 0.0
    %899 = vmatprep.subr.mxu0 0.0
    %900 = vmatpush1.msra.mxu0 0.0
    %901 = vmatprep.subr.mxu0 0.0
    %902 = vmatpush1.msra.mxu0 0.0
    %903 = vmatprep.subr.mxu0 0.0
    %904 = vmatpush1.msra.mxu0 0.0
    %905 = vmatprep.subr.mxu0 0.0
    %906 = vmatpush1.msra.mxu0 0.0
    %907 = vmatprep.subr.mxu0 0.0
    %908 = vmatpush1.msra.mxu0 0.0
    %909 = vmatprep.subr.mxu0 0.0
    %910 = vmatpush1.msra.mxu0 0.0
    %911 = vmatprep.subr.mxu0 0.0
    %912 = vmatpush1.msra.mxu0 0.0
    %913 = vmatprep.subr.mxu0 0.0
    %914 = vmatpush1.msra.mxu0 0.0
    %915 = vmatprep.subr.mxu0 0.0
    %916 = vmatpush1.msra.mxu0 0.0
    %917 = vmatprep.subr.mxu0 0.0
    %918 = vmatpush1.msra.mxu0 0.0
    %919 = vmatprep.subr.mxu0 0.0
    %920 = vmatpush1.msra.mxu0 0.0
    %921 = vmatprep.subr.mxu0 0.0
    %922 = vmatpush1.msra.mxu0 0.0
    %923 = vmatprep.subr.mxu0 0.0
    %924 = vmatpush1.msra.mxu0 0.0
    %925 = vmatprep.mubr.f32.mxu0 0.0
    %v926 = vand.u32 %v569, 4294901760
    %v927 = vsub.f32 %v569, %v926
    %v928 = vand.u32 %v927, 4294901760
    %929 = vmatmul.mubr.f32.gmra.mrb[0].mxu0 %v928
    %v930 = vpop.f32.mrb[0].mxu0
    %v931 = vadd.f32 %v850, %v930
    %v932 = vpop.f32.mrb[0].mxu0
    %933 = vdwg.mxu0
    %934 = vmatprep.subr.mxu0 0.0
    %v935 = vand.u32 %v16, 4294901760
    %v936 = vsub.f32 %v16, %v935
    %v937 = vand.u32 %v936, 4294901760
    %938 = vmatpush1.msra.mxu0 %v937
    %939 = vmatprep.subr.mxu0 0.0
    %v940 = vand.u32 %v17, 4294901760
    %v941 = vsub.f32 %v17, %v940
    %v942 = vand.u32 %v941, 4294901760
    %943 = vmatpush1.msra.mxu0 %v942
    %944 = vmatprep.subr.mxu0 0.0
    %v945 = vand.u32 %v18, 4294901760
    %v946 = vsub.f32 %v18, %v945
    %v947 = vand.u32 %v946, 4294901760
    %948 = vmatpush1.msra.mxu0 %v947
    %949 = vmatprep.subr.mxu0 0.0
    %v950 = vand.u32 %v19, 4294901760
    %v951 = vsub.f32 %v19, %v950
    %v952 = vand.u32 %v951, 4294901760
    %953 = vmatpush1.msra.mxu0 %v952
    %954 = vmatprep.subr.mxu0 0.0
    %v955 = vand.u32 %v20, 4294901760
    %v956 = vsub.f32 %v20, %v955
    %v957 = vand.u32 %v956, 4294901760
    %958 = vmatpush1.msra.mxu0 %v957
    %959 = vmatprep.subr.mxu0 0.0
    %v960 = vand.u32 %v21, 4294901760
    %v961 = vsub.f32 %v21, %v960
    %v962 = vand.u32 %v961, 4294901760
    %963 = vmatpush1.msra.mxu0 %v962
    %964 = vmatprep.subr.mxu0 0.0
    %v965 = vand.u32 %v22, 4294901760
    %v966 = vsub.f32 %v22, %v965
    %v967 = vand.u32 %v966, 4294901760
    %968 = vmatpush1.msra.mxu0 %v967
    %969 = vmatprep.subr.mxu0 0.0
    %v970 = vand.u32 %v23, 4294901760
    %v971 = vsub.f32 %v23, %v970
    %v972 = vand.u32 %v971, 4294901760
    %973 = vmatpush1.msra.mxu0 %v972
    %974 = vmatprep.subr.mxu0 0.0
    %975 = vmatpush1.msra.mxu0 0.0
    %976 = vmatprep.subr.mxu0 0.0
    %977 = vmatpush1.msra.mxu0 0.0
    %978 = vmatprep.subr.mxu0 0.0
    %979 = vmatpush1.msra.mxu0 0.0
    %980 = vmatprep.subr.mxu0 0.0
    %981 = vmatpush1.msra.mxu0 0.0
    %982 = vmatprep.subr.mxu0 0.0
    %983 = vmatpush1.msra.mxu0 0.0
    %984 = vmatprep.subr.mxu0 0.0
    %985 = vmatpush1.msra.mxu0 0.0
    %986 = vmatprep.subr.mxu0 0.0
    %987 = vmatpush1.msra.mxu0 0.0
    %988 = vmatprep.subr.mxu0 0.0
    %989 = vmatpush1.msra.mxu0 0.0
    %990 = vmatprep.subr.mxu0 0.0
    %991 = vmatpush1.msra.mxu0 0.0
    %992 = vmatprep.subr.mxu0 0.0
    %993 = vmatpush1.msra.mxu0 0.0
    %994 = vmatprep.subr.mxu0 0.0
    %995 = vmatpush1.msra.mxu0 0.0
    %996 = vmatprep.subr.mxu0 0.0
    %997 = vmatpush1.msra.mxu0 0.0
    %998 = vmatprep.subr.mxu0 0.0
    %999 = vmatpush1.msra.mxu0 0.0
    %1000 = vmatprep.subr.mxu0 0.0
    %1001 = vmatpush1.msra.mxu0 0.0
    %1002 = vmatprep.subr.mxu0 0.0
    %1003 = vmatpush1.msra.mxu0 0.0
    %1004 = vmatprep.subr.mxu0 0.0
    %1005 = vmatpush1.msra.mxu0 0.0
    %1006 = vmatprep.subr.mxu0 0.0
    %1007 = vmatpush1.msra.mxu0 0.0
    %1008 = vmatprep.subr.mxu0 0.0
    %1009 = vmatpush1.msra.mxu0 0.0
    %1010 = vmatprep.subr.mxu0 0.0
    %1011 = vmatpush1.msra.mxu0 0.0
    %1012 = vmatprep.subr.mxu0 0.0
    %1013 = vmatpush1.msra.mxu0 0.0
    %1014 = vmatprep.subr.mxu0 0.0
    %1015 = vmatpush1.msra.mxu0 0.0
    %1016 = vmatprep.subr.mxu0 0.0
    %1017 = vmatpush1.msra.mxu0 0.0
    %1018 = vmatprep.subr.mxu0 0.0
    %1019 = vmatpush1.msra.mxu0 0.0
    %1020 = vmatprep.subr.mxu0 0.0
    %1021 = vmatpush1.msra.mxu0 0.0
    %1022 = vmatprep.mubr.f32.mxu0 0.0
    %v1023 = vand.u32 %v569, 4294901760
    %1024 = vmatmul.mubr.f32.gmra.mrb[0].mxu0 %v1023
    %v1025 = vpop.f32.mrb[0].mxu0
    %v1026 = vadd.f32 %v931, %v1025
    %v1027 = vpop.f32.mrb[0].mxu0
    %1028 = vdwg.mxu0
    %1029 = vmatprep.subr.mxu0 0.0
    %v1030 = vand.u32 %v16, 4294901760
    %1031 = vmatpush1.msra.mxu0 %v1030
    %1032 = vmatprep.subr.mxu0 0.0
    %v1033 = vand.u32 %v17, 4294901760
    %1034 = vmatpush1.msra.mxu0 %v1033
    %1035 = vmatprep.subr.mxu0 0.0
    %v1036 = vand.u32 %v18, 4294901760
    %1037 = vmatpush1.msra.mxu0 %v1036
    %1038 = vmatprep.subr.mxu0 0.0
    %v1039 = vand.u32 %v19, 4294901760
    %1040 = vmatpush1.msra.mxu0 %v1039
    %1041 = vmatprep.subr.mxu0 0.0
    %v1042 = vand.u32 %v20, 4294901760
    %1043 = vmatpush1.msra.mxu0 %v1042
    %1044 = vmatprep.subr.mxu0 0.0
    %v1045 = vand.u32 %v21, 4294901760
    %1046 = vmatpush1.msra.mxu0 %v1045
    %1047 = vmatprep.subr.mxu0 0.0
    %v1048 = vand.u32 %v22, 4294901760
    %1049 = vmatpush1.msra.mxu0 %v1048
    %1050 = vmatprep.subr.mxu0 0.0
    %v1051 = vand.u32 %v23, 4294901760
    %1052 = vmatpush1.msra.mxu0 %v1051
    %1053 = vmatprep.subr.mxu0 0.0
    %1054 = vmatpush1.msra.mxu0 0.0
    %1055 = vmatprep.subr.mxu0 0.0
    %1056 = vmatpush1.msra.mxu0 0.0
    %1057 = vmatprep.subr.mxu0 0.0
    %1058 = vmatpush1.msra.mxu0 0.0
    %1059 = vmatprep.subr.mxu0 0.0
    %1060 = vmatpush1.msra.mxu0 0.0
    %1061 = vmatprep.subr.mxu0 0.0
    %1062 = vmatpush1.msra.mxu0 0.0
    %1063 = vmatprep.subr.mxu0 0.0
    %1064 = vmatpush1.msra.mxu0 0.0
    %1065 = vmatprep.subr.mxu0 0.0
    %1066 = vmatpush1.msra.mxu0 0.0
    %1067 = vmatprep.subr.mxu0 0.0
    %1068 = vmatpush1.msra.mxu0 0.0
    %1069 = vmatprep.subr.mxu0 0.0
    %1070 = vmatpush1.msra.mxu0 0.0
    %1071 = vmatprep.subr.mxu0 0.0
    %1072 = vmatpush1.msra.mxu0 0.0
    %1073 = vmatprep.subr.mxu0 0.0
    %1074 = vmatpush1.msra.mxu0 0.0
    %1075 = vmatprep.subr.mxu0 0.0
    %1076 = vmatpush1.msra.mxu0 0.0
    %1077 = vmatprep.subr.mxu0 0.0
    %1078 = vmatpush1.msra.mxu0 0.0
    %1079 = vmatprep.subr.mxu0 0.0
    %1080 = vmatpush1.msra.mxu0 0.0
    %1081 = vmatprep.subr.mxu0 0.0
    %1082 = vmatpush1.msra.mxu0 0.0
    %1083 = vmatprep.subr.mxu0 0.0
    %1084 = vmatpush1.msra.mxu0 0.0
    %1085 = vmatprep.subr.mxu0 0.0
    %1086 = vmatpush1.msra.mxu0 0.0
    %1087 = vmatprep.subr.mxu0 0.0
    %1088 = vmatpush1.msra.mxu0 0.0
    %1089 = vmatprep.subr.mxu0 0.0
    %1090 = vmatpush1.msra.mxu0 0.0
    %1091 = vmatprep.subr.mxu0 0.0
    %1092 = vmatpush1.msra.mxu0 0.0
    %1093 = vmatprep.subr.mxu0 0.0
    %1094 = vmatpush1.msra.mxu0 0.0
    %1095 = vmatprep.subr.mxu0 0.0
    %1096 = vmatpush1.msra.mxu0 0.0
    %1097 = vmatprep.subr.mxu0 0.0
    %1098 = vmatpush1.msra.mxu0 0.0
    %1099 = vmatprep.subr.mxu0 0.0
    %1100 = vmatpush1.msra.mxu0 0.0
    %1101 = vmatprep.mubr.f32.mxu0 0.0
    %v1102 = vand.u32 %v569, 4294901760
    %1103 = vmatmul.mubr.f32.gmra.mrb[0].mxu0 %v1102
    %v1104 = vpop.f32.mrb[0].mxu0
    %v1105 = vadd.f32 %v1026, %v1104
    %v1106 = vpop.f32.mrb[0].mxu0
    %1107 = vdwg.mxu0
    %v1109 = vrot.slane %v1105, 6
    %v1111 = vadd.f32 %v557, %v1109
    %v1112 = vtanh.pop %v1111
    %v1114 = vrot.slane %v1112, 2
    %v1115 = vsel %vm567, %v1114, 0
    %1117 = vmatprep.subr.mxu0 0.0
    %v1118 = vand.u32 %v16, 4294901760
    %1119 = vmatpush1.msra.mxu0 %v1118
    %1120 = vmatprep.subr.mxu0 0.0
    %v1121 = vand.u32 %v17, 4294901760
    %1122 = vmatpush1.msra.mxu0 %v1121
    %1123 = vmatprep.subr.mxu0 0.0
    %v1124 = vand.u32 %v18, 4294901760
    %1125 = vmatpush1.msra.mxu0 %v1124
    %1126 = vmatprep.subr.mxu0 0.0
    %v1127 = vand.u32 %v19, 4294901760
    %1128 = vmatpush1.msra.mxu0 %v1127
    %1129 = vmatprep.subr.mxu0 0.0
    %v1130 = vand.u32 %v20, 4294901760
    %1131 = vmatpush1.msra.mxu0 %v1130
    %1132 = vmatprep.subr.mxu0 0.0
    %v1133 = vand.u32 %v21, 4294901760
    %1134 = vmatpush1.msra.mxu0 %v1133
    %1135 = vmatprep.subr.mxu0 0.0
    %v1136 = vand.u32 %v22, 4294901760
    %1137 = vmatpush1.msra.mxu0 %v1136
    %1138 = vmatprep.subr.mxu0 0.0
    %v1139 = vand.u32 %v23, 4294901760
    %1140 = vmatpush1.msra.mxu0 %v1139
    %1141 = vmatprep.subr.mxu0 0.0
    %1142 = vmatpush1.msra.mxu0 0.0
    %1143 = vmatprep.subr.mxu0 0.0
    %1144 = vmatpush1.msra.mxu0 0.0
    %1145 = vmatprep.subr.mxu0 0.0
    %1146 = vmatpush1.msra.mxu0 0.0
    %1147 = vmatprep.subr.mxu0 0.0
    %1148 = vmatpush1.msra.mxu0 0.0
    %1149 = vmatprep.subr.mxu0 0.0
    %1150 = vmatpush1.msra.mxu0 0.0
    %1151 = vmatprep.subr.mxu0 0.0
    %1152 = vmatpush1.msra.mxu0 0.0
    %1153 = vmatprep.subr.mxu0 0.0
    %1154 = vmatpush1.msra.mxu0 0.0
    %1155 = vmatprep.subr.mxu0 0.0
    %1156 = vmatpush1.msra.mxu0 0.0
    %1157 = vmatprep.subr.mxu0 0.0
    %1158 = vmatpush1.msra.mxu0 0.0
    %1159 = vmatprep.subr.mxu0 0.0
    %1160 = vmatpush1.msra.mxu0 0.0
    %1161 = vmatprep.subr.mxu0 0.0
    %1162 = vmatpush1.msra.mxu0 0.0
    %1163 = vmatprep.subr.mxu0 0.0
    %1164 = vmatpush1.msra.mxu0 0.0
    %1165 = vmatprep.subr.mxu0 0.0
    %1166 = vmatpush1.msra.mxu0 0.0
    %1167 = vmatprep.subr.mxu0 0.0
    %1168 = vmatpush1.msra.mxu0 0.0
    %1169 = vmatprep.subr.mxu0 0.0
    %1170 = vmatpush1.msra.mxu0 0.0
    %1171 = vmatprep.subr.mxu0 0.0
    %1172 = vmatpush1.msra.mxu0 0.0
    %1173 = vmatprep.subr.mxu0 0.0
    %1174 = vmatpush1.msra.mxu0 0.0
    %1175 = vmatprep.subr.mxu0 0.0
    %1176 = vmatpush1.msra.mxu0 0.0
    %1177 = vmatprep.subr.mxu0 0.0
    %1178 = vmatpush1.msra.mxu0 0.0
    %1179 = vmatprep.subr.mxu0 0.0
    %1180 = vmatpush1.msra.mxu0 0.0
    %1181 = vmatprep.subr.mxu0 0.0
    %1182 = vmatpush1.msra.mxu0 0.0
    %1183 = vmatprep.subr.mxu0 0.0
    %1184 = vmatpush1.msra.mxu0 0.0
    %1185 = vmatprep.subr.mxu0 0.0
    %1186 = vmatpush1.msra.mxu0 0.0
    %1187 = vmatprep.subr.mxu0 0.0
    %1188 = vmatpush1.msra.mxu0 0.0
    %1189 = vmatprep.mubr.f32.mxu0 0.0
    %v1190 = vand.u32 %v1115, 4294901760
    %v1191 = vsub.f32 %v1115, %v1190
    %v1192 = vand.u32 %v1191, 4294901760
    %v1193 = vsub.f32 %v1191, %v1192
    %v1194 = vand.u32 %v1193, 4294901760
    %1195 = vmatmul.mubr.f32.gmra.mrb[0].mxu0 %v1194
    %v1196 = vpop.f32.mrb[0].mxu0
    %v1197 = vadd.f32 0.0, %v1196
    %v1198 = vpop.f32.mrb[0].mxu0
    %1199 = vdwg.mxu0
    %1200 = vmatprep.subr.mxu0 0.0
    %v1201 = vand.u32 %v16, 4294901760
    %v1202 = vsub.f32 %v16, %v1201
    %v1203 = vand.u32 %v1202, 4294901760
    %v1204 = vsub.f32 %v1202, %v1203
    %v1205 = vand.u32 %v1204, 4294901760
    %1206 = vmatpush1.msra.mxu0 %v1205
    %1207 = vmatprep.subr.mxu0 0.0
    %v1208 = vand.u32 %v17, 4294901760
    %v1209 = vsub.f32 %v17, %v1208
    %v1210 = vand.u32 %v1209, 4294901760
    %v1211 = vsub.f32 %v1209, %v1210
    %v1212 = vand.u32 %v1211, 4294901760
    %1213 = vmatpush1.msra.mxu0 %v1212
    %1214 = vmatprep.subr.mxu0 0.0
    %v1215 = vand.u32 %v18, 4294901760
    %v1216 = vsub.f32 %v18, %v1215
    %v1217 = vand.u32 %v1216, 4294901760
    %v1218 = vsub.f32 %v1216, %v1217
    %v1219 = vand.u32 %v1218, 4294901760
    %1220 = vmatpush1.msra.mxu0 %v1219
    %1221 = vmatprep.subr.mxu0 0.0
    %v1222 = vand.u32 %v19, 4294901760
    %v1223 = vsub.f32 %v19, %v1222
    %v1224 = vand.u32 %v1223, 4294901760
    %v1225 = vsub.f32 %v1223, %v1224
    %v1226 = vand.u32 %v1225, 4294901760
    %1227 = vmatpush1.msra.mxu0 %v1226
    %1228 = vmatprep.subr.mxu0 0.0
    %v1229 = vand.u32 %v20, 4294901760
    %v1230 = vsub.f32 %v20, %v1229
    %v1231 = vand.u32 %v1230, 4294901760
    %v1232 = vsub.f32 %v1230, %v1231
    %v1233 = vand.u32 %v1232, 4294901760
    %1234 = vmatpush1.msra.mxu0 %v1233
    %1235 = vmatprep.subr.mxu0 0.0
    %v1236 = vand.u32 %v21, 4294901760
    %v1237 = vsub.f32 %v21, %v1236
    %v1238 = vand.u32 %v1237, 4294901760
    %v1239 = vsub.f32 %v1237, %v1238
    %v1240 = vand.u32 %v1239, 4294901760
    %1241 = vmatpush1.msra.mxu0 %v1240
    %1242 = vmatprep.subr.mxu0 0.0
    %v1243 = vand.u32 %v22, 4294901760
    %v1244 = vsub.f32 %v22, %v1243
    %v1245 = vand.u32 %v1244, 4294901760
    %v1246 = vsub.f32 %v1244, %v1245
    %v1247 = vand.u32 %v1246, 4294901760
    %1248 = vmatpush1.msra.mxu0 %v1247
    %1249 = vmatprep.subr.mxu0 0.0
    %v1250 = vand.u32 %v23, 4294901760
    %v1251 = vsub.f32 %v23, %v1250
    %v1252 = vand.u32 %v1251, 4294901760
    %v1253 = vsub.f32 %v1251, %v1252
    %v1254 = vand.u32 %v1253, 4294901760
    %1255 = vmatpush1.msra.mxu0 %v1254
    %1256 = vmatprep.subr.mxu0 0.0
    %1257 = vmatpush1.msra.mxu0 0.0
    %1258 = vmatprep.subr.mxu0 0.0
    %1259 = vmatpush1.msra.mxu0 0.0
    %1260 = vmatprep.subr.mxu0 0.0
    %1261 = vmatpush1.msra.mxu0 0.0
    %1262 = vmatprep.subr.mxu0 0.0
    %1263 = vmatpush1.msra.mxu0 0.0
    %1264 = vmatprep.subr.mxu0 0.0
    %1265 = vmatpush1.msra.mxu0 0.0
    %1266 = vmatprep.subr.mxu0 0.0
    %1267 = vmatpush1.msra.mxu0 0.0
    %1268 = vmatprep.subr.mxu0 0.0
    %1269 = vmatpush1.msra.mxu0 0.0
    %1270 = vmatprep.subr.mxu0 0.0
    %1271 = vmatpush1.msra.mxu0 0.0
    %1272 = vmatprep.subr.mxu0 0.0
    %1273 = vmatpush1.msra.mxu0 0.0
    %1274 = vmatprep.subr.mxu0 0.0
    %1275 = vmatpush1.msra.mxu0 0.0
    %1276 = vmatprep.subr.mxu0 0.0
    %1277 = vmatpush1.msra.mxu0 0.0
    %1278 = vmatprep.subr.mxu0 0.0
    %1279 = vmatpush1.msra.mxu0 0.0
    %1280 = vmatprep.subr.mxu0 0.0
    %1281 = vmatpush1.msra.mxu0 0.0
    %1282 = vmatprep.subr.mxu0 0.0
    %1283 = vmatpush1.msra.mxu0 0.0
    %1284 = vmatprep.subr.mxu0 0.0
    %1285 = vmatpush1.msra.mxu0 0.0
    %1286 = vmatprep.subr.mxu0 0.0
    %1287 = vmatpush1.msra.mxu0 0.0
    %1288 = vmatprep.subr.mxu0 0.0
    %1289 = vmatpush1.msra.mxu0 0.0
    %1290 = vmatprep.subr.mxu0 0.0
    %1291 = vmatpush1.msra.mxu0 0.0
    %1292 = vmatprep.subr.mxu0 0.0
    %1293 = vmatpush1.msra.mxu0 0.0
    %1294 = vmatprep.subr.mxu0 0.0
    %1295 = vmatpush1.msra.mxu0 0.0
    %1296 = vmatprep.subr.mxu0 0.0
    %1297 = vmatpush1.msra.mxu0 0.0
    %1298 = vmatprep.subr.mxu0 0.0
    %1299 = vmatpush1.msra.mxu0 0.0
    %1300 = vmatprep.subr.mxu0 0.0
    %1301 = vmatpush1.msra.mxu0 0.0
    %1302 = vmatprep.subr.mxu0 0.0
    %1303 = vmatpush1.msra.mxu0 0.0
    %1304 = vmatprep.mubr.f32.mxu0 0.0
    %v1305 = vand.u32 %v1115, 4294901760
    %1306 = vmatmul.mubr.f32.gmra.mrb[0].mxu0 %v1305
    %v1307 = vpop.f32.mrb[0].mxu0
    %v1308 = vadd.f32 %v1197, %v1307
    %v1309 = vpop.f32.mrb[0].mxu0
    %1310 = vdwg.mxu0
    %1311 = vmatprep.subr.mxu0 0.0
    %v1312 = vand.u32 %v16, 4294901760
    %v1313 = vsub.f32 %v16, %v1312
    %1314 = vmatpush1.msra.mxu0 %v1313
    %1315 = vmatprep.subr.mxu0 0.0
    %v1316 = vand.u32 %v17, 4294901760
    %v1317 = vsub.f32 %v17, %v1316
    %1318 = vmatpush1.msra.mxu0 %v1317
    %1319 = vmatprep.subr.mxu0 0.0
    %v1320 = vand.u32 %v18, 4294901760
    %v1321 = vsub.f32 %v18, %v1320
    %1322 = vmatpush1.msra.mxu0 %v1321
    %1323 = vmatprep.subr.mxu0 0.0
    %v1324 = vand.u32 %v19, 4294901760
    %v1325 = vsub.f32 %v19, %v1324
    %1326 = vmatpush1.msra.mxu0 %v1325
    %1327 = vmatprep.subr.mxu0 0.0
    %v1328 = vand.u32 %v20, 4294901760
    %v1329 = vsub.f32 %v20, %v1328
    %1330 = vmatpush1.msra.mxu0 %v1329
    %1331 = vmatprep.subr.mxu0 0.0
    %v1332 = vand.u32 %v21, 4294901760
    %v1333 = vsub.f32 %v21, %v1332
    %1334 = vmatpush1.msra.mxu0 %v1333
    %1335 = vmatprep.subr.mxu0 0.0
    %v1336 = vand.u32 %v22, 4294901760
    %v1337 = vsub.f32 %v22, %v1336
    %1338 = vmatpush1.msra.mxu0 %v1337
    %1339 = vmatprep.subr.mxu0 0.0
    %v1340 = vand.u32 %v23, 4294901760
    %v1341 = vsub.f32 %v23, %v1340
    %1342 = vmatpush1.msra.mxu0 %v1341
    %1343 = vmatprep.subr.mxu0 0.0
    %1344 = vmatpush1.msra.mxu0 0.0
    %1345 = vmatprep.subr.mxu0 0.0
    %1346 = vmatpush1.msra.mxu0 0.0
    %1347 = vmatprep.subr.mxu0 0.0
    %1348 = vmatpush1.msra.mxu0 0.0
    %1349 = vmatprep.subr.mxu0 0.0
    %1350 = vmatpush1.msra.mxu0 0.0
    %1351 = vmatprep.subr.mxu0 0.0
    %1352 = vmatpush1.msra.mxu0 0.0
    %1353 = vmatprep.subr.mxu0 0.0
    %1354 = vmatpush1.msra.mxu0 0.0
    %1355 = vmatprep.subr.mxu0 0.0
    %1356 = vmatpush1.msra.mxu0 0.0
    %1357 = vmatprep.subr.mxu0 0.0
    %1358 = vmatpush1.msra.mxu0 0.0
    %1359 = vmatprep.subr.mxu0 0.0
    %1360 = vmatpush1.msra.mxu0 0.0
    %1361 = vmatprep.subr.mxu0 0.0
    %1362 = vmatpush1.msra.mxu0 0.0
    %1363 = vmatprep.subr.mxu0 0.0
    %1364 = vmatpush1.msra.mxu0 0.0
    %1365 = vmatprep.subr.mxu0 0.0
    %1366 = vmatpush1.msra.mxu0 0.0
    %1367 = vmatprep.subr.mxu0 0.0
    %1368 = vmatpush1.msra.mxu0 0.0
    %1369 = vmatprep.subr.mxu0 0.0
    %1370 = vmatpush1.msra.mxu0 0.0
    %1371 = vmatprep.subr.mxu0 0.0
    %1372 = vmatpush1.msra.mxu0 0.0
    %1373 = vmatprep.subr.mxu0 0.0
    %1374 = vmatpush1.msra.mxu0 0.0
    %1375 = vmatprep.subr.mxu0 0.0
    %1376 = vmatpush1.msra.mxu0 0.0
    %1377 = vmatprep.subr.mxu0 0.0
    %1378 = vmatpush1.msra.mxu0 0.0
    %1379 = vmatprep.subr.mxu0 0.0
    %1380 = vmatpush1.msra.mxu0 0.0
    %1381 = vmatprep.subr.mxu0 0.0
    %1382 = vmatpush1.msra.mxu0 0.0
    %1383 = vmatprep.subr.mxu0 0.0
    %1384 = vmatpush1.msra.mxu0 0.0
    %1385 = vmatprep.subr.mxu0 0.0
    %1386 = vmatpush1.msra.mxu0 0.0
    %1387 = vmatprep.subr.mxu0 0.0
    %1388 = vmatpush1.msra.mxu0 0.0
    %1389 = vmatprep.subr.mxu0 0.0
    %1390 = vmatpush1.msra.mxu0 0.0
    %1391 = vmatprep.mubr.f32.mxu0 0.0
    %v1392 = vand.u32 %v1115, 4294901760
    %v1393 = vsub.f32 %v1115, %v1392
    %1394 = vmatmul.mubr.f32.gmra.mrb[0].mxu0 %v1393
    %v1395 = vpop.f32.mrb[0].mxu0
    %v1396 = vadd.f32 %v1308, %v1395
    %v1397 = vpop.f32.mrb[0].mxu0
    %1398 = vdwg.mxu0
    %1399 = vmatprep.subr.mxu0 0.0
    %v1400 = vand.u32 %v16, 4294901760
    %1401 = vmatpush1.msra.mxu0 %v1400
    %1402 = vmatprep.subr.mxu0 0.0
    %v1403 = vand.u32 %v17, 4294901760
    %1404 = vmatpush1.msra.mxu0 %v1403
    %1405 = vmatprep.subr.mxu0 0.0
    %v1406 = vand.u32 %v18, 4294901760
    %1407 = vmatpush1.msra.mxu0 %v1406
    %1408 = vmatprep.subr.mxu0 0.0
    %v1409 = vand.u32 %v19, 4294901760
    %1410 = vmatpush1.msra.mxu0 %v1409
    %1411 = vmatprep.subr.mxu0 0.0
    %v1412 = vand.u32 %v20, 4294901760
    %1413 = vmatpush1.msra.mxu0 %v1412
    %1414 = vmatprep.subr.mxu0 0.0
    %v1415 = vand.u32 %v21, 4294901760
    %1416 = vmatpush1.msra.mxu0 %v1415
    %1417 = vmatprep.subr.mxu0 0.0
    %v1418 = vand.u32 %v22, 4294901760
    %1419 = vmatpush1.msra.mxu0 %v1418
    %1420 = vmatprep.subr.mxu0 0.0
    %v1421 = vand.u32 %v23, 4294901760
    %1422 = vmatpush1.msra.mxu0 %v1421
    %1423 = vmatprep.subr.mxu0 0.0
    %1424 = vmatpush1.msra.mxu0 0.0
    %1425 = vmatprep.subr.mxu0 0.0
    %1426 = vmatpush1.msra.mxu0 0.0
    %1427 = vmatprep.subr.mxu0 0.0
    %1428 = vmatpush1.msra.mxu0 0.0
    %1429 = vmatprep.subr.mxu0 0.0
    %1430 = vmatpush1.msra.mxu0 0.0
    %1431 = vmatprep.subr.mxu0 0.0
    %1432 = vmatpush1.msra.mxu0 0.0
    %1433 = vmatprep.subr.mxu0 0.0
    %1434 = vmatpush1.msra.mxu0 0.0
    %1435 = vmatprep.subr.mxu0 0.0
    %1436 = vmatpush1.msra.mxu0 0.0
    %1437 = vmatprep.subr.mxu0 0.0
    %1438 = vmatpush1.msra.mxu0 0.0
    %1439 = vmatprep.subr.mxu0 0.0
    %1440 = vmatpush1.msra.mxu0 0.0
    %1441 = vmatprep.subr.mxu0 0.0
    %1442 = vmatpush1.msra.mxu0 0.0
    %1443 = vmatprep.subr.mxu0 0.0
    %1444 = vmatpush1.msra.mxu0 0.0
    %1445 = vmatprep.subr.mxu0 0.0
    %1446 = vmatpush1.msra.mxu0 0.0
    %1447 = vmatprep.subr.mxu0 0.0
    %1448 = vmatpush1.msra.mxu0 0.0
    %1449 = vmatprep.subr.mxu0 0.0
    %1450 = vmatpush1.msra.mxu0 0.0
    %1451 = vmatprep.subr.mxu0 0.0
    %1452 = vmatpush1.msra.mxu0 0.0
    %1453 = vmatprep.subr.mxu0 0.0
    %1454 = vmatpush1.msra.mxu0 0.0
    %1455 = vmatprep.subr.mxu0 0.0
    %1456 = vmatpush1.msra.mxu0 0.0
    %1457 = vmatprep.subr.mxu0 0.0
    %1458 = vmatpush1.msra.mxu0 0.0
    %1459 = vmatprep.subr.mxu0 0.0
    %1460 = vmatpush1.msra.mxu0 0.0
    %1461 = vmatprep.subr.mxu0 0.0
    %1462 = vmatpush1.msra.mxu0 0.0
    %1463 = vmatprep.subr.mxu0 0.0
    %1464 = vmatpush1.msra.mxu0 0.0
    %1465 = vmatprep.subr.mxu0 0.0
    %1466 = vmatpush1.msra.mxu0 0.0
    %1467 = vmatprep.subr.mxu0 0.0
    %1468 = vmatpush1.msra.mxu0 0.0
    %1469 = vmatprep.subr.mxu0 0.0
    %1470 = vmatpush1.msra.mxu0 0.0
    %1471 = vmatprep.mubr.f32.mxu0 0.0
    %v1472 = vand.u32 %v1115, 4294901760
    %v1473 = vsub.f32 %v1115, %v1472
    %v1474 = vand.u32 %v1473, 4294901760
    %1475 = vmatmul.mubr.f32.gmra.mrb[0].mxu0 %v1474
    %v1476 = vpop.f32.mrb[0].mxu0
    %v1477 = vadd.f32 %v1396, %v1476
    %v1478 = vpop.f32.mrb[0].mxu0
    %1479 = vdwg.mxu0
    %1480 = vmatprep.subr.mxu0 0.0
    %v1481 = vand.u32 %v16, 4294901760
    %v1482 = vsub.f32 %v16, %v1481
    %v1483 = vand.u32 %v1482, 4294901760
    %1484 = vmatpush1.msra.mxu0 %v1483
    %1485 = vmatprep.subr.mxu0 0.0
    %v1486 = vand.u32 %v17, 4294901760
    %v1487 = vsub.f32 %v17, %v1486
    %v1488 = vand.u32 %v1487, 4294901760
    %1489 = vmatpush1.msra.mxu0 %v1488
    %1490 = vmatprep.subr.mxu0 0.0
    %v1491 = vand.u32 %v18, 4294901760
    %v1492 = vsub.f32 %v18, %v1491
    %v1493 = vand.u32 %v1492, 4294901760
    %1494 = vmatpush1.msra.mxu0 %v1493
    %1495 = vmatprep.subr.mxu0 0.0
    %v1496 = vand.u32 %v19, 4294901760
    %v1497 = vsub.f32 %v19, %v1496
    %v1498 = vand.u32 %v1497, 4294901760
    %1499 = vmatpush1.msra.mxu0 %v1498
    %1500 = vmatprep.subr.mxu0 0.0
    %v1501 = vand.u32 %v20, 4294901760
    %v1502 = vsub.f32 %v20, %v1501
    %v1503 = vand.u32 %v1502, 4294901760
    %1504 = vmatpush1.msra.mxu0 %v1503
    %1505 = vmatprep.subr.mxu0 0.0
    %v1506 = vand.u32 %v21, 4294901760
    %v1507 = vsub.f32 %v21, %v1506
    %v1508 = vand.u32 %v1507, 4294901760
    %1509 = vmatpush1.msra.mxu0 %v1508
    %1510 = vmatprep.subr.mxu0 0.0
    %v1511 = vand.u32 %v22, 4294901760
    %v1512 = vsub.f32 %v22, %v1511
    %v1513 = vand.u32 %v1512, 4294901760
    %1514 = vmatpush1.msra.mxu0 %v1513
    %1515 = vmatprep.subr.mxu0 0.0
    %v1516 = vand.u32 %v23, 4294901760
    %v1517 = vsub.f32 %v23, %v1516
    %v1518 = vand.u32 %v1517, 4294901760
    %1519 = vmatpush1.msra.mxu0 %v1518
    %1520 = vmatprep.subr.mxu0 0.0
    %1521 = vmatpush1.msra.mxu0 0.0
    %1522 = vmatprep.subr.mxu0 0.0
    %1523 = vmatpush1.msra.mxu0 0.0
    %1524 = vmatprep.subr.mxu0 0.0
    %1525 = vmatpush1.msra.mxu0 0.0
    %1526 = vmatprep.subr.mxu0 0.0
    %1527 = vmatpush1.msra.mxu0 0.0
    %1528 = vmatprep.subr.mxu0 0.0
    %1529 = vmatpush1.msra.mxu0 0.0
    %1530 = vmatprep.subr.mxu0 0.0
    %1531 = vmatpush1.msra.mxu0 0.0
    %1532 = vmatprep.subr.mxu0 0.0
    %1533 = vmatpush1.msra.mxu0 0.0
    %1534 = vmatprep.subr.mxu0 0.0
    %1535 = vmatpush1.msra.mxu0 0.0
    %1536 = vmatprep.subr.mxu0 0.0
    %1537 = vmatpush1.msra.mxu0 0.0
    %1538 = vmatprep.subr.mxu0 0.0
    %1539 = vmatpush1.msra.mxu0 0.0
    %1540 = vmatprep.subr.mxu0 0.0
    %1541 = vmatpush1.msra.mxu0 0.0
    %1542 = vmatprep.subr.mxu0 0.0
    %1543 = vmatpush1.msra.mxu0 0.0
    %1544 = vmatprep.subr.mxu0 0.0
    %1545 = vmatpush1.msra.mxu0 0.0
    %1546 = vmatprep.subr.mxu0 0.0
    %1547 = vmatpush1.msra.mxu0 0.0
    %1548 = vmatprep.subr.mxu0 0.0
    %1549 = vmatpush1.msra.mxu0 0.0
    %1550 = vmatprep.subr.mxu0 0.0
    %1551 = vmatpush1.msra.mxu0 0.0
    %1552 = vmatprep.subr.mxu0 0.0
    %1553 = vmatpush1.msra.mxu0 0.0
    %1554 = vmatprep.subr.mxu0 0.0
    %1555 = vmatpush1.msra.mxu0 0.0
    %1556 = vmatprep.subr.mxu0 0.0
    %1557 = vmatpush1.msra.mxu0 0.0
    %1558 = vmatprep.subr.mxu0 0.0
    %1559 = vmatpush1.msra.mxu0 0.0
    %1560 = vmatprep.subr.mxu0 0.0
    %1561 = vmatpush1.msra.mxu0 0.0
    %1562 = vmatprep.subr.mxu0 0.0
    %1563 = vmatpush1.msra.mxu0 0.0
    %1564 = vmatprep.subr.mxu0 0.0
    %1565 = vmatpush1.msra.mxu0 0.0
    %1566 = vmatprep.subr.mxu0 0.0
    %1567 = vmatpush1.msra.mxu0 0.0
    %1568 = vmatprep.mubr.f32.mxu0 0.0
    %v1569 = vand.u32 %v1115, 4294901760
    %1570 = vmatmul.mubr.f32.gmra.mrb[0].mxu0 %v1569
    %v1571 = vpop.f32.mrb[0].mxu0
    %v1572 = vadd.f32 %v1477, %v1571
    %v1573 = vpop.f32.mrb[0].mxu0
    %1574 = vdwg.mxu0
    %1575 = vmatprep.subr.mxu0 0.0
    %v1576 = vand.u32 %v16, 4294901760
    %1577 = vmatpush1.msra.mxu0 %v1576
    %1578 = vmatprep.subr.mxu0 0.0
    %v1579 = vand.u32 %v17, 4294901760
    %1580 = vmatpush1.msra.mxu0 %v1579
    %1581 = vmatprep.subr.mxu0 0.0
    %v1582 = vand.u32 %v18, 4294901760
    %1583 = vmatpush1.msra.mxu0 %v1582
    %1584 = vmatprep.subr.mxu0 0.0
    %v1585 = vand.u32 %v19, 4294901760
    %1586 = vmatpush1.msra.mxu0 %v1585
    %1587 = vmatprep.subr.mxu0 0.0
    %v1588 = vand.u32 %v20, 4294901760
    %1589 = vmatpush1.msra.mxu0 %v1588
    %1590 = vmatprep.subr.mxu0 0.0
    %v1591 = vand.u32 %v21, 4294901760
    %1592 = vmatpush1.msra.mxu0 %v1591
    %1593 = vmatprep.subr.mxu0 0.0
    %v1594 = vand.u32 %v22, 4294901760
    %1595 = vmatpush1.msra.mxu0 %v1594
    %1596 = vmatprep.subr.mxu0 0.0
    %v1597 = vand.u32 %v23, 4294901760
    %1598 = vmatpush1.msra.mxu0 %v1597
    %1599 = vmatprep.subr.mxu0 0.0
    %1600 = vmatpush1.msra.mxu0 0.0
    %1601 = vmatprep.subr.mxu0 0.0
    %1602 = vmatpush1.msra.mxu0 0.0
    %1603 = vmatprep.subr.mxu0 0.0
    %1604 = vmatpush1.msra.mxu0 0.0
    %1605 = vmatprep.subr.mxu0 0.0
    %1606 = vmatpush1.msra.mxu0 0.0
    %1607 = vmatprep.subr.mxu0 0.0
    %1608 = vmatpush1.msra.mxu0 0.0
    %1609 = vmatprep.subr.mxu0 0.0
    %1610 = vmatpush1.msra.mxu0 0.0
    %1611 = vmatprep.subr.mxu0 0.0
    %1612 = vmatpush1.msra.mxu0 0.0
    %1613 = vmatprep.subr.mxu0 0.0
    %1614 = vmatpush1.msra.mxu0 0.0
    %1615 = vmatprep.subr.mxu0 0.0
    %1616 = vmatpush1.msra.mxu0 0.0
    %1617 = vmatprep.subr.mxu0 0.0
    %1618 = vmatpush1.msra.mxu0 0.0
    %1619 = vmatprep.subr.mxu0 0.0
    %1620 = vmatpush1.msra.mxu0 0.0
    %1621 = vmatprep.subr.mxu0 0.0
    %1622 = vmatpush1.msra.mxu0 0.0
    %1623 = vmatprep.subr.mxu0 0.0
    %1624 = vmatpush1.msra.mxu0 0.0
    %1625 = vmatprep.subr.mxu0 0.0
    %1626 = vmatpush1.msra.mxu0 0.0
    %1627 = vmatprep.subr.mxu0 0.0
    %1628 = vmatpush1.msra.mxu0 0.0
    %1629 = vmatprep.subr.mxu0 0.0
    %1630 = vmatpush1.msra.mxu0 0.0
    %1631 = vmatprep.subr.mxu0 0.0
    %1632 = vmatpush1.msra.mxu0 0.0
    %1633 = vmatprep.subr.mxu0 0.0
    %1634 = vmatpush1.msra.mxu0 0.0
    %1635 = vmatprep.subr.mxu0 0.0
    %1636 = vmatpush1.msra.mxu0 0.0
    %1637 = vmatprep.subr.mxu0 0.0
    %1638 = vmatpush1.msra.mxu0 0.0
    %1639 = vmatprep.subr.mxu0 0.0
    %1640 = vmatpush1.msra.mxu0 0.0
    %1641 = vmatprep.subr.mxu0 0.0
    %1642 = vmatpush1.msra.mxu0 0.0
    %1643 = vmatprep.subr.mxu0 0.0
    %1644 = vmatpush1.msra.mxu0 0.0
    %1645 = vmatprep.subr.mxu0 0.0
    %1646 = vmatpush1.msra.mxu0 0.0
    %1647 = vmatprep.mubr.f32.mxu0 0.0
    %v1648 = vand.u32 %v1115, 4294901760
    %1649 = vmatmul.mubr.f32.gmra.mrb[0].mxu0 %v1648
    %v1650 = vpop.f32.mrb[0].mxu0
    %v1651 = vadd.f32 %v1572, %v1650
    %v1652 = vpop.f32.mrb[0].mxu0
    %1653 = vdwg.mxu0
    %v1655 = vrot.slane %v1651, 4
    %v1657 = vadd.f32 %v557, %v1655
    %v1658 = vtanh.pop %v1657
    %v1660 = vrot.slane %v1658, 4
    %v1661 = vsel %vm567, %v1660, 0
    %1663 = vmatprep.subr.mxu0 0.0
    %v1664 = vand.u32 %v16, 4294901760
    %1665 = vmatpush1.msra.mxu0 %v1664
    %1666 = vmatprep.subr.mxu0 0.0
    %v1667 = vand.u32 %v17, 4294901760
    %1668 = vmatpush1.msra.mxu0 %v1667
    %1669 = vmatprep.subr.mxu0 0.0
    %v1670 = vand.u32 %v18, 4294901760
    %1671 = vmatpush1.msra.mxu0 %v1670
    %1672 = vmatprep.subr.mxu0 0.0
    %v1673 = vand.u32 %v19, 4294901760
    %1674 = vmatpush1.msra.mxu0 %v1673
    %1675 = vmatprep.subr.mxu0 0.0
    %v1676 = vand.u32 %v20, 4294901760
    %1677 = vmatpush1.msra.mxu0 %v1676
    %1678 = vmatprep.subr.mxu0 0.0
    %v1679 = vand.u32 %v21, 4294901760
    %1680 = vmatpush1.msra.mxu0 %v1679
    %1681 = vmatprep.subr.mxu0 0.0
    %v1682 = vand.u32 %v22, 4294901760
    %1683 = vmatpush1.msra.mxu0 %v1682
    %1684 = vmatprep.subr.mxu0 0.0
    %v1685 = vand.u32 %v23, 4294901760
    %1686 = vmatpush1.msra.mxu0 %v1685
    %1687 = vmatprep.subr.mxu0 0.0
    %1688 = vmatpush1.msra.mxu0 0.0
    %1689 = vmatprep.subr.mxu0 0.0
    %1690 = vmatpush1.msra.mxu0 0.0
    %1691 = vmatprep.subr.mxu0 0.0
    %1692 = vmatpush1.msra.mxu0 0.0
    %1693 = vmatprep.subr.mxu0 0.0
    %1694 = vmatpush1.msra.mxu0 0.0
    %1695 = vmatprep.subr.mxu0 0.0
    %1696 = vmatpush1.msra.mxu0 0.0
    %1697 = vmatprep.subr.mxu0 0.0
    %1698 = vmatpush1.msra.mxu0 0.0
    %1699 = vmatprep.subr.mxu0 0.0
    %1700 = vmatpush1.msra.mxu0 0.0
    %1701 = vmatprep.subr.mxu0 0.0
    %1702 = vmatpush1.msra.mxu0 0.0
    %1703 = vmatprep.subr.mxu0 0.0
    %1704 = vmatpush1.msra.mxu0 0.0
    %1705 = vmatprep.subr.mxu0 0.0
    %1706 = vmatpush1.msra.mxu0 0.0
    %1707 = vmatprep.subr.mxu0 0.0
    %1708 = vmatpush1.msra.mxu0 0.0
    %1709 = vmatprep.subr.mxu0 0.0
    %1710 = vmatpush1.msra.mxu0 0.0
    %1711 = vmatprep.subr.mxu0 0.0
    %1712 = vmatpush1.msra.mxu0 0.0
    %1713 = vmatprep.subr.mxu0 0.0
    %1714 = vmatpush1.msra.mxu0 0.0
    %1715 = vmatprep.subr.mxu0 0.0
    %1716 = vmatpush1.msra.mxu0 0.0
    %1717 = vmatprep.subr.mxu0 0.0
    %1718 = vmatpush1.msra.mxu0 0.0
    %1719 = vmatprep.subr.mxu0 0.0
    %1720 = vmatpush1.msra.mxu0 0.0
    %1721 = vmatprep.subr.mxu0 0.0
    %1722 = vmatpush1.msra.mxu0 0.0
    %1723 = vmatprep.subr.mxu0 0.0
    %1724 = vmatpush1.msra.mxu0 0.0
    %1725 = vmatprep.subr.mxu0 0.0
    %1726 = vmatpush1.msra.mxu0 0.0
    %1727 = vmatprep.subr.mxu0 0.0
    %1728 = vmatpush1.msra.mxu0 0.0
    %1729 = vmatprep.subr.mxu0 0.0
    %1730 = vmatpush1.msra.mxu0 0.0
    %1731 = vmatprep.subr.mxu0 0.0
    %1732 = vmatpush1.msra.mxu0 0.0
    %1733 = vmatprep.subr.mxu0 0.0
    %1734 = vmatpush1.msra.mxu0 0.0
    %1735 = vmatprep.mubr.f32.mxu0 0.0
    %v1736 = vand.u32 %v1661, 4294901760
    %v1737 = vsub.f32 %v1661, %v1736
    %v1738 = vand.u32 %v1737, 4294901760
    %v1739 = vsub.f32 %v1737, %v1738
    %v1740 = vand.u32 %v1739, 4294901760
    %1741 = vmatmul.mubr.f32.gmra.mrb[0].mxu0 %v1740
    %v1742 = vpop.f32.mrb[0].mxu0
    %v1743 = vadd.f32 0.0, %v1742
    %v1744 = vpop.f32.mrb[0].mxu0
    %1745 = vdwg.mxu0
    %1746 = vmatprep.subr.mxu0 0.0
    %v1747 = vand.u32 %v16, 4294901760
    %v1748 = vsub.f32 %v16, %v1747
    %v1749 = vand.u32 %v1748, 4294901760
    %v1750 = vsub.f32 %v1748, %v1749
    %v1751 = vand.u32 %v1750, 4294901760
    %1752 = vmatpush1.msra.mxu0 %v1751
    %1753 = vmatprep.subr.mxu0 0.0
    %v1754 = vand.u32 %v17, 4294901760
    %v1755 = vsub.f32 %v17, %v1754
    %v1756 = vand.u32 %v1755, 4294901760
    %v1757 = vsub.f32 %v1755, %v1756
    %v1758 = vand.u32 %v1757, 4294901760
    %1759 = vmatpush1.msra.mxu0 %v1758
    %1760 = vmatprep.subr.mxu0 0.0
    %v1761 = vand.u32 %v18, 4294901760
    %v1762 = vsub.f32 %v18, %v1761
    %v1763 = vand.u32 %v1762, 4294901760
    %v1764 = vsub.f32 %v1762, %v1763
    %v1765 = vand.u32 %v1764, 4294901760
    %1766 = vmatpush1.msra.mxu0 %v1765
    %1767 = vmatprep.subr.mxu0 0.0
    %v1768 = vand.u32 %v19, 4294901760
    %v1769 = vsub.f32 %v19, %v1768
    %v1770 = vand.u32 %v1769, 4294901760
    %v1771 = vsub.f32 %v1769, %v1770
    %v1772 = vand.u32 %v1771, 4294901760
    %1773 = vmatpush1.msra.mxu0 %v1772
    %1774 = vmatprep.subr.mxu0 0.0
    %v1775 = vand.u32 %v20, 4294901760
    %v1776 = vsub.f32 %v20, %v1775
    %v1777 = vand.u32 %v1776, 4294901760
    %v1778 = vsub.f32 %v1776, %v1777
    %v1779 = vand.u32 %v1778, 4294901760
    %1780 = vmatpush1.msra.mxu0 %v1779
    %1781 = vmatprep.subr.mxu0 0.0
    %v1782 = vand.u32 %v21, 4294901760
    %v1783 = vsub.f32 %v21, %v1782
    %v1784 = vand.u32 %v1783, 4294901760
    %v1785 = vsub.f32 %v1783, %v1784
    %v1786 = vand.u32 %v1785, 4294901760
    %1787 = vmatpush1.msra.mxu0 %v1786
    %1788 = vmatprep.subr.mxu0 0.0
    %v1789 = vand.u32 %v22, 4294901760
    %v1790 = vsub.f32 %v22, %v1789
    %v1791 = vand.u32 %v1790, 4294901760
    %v1792 = vsub.f32 %v1790, %v1791
    %v1793 = vand.u32 %v1792, 4294901760
    %1794 = vmatpush1.msra.mxu0 %v1793
    %1795 = vmatprep.subr.mxu0 0.0
    %v1796 = vand.u32 %v23, 4294901760
    %v1797 = vsub.f32 %v23, %v1796
    %v1798 = vand.u32 %v1797, 4294901760
    %v1799 = vsub.f32 %v1797, %v1798
    %v1800 = vand.u32 %v1799, 4294901760
    %1801 = vmatpush1.msra.mxu0 %v1800
    %1802 = vmatprep.subr.mxu0 0.0
    %1803 = vmatpush1.msra.mxu0 0.0
    %1804 = vmatprep.subr.mxu0 0.0
    %1805 = vmatpush1.msra.mxu0 0.0
    %1806 = vmatprep.subr.mxu0 0.0
    %1807 = vmatpush1.msra.mxu0 0.0
    %1808 = vmatprep.subr.mxu0 0.0
    %1809 = vmatpush1.msra.mxu0 0.0
    %1810 = vmatprep.subr.mxu0 0.0
    %1811 = vmatpush1.msra.mxu0 0.0
    %1812 = vmatprep.subr.mxu0 0.0
    %1813 = vmatpush1.msra.mxu0 0.0
    %1814 = vmatprep.subr.mxu0 0.0
    %1815 = vmatpush1.msra.mxu0 0.0
    %1816 = vmatprep.subr.mxu0 0.0
    %1817 = vmatpush1.msra.mxu0 0.0
    %1818 = vmatprep.subr.mxu0 0.0
    %1819 = vmatpush1.msra.mxu0 0.0
    %1820 = vmatprep.subr.mxu0 0.0
    %1821 = vmatpush1.msra.mxu0 0.0
    %1822 = vmatprep.subr.mxu0 0.0
    %1823 = vmatpush1.msra.mxu0 0.0
    %1824 = vmatprep.subr.mxu0 0.0
    %1825 = vmatpush1.msra.mxu0 0.0
    %1826 = vmatprep.subr.mxu0 0.0
    %1827 = vmatpush1.msra.mxu0 0.0
    %1828 = vmatprep.subr.mxu0 0.0
    %1829 = vmatpush1.msra.mxu0 0.0
    %1830 = vmatprep.subr.mxu0 0.0
    %1831 = vmatpush1.msra.mxu0 0.0
    %1832 = vmatprep.subr.mxu0 0.0
    %1833 = vmatpush1.msra.mxu0 0.0
    %1834 = vmatprep.subr.mxu0 0.0
    %1835 = vmatpush1.msra.mxu0 0.0
    %1836 = vmatprep.subr.mxu0 0.0
    %1837 = vmatpush1.msra.mxu0 0.0
    %1838 = vmatprep.subr.mxu0 0.0
    %1839 = vmatpush1.msra.mxu0 0.0
    %1840 = vmatprep.subr.mxu0 0.0
    %1841 = vmatpush1.msra.mxu0 0.0
    %1842 = vmatprep.subr.mxu0 0.0
    %1843 = vmatpush1.msra.mxu0 0.0
    %1844 = vmatprep.subr.mxu0 0.0
    %1845 = vmatpush1.msra.mxu0 0.0
    %1846 = vmatprep.subr.mxu0 0.0
    %1847 = vmatpush1.msra.mxu0 0.0
    %1848 = vmatprep.subr.mxu0 0.0
    %1849 = vmatpush1.msra.mxu0 0.0
    %1850 = vmatprep.mubr.f32.mxu0 0.0
    %v1851 = vand.u32 %v1661, 4294901760
    %1852 = vmatmul.mubr.f32.gmra.mrb[0].mxu0 %v1851
    %v1853 = vpop.f32.mrb[0].mxu0
    %v1854 = vadd.f32 %v1743, %v1853
    %v1855 = vpop.f32.mrb[0].mxu0
    %1856 = vdwg.mxu0
    %1857 = vmatprep.subr.mxu0 0.0
    %v1858 = vand.u32 %v16, 4294901760
    %v1859 = vsub.f32 %v16, %v1858
    %1860 = vmatpush1.msra.mxu0 %v1859
    %1861 = vmatprep.subr.mxu0 0.0
    %v1862 = vand.u32 %v17, 4294901760
    %v1863 = vsub.f32 %v17, %v1862
    %1864 = vmatpush1.msra.mxu0 %v1863
    %1865 = vmatprep.subr.mxu0 0.0
    %v1866 = vand.u32 %v18, 4294901760
    %v1867 = vsub.f32 %v18, %v1866
    %1868 = vmatpush1.msra.mxu0 %v1867
    %1869 = vmatprep.subr.mxu0 0.0
    %v1870 = vand.u32 %v19, 4294901760
    %v1871 = vsub.f32 %v19, %v1870
    %1872 = vmatpush1.msra.mxu0 %v1871
    %1873 = vmatprep.subr.mxu0 0.0
    %v1874 = vand.u32 %v20, 4294901760
    %v1875 = vsub.f32 %v20, %v1874
    %1876 = vmatpush1.msra.mxu0 %v1875
    %1877 = vmatprep.subr.mxu0 0.0
    %v1878 = vand.u32 %v21, 4294901760
    %v1879 = vsub.f32 %v21, %v1878
    %1880 = vmatpush1.msra.mxu0 %v1879
    %1881 = vmatprep.subr.mxu0 0.0
    %v1882 = vand.u32 %v22, 4294901760
    %v1883 = vsub.f32 %v22, %v1882
    %1884 = vmatpush1.msra.mxu0 %v1883
    %1885 = vmatprep.subr.mxu0 0.0
    %v1886 = vand.u32 %v23, 4294901760
    %v1887 = vsub.f32 %v23, %v1886
    %1888 = vmatpush1.msra.mxu0 %v1887
    %1889 = vmatprep.subr.mxu0 0.0
    %1890 = vmatpush1.msra.mxu0 0.0
    %1891 = vmatprep.subr.mxu0 0.0
    %1892 = vmatpush1.msra.mxu0 0.0
    %1893 = vmatprep.subr.mxu0 0.0
    %1894 = vmatpush1.msra.mxu0 0.0
    %1895 = vmatprep.subr.mxu0 0.0
    %1896 = vmatpush1.msra.mxu0 0.0
    %1897 = vmatprep.subr.mxu0 0.0
    %1898 = vmatpush1.msra.mxu0 0.0
    %1899 = vmatprep.subr.mxu0 0.0
    %1900 = vmatpush1.msra.mxu0 0.0
    %1901 = vmatprep.subr.mxu0 0.0
    %1902 = vmatpush1.msra.mxu0 0.0
    %1903 = vmatprep.subr.mxu0 0.0
    %1904 = vmatpush1.msra.mxu0 0.0
    %1905 = vmatprep.subr.mxu0 0.0
    %1906 = vmatpush1.msra.mxu0 0.0
    %1907 = vmatprep.subr.mxu0 0.0
    %1908 = vmatpush1.msra.mxu0 0.0
    %1909 = vmatprep.subr.mxu0 0.0
    %1910 = vmatpush1.msra.mxu0 0.0
    %1911 = vmatprep.subr.mxu0 0.0
    %1912 = vmatpush1.msra.mxu0 0.0
    %1913 = vmatprep.subr.mxu0 0.0
    %1914 = vmatpush1.msra.mxu0 0.0
    %1915 = vmatprep.subr.mxu0 0.0
    %1916 = vmatpush1.msra.mxu0 0.0
    %1917 = vmatprep.subr.mxu0 0.0
    %1918 = vmatpush1.msra.mxu0 0.0
    %1919 = vmatprep.subr.mxu0 0.0
    %1920 = vmatpush1.msra.mxu0 0.0
    %1921 = vmatprep.subr.mxu0 0.0
    %1922 = vmatpush1.msra.mxu0 0.0
    %1923 = vmatprep.subr.mxu0 0.0
    %1924 = vmatpush1.msra.mxu0 0.0
    %1925 = vmatprep.subr.mxu0 0.0
    %1926 = vmatpush1.msra.mxu0 0.0
    %1927 = vmatprep.subr.mxu0 0.0
    %1928 = vmatpush1.msra.mxu0 0.0
    %1929 = vmatprep.subr.mxu0 0.0
    %1930 = vmatpush1.msra.mxu0 0.0
    %1931 = vmatprep.subr.mxu0 0.0
    %1932 = vmatpush1.msra.mxu0 0.0
    %1933 = vmatprep.subr.mxu0 0.0
    %1934 = vmatpush1.msra.mxu0 0.0
    %1935 = vmatprep.subr.mxu0 0.0
    %1936 = vmatpush1.msra.mxu0 0.0
    %1937 = vmatprep.mubr.f32.mxu0 0.0
    %v1938 = vand.u32 %v1661, 4294901760
    %v1939 = vsub.f32 %v1661, %v1938
    %1940 = vmatmul.mubr.f32.gmra.mrb[0].mxu0 %v1939
    %v1941 = vpop.f32.mrb[0].mxu0
    %v1942 = vadd.f32 %v1854, %v1941
    %v1943 = vpop.f32.mrb[0].mxu0
    %1944 = vdwg.mxu0
    %1945 = vmatprep.subr.mxu0 0.0
    %v1946 = vand.u32 %v16, 4294901760
    %1947 = vmatpush1.msra.mxu0 %v1946
    %1948 = vmatprep.subr.mxu0 0.0
    %v1949 = vand.u32 %v17, 4294901760
    %1950 = vmatpush1.msra.mxu0 %v1949
    %1951 = vmatprep.subr.mxu0 0.0
    %v1952 = vand.u32 %v18, 4294901760
    %1953 = vmatpush1.msra.mxu0 %v1952
    %1954 = vmatprep.subr.mxu0 0.0
    %v1955 = vand.u32 %v19, 4294901760
    %1956 = vmatpush1.msra.mxu0 %v1955
    %1957 = vmatprep.subr.mxu0 0.0
    %v1958 = vand.u32 %v20, 4294901760
    %1959 = vmatpush1.msra.mxu0 %v1958
    %1960 = vmatprep.subr.mxu0 0.0
    %v1961 = vand.u32 %v21, 4294901760
    %1962 = vmatpush1.msra.mxu0 %v1961
    %1963 = vmatprep.subr.mxu0 0.0
    %v1964 = vand.u32 %v22, 4294901760
    %1965 = vmatpush1.msra.mxu0 %v1964
    %1966 = vmatprep.subr.mxu0 0.0
    %v1967 = vand.u32 %v23, 4294901760
    %1968 = vmatpush1.msra.mxu0 %v1967
    %1969 = vmatprep.subr.mxu0 0.0
    %1970 = vmatpush1.msra.mxu0 0.0
    %1971 = vmatprep.subr.mxu0 0.0
    %1972 = vmatpush1.msra.mxu0 0.0
    %1973 = vmatprep.subr.mxu0 0.0
    %1974 = vmatpush1.msra.mxu0 0.0
    %1975 = vmatprep.subr.mxu0 0.0
    %1976 = vmatpush1.msra.mxu0 0.0
    %1977 = vmatprep.subr.mxu0 0.0
    %1978 = vmatpush1.msra.mxu0 0.0
    %1979 = vmatprep.subr.mxu0 0.0
    %1980 = vmatpush1.msra.mxu0 0.0
    %1981 = vmatprep.subr.mxu0 0.0
    %1982 = vmatpush1.msra.mxu0 0.0
    %1983 = vmatprep.subr.mxu0 0.0
    %1984 = vmatpush1.msra.mxu0 0.0
    %1985 = vmatprep.subr.mxu0 0.0
    %1986 = vmatpush1.msra.mxu0 0.0
    %1987 = vmatprep.subr.mxu0 0.0
    %1988 = vmatpush1.msra.mxu0 0.0
    %1989 = vmatprep.subr.mxu0 0.0
    %1990 = vmatpush1.msra.mxu0 0.0
    %1991 = vmatprep.subr.mxu0 0.0
    %1992 = vmatpush1.msra.mxu0 0.0
    %1993 = vmatprep.subr.mxu0 0.0
    %1994 = vmatpush1.msra.mxu0 0.0
    %1995 = vmatprep.subr.mxu0 0.0
    %1996 = vmatpush1.msra.mxu0 0.0
    %1997 = vmatprep.subr.mxu0 0.0
    %1998 = vmatpush1.msra.mxu0 0.0
    %1999 = vmatprep.subr.mxu0 0.0
    %2000 = vmatpush1.msra.mxu0 0.0
    %2001 = vmatprep.subr.mxu0 0.0
    %2002 = vmatpush1.msra.mxu0 0.0
    %2003 = vmatprep.subr.mxu0 0.0
    %2004 = vmatpush1.msra.mxu0 0.0
    %2005 = vmatprep.subr.mxu0 0.0
    %2006 = vmatpush1.msra.mxu0 0.0
    %2007 = vmatprep.subr.mxu0 0.0
    %2008 = vmatpush1.msra.mxu0 0.0
    %2009 = vmatprep.subr.mxu0 0.0
    %2010 = vmatpush1.msra.mxu0 0.0
    %2011 = vmatprep.subr.mxu0 0.0
    %2012 = vmatpush1.msra.mxu0 0.0
    %2013 = vmatprep.subr.mxu0 0.0
    %2014 = vmatpush1.msra.mxu0 0.0
    %2015 = vmatprep.subr.mxu0 0.0
    %2016 = vmatpush1.msra.mxu0 0.0
    %2017 = vmatprep.mubr.f32.mxu0 0.0
    %v2018 = vand.u32 %v1661, 4294901760
    %v2019 = vsub.f32 %v1661, %v2018
    %v2020 = vand.u32 %v2019, 4294901760
    %2021 = vmatmul.mubr.f32.gmra.mrb[0].mxu0 %v2020
    %v2022 = vpop.f32.mrb[0].mxu0
    %v2023 = vadd.f32 %v1942, %v2022
    %v2024 = vpop.f32.mrb[0].mxu0
    %2025 = vdwg.mxu0
    %2026 = vmatprep.subr.mxu0 0.0
    %v2027 = vand.u32 %v16, 4294901760
    %v2028 = vsub.f32 %v16, %v2027
    %v2029 = vand.u32 %v2028, 4294901760
    %2030 = vmatpush1.msra.mxu0 %v2029
    %2031 = vmatprep.subr.mxu0 0.0
    %v2032 = vand.u32 %v17, 4294901760
    %v2033 = vsub.f32 %v17, %v2032
    %v2034 = vand.u32 %v2033, 4294901760
    %2035 = vmatpush1.msra.mxu0 %v2034
    %2036 = vmatprep.subr.mxu0 0.0
    %v2037 = vand.u32 %v18, 4294901760
    %v2038 = vsub.f32 %v18, %v2037
    %v2039 = vand.u32 %v2038, 4294901760
    %2040 = vmatpush1.msra.mxu0 %v2039
    %2041 = vmatprep.subr.mxu0 0.0
    %v2042 = vand.u32 %v19, 4294901760
    %v2043 = vsub.f32 %v19, %v2042
    %v2044 = vand.u32 %v2043, 4294901760
    %2045 = vmatpush1.msra.mxu0 %v2044
    %2046 = vmatprep.subr.mxu0 0.0
    %v2047 = vand.u32 %v20, 4294901760
    %v2048 = vsub.f32 %v20, %v2047
    %v2049 = vand.u32 %v2048, 4294901760
    %2050 = vmatpush1.msra.mxu0 %v2049
    %2051 = vmatprep.subr.mxu0 0.0
    %v2052 = vand.u32 %v21, 4294901760
    %v2053 = vsub.f32 %v21, %v2052
    %v2054 = vand.u32 %v2053, 4294901760
    %2055 = vmatpush1.msra.mxu0 %v2054
    %2056 = vmatprep.subr.mxu0 0.0
    %v2057 = vand.u32 %v22, 4294901760
    %v2058 = vsub.f32 %v22, %v2057
    %v2059 = vand.u32 %v2058, 4294901760
    %2060 = vmatpush1.msra.mxu0 %v2059
    %2061 = vmatprep.subr.mxu0 0.0
    %v2062 = vand.u32 %v23, 4294901760
    %v2063 = vsub.f32 %v23, %v2062
    %v2064 = vand.u32 %v2063, 4294901760
    %2065 = vmatpush1.msra.mxu0 %v2064
    %2066 = vmatprep.subr.mxu0 0.0
    %2067 = vmatpush1.msra.mxu0 0.0
    %2068 = vmatprep.subr.mxu0 0.0
    %2069 = vmatpush1.msra.mxu0 0.0
    %2070 = vmatprep.subr.mxu0 0.0
    %2071 = vmatpush1.msra.mxu0 0.0
    %2072 = vmatprep.subr.mxu0 0.0
    %2073 = vmatpush1.msra.mxu0 0.0
    %2074 = vmatprep.subr.mxu0 0.0
    %2075 = vmatpush1.msra.mxu0 0.0
    %2076 = vmatprep.subr.mxu0 0.0
    %2077 = vmatpush1.msra.mxu0 0.0
    %2078 = vmatprep.subr.mxu0 0.0
    %2079 = vmatpush1.msra.mxu0 0.0
    %2080 = vmatprep.subr.mxu0 0.0
    %2081 = vmatpush1.msra.mxu0 0.0
    %2082 = vmatprep.subr.mxu0 0.0
    %2083 = vmatpush1.msra.mxu0 0.0
    %2084 = vmatprep.subr.mxu0 0.0
    %2085 = vmatpush1.msra.mxu0 0.0
    %2086 = vmatprep.subr.mxu0 0.0
    %2087 = vmatpush1.msra.mxu0 0.0
    %2088 = vmatprep.subr.mxu0 0.0
    %2089 = vmatpush1.msra.mxu0 0.0
    %2090 = vmatprep.subr.mxu0 0.0
    %2091 = vmatpush1.msra.mxu0 0.0
    %2092 = vmatprep.subr.mxu0 0.0
    %2093 = vmatpush1.msra.mxu0 0.0
    %2094 = vmatprep.subr.mxu0 0.0
    %2095 = vmatpush1.msra.mxu0 0.0
    %2096 = vmatprep.subr.mxu0 0.0
    %2097 = vmatpush1.msra.mxu0 0.0
    %2098 = vmatprep.subr.mxu0 0.0
    %2099 = vmatpush1.msra.mxu0 0.0
    %2100 = vmatprep.subr.mxu0 0.0
    %2101 = vmatpush1.msra.mxu0 0.0
    %2102 = vmatprep.subr.mxu0 0.0
    %2103 = vmatpush1.msra.mxu0 0.0
    %2104 = vmatprep.subr.mxu0 0.0
    %2105 = vmatpush1.msra.mxu0 0.0
    %2106 = vmatprep.subr.mxu0 0.0
    %2107 = vmatpush1.msra.mxu0 0.0
    %2108 = vmatprep.subr.mxu0 0.0
    %2109 = vmatpush1.msra.mxu0 0.0
    %2110 = vmatprep.subr.mxu0 0.0
    %2111 = vmatpush1.msra.mxu0 0.0
    %2112 = vmatprep.subr.mxu0 0.0
    %2113 = vmatpush1.msra.mxu0 0.0
    %2114 = vmatprep.mubr.f32.mxu0 0.0
    %v2115 = vand.u32 %v1661, 4294901760
    %2116 = vmatmul.mubr.f32.gmra.mrb[0].mxu0 %v2115
    %v2117 = vpop.f32.mrb[0].mxu0
    %v2118 = vadd.f32 %v2023, %v2117
    %v2119 = vpop.f32.mrb[0].mxu0
    %2120 = vdwg.mxu0
    %2121 = vmatprep.subr.mxu0 0.0
    %v2122 = vand.u32 %v16, 4294901760
    %2123 = vmatpush1.msra.mxu0 %v2122
    %2124 = vmatprep.subr.mxu0 0.0
    %v2125 = vand.u32 %v17, 4294901760
    %2126 = vmatpush1.msra.mxu0 %v2125
    %2127 = vmatprep.subr.mxu0 0.0
    %v2128 = vand.u32 %v18, 4294901760
    %2129 = vmatpush1.msra.mxu0 %v2128
    %2130 = vmatprep.subr.mxu0 0.0
    %v2131 = vand.u32 %v19, 4294901760
    %2132 = vmatpush1.msra.mxu0 %v2131
    %2133 = vmatprep.subr.mxu0 0.0
    %v2134 = vand.u32 %v20, 4294901760
    %2135 = vmatpush1.msra.mxu0 %v2134
    %2136 = vmatprep.subr.mxu0 0.0
    %v2137 = vand.u32 %v21, 4294901760
    %2138 = vmatpush1.msra.mxu0 %v2137
    %2139 = vmatprep.subr.mxu0 0.0
    %v2140 = vand.u32 %v22, 4294901760
    %2141 = vmatpush1.msra.mxu0 %v2140
    %2142 = vmatprep.subr.mxu0 0.0
    %v2143 = vand.u32 %v23, 4294901760
    %2144 = vmatpush1.msra.mxu0 %v2143
    %2145 = vmatprep.subr.mxu0 0.0
    %2146 = vmatpush1.msra.mxu0 0.0
    %2147 = vmatprep.subr.mxu0 0.0
    %2148 = vmatpush1.msra.mxu0 0.0
    %2149 = vmatprep.subr.mxu0 0.0
    %2150 = vmatpush1.msra.mxu0 0.0
    %2151 = vmatprep.subr.mxu0 0.0
    %2152 = vmatpush1.msra.mxu0 0.0
    %2153 = vmatprep.subr.mxu0 0.0
    %2154 = vmatpush1.msra.mxu0 0.0
    %2155 = vmatprep.subr.mxu0 0.0
    %2156 = vmatpush1.msra.mxu0 0.0
    %2157 = vmatprep.subr.mxu0 0.0
    %2158 = vmatpush1.msra.mxu0 0.0
    %2159 = vmatprep.subr.mxu0 0.0
    %2160 = vmatpush1.msra.mxu0 0.0
    %2161 = vmatprep.subr.mxu0 0.0
    %2162 = vmatpush1.msra.mxu0 0.0
    %2163 = vmatprep.subr.mxu0 0.0
    %2164 = vmatpush1.msra.mxu0 0.0
    %2165 = vmatprep.subr.mxu0 0.0
    %2166 = vmatpush1.msra.mxu0 0.0
    %2167 = vmatprep.subr.mxu0 0.0
    %2168 = vmatpush1.msra.mxu0 0.0
    %2169 = vmatprep.subr.mxu0 0.0
    %2170 = vmatpush1.msra.mxu0 0.0
    %2171 = vmatprep.subr.mxu0 0.0
    %2172 = vmatpush1.msra.mxu0 0.0
    %2173 = vmatprep.subr.mxu0 0.0
    %2174 = vmatpush1.msra.mxu0 0.0
    %2175 = vmatprep.subr.mxu0 0.0
    %2176 = vmatpush1.msra.mxu0 0.0
    %2177 = vmatprep.subr.mxu0 0.0
    %2178 = vmatpush1.msra.mxu0 0.0
    %2179 = vmatprep.subr.mxu0 0.0
    %2180 = vmatpush1.msra.mxu0 0.0
    %2181 = vmatprep.subr.mxu0 0.0
    %2182 = vmatpush1.msra.mxu0 0.0
    %2183 = vmatprep.subr.mxu0 0.0
    %2184 = vmatpush1.msra.mxu0 0.0
    %2185 = vmatprep.subr.mxu0 0.0
    %2186 = vmatpush1.msra.mxu0 0.0
    %2187 = vmatprep.subr.mxu0 0.0
    %2188 = vmatpush1.msra.mxu0 0.0
    %2189 = vmatprep.subr.mxu0 0.0
    %2190 = vmatpush1.msra.mxu0 0.0
    %2191 = vmatprep.subr.mxu0 0.0
    %2192 = vmatpush1.msra.mxu0 0.0
    %2193 = vmatprep.mubr.f32.mxu0 0.0
    %v2194 = vand.u32 %v1661, 4294901760
    %2195 = vmatmul.mubr.f32.gmra.mrb[0].mxu0 %v2194
    %v2196 = vpop.f32.mrb[0].mxu0
    %v2197 = vadd.f32 %v2118, %v2196
    %v2198 = vpop.f32.mrb[0].mxu0
    %2199 = vdwg.mxu0
    %v2201 = vrot.slane %v2197, 2
    %v2203 = vadd.f32 %v557, %v2201
    %v2204 = vtanh.pop %v2203
    %v2206 = vrot.slane %v2204, 6
    %v2207 = vsel %vm567, %v2206, 0
    %2209 = vmatprep.subr.mxu0 0.0
    %v2210 = vand.u32 %v16, 4294901760
    %2211 = vmatpush1.msra.mxu0 %v2210
    %2212 = vmatprep.subr.mxu0 0.0
    %v2213 = vand.u32 %v17, 4294901760
    %2214 = vmatpush1.msra.mxu0 %v2213
    %2215 = vmatprep.subr.mxu0 0.0
    %v2216 = vand.u32 %v18, 4294901760
    %2217 = vmatpush1.msra.mxu0 %v2216
    %2218 = vmatprep.subr.mxu0 0.0
    %v2219 = vand.u32 %v19, 4294901760
    %2220 = vmatpush1.msra.mxu0 %v2219
    %2221 = vmatprep.subr.mxu0 0.0
    %v2222 = vand.u32 %v20, 4294901760
    %2223 = vmatpush1.msra.mxu0 %v2222
    %2224 = vmatprep.subr.mxu0 0.0
    %v2225 = vand.u32 %v21, 4294901760
    %2226 = vmatpush1.msra.mxu0 %v2225
    %2227 = vmatprep.subr.mxu0 0.0
    %v2228 = vand.u32 %v22, 4294901760
    %2229 = vmatpush1.msra.mxu0 %v2228
    %2230 = vmatprep.subr.mxu0 0.0
    %v2231 = vand.u32 %v23, 4294901760
    %2232 = vmatpush1.msra.mxu0 %v2231
    %2233 = vmatprep.subr.mxu0 0.0
    %2234 = vmatpush1.msra.mxu0 0.0
    %2235 = vmatprep.subr.mxu0 0.0
    %2236 = vmatpush1.msra.mxu0 0.0
    %2237 = vmatprep.subr.mxu0 0.0
    %2238 = vmatpush1.msra.mxu0 0.0
    %2239 = vmatprep.subr.mxu0 0.0
    %2240 = vmatpush1.msra.mxu0 0.0
    %2241 = vmatprep.subr.mxu0 0.0
    %2242 = vmatpush1.msra.mxu0 0.0
    %2243 = vmatprep.subr.mxu0 0.0
    %2244 = vmatpush1.msra.mxu0 0.0
    %2245 = vmatprep.subr.mxu0 0.0
    %2246 = vmatpush1.msra.mxu0 0.0
    %2247 = vmatprep.subr.mxu0 0.0
    %2248 = vmatpush1.msra.mxu0 0.0
    %2249 = vmatprep.subr.mxu0 0.0
    %2250 = vmatpush1.msra.mxu0 0.0
    %2251 = vmatprep.subr.mxu0 0.0
    %2252 = vmatpush1.msra.mxu0 0.0
    %2253 = vmatprep.subr.mxu0 0.0
    %2254 = vmatpush1.msra.mxu0 0.0
    %2255 = vmatprep.subr.mxu0 0.0
    %2256 = vmatpush1.msra.mxu0 0.0
    %2257 = vmatprep.subr.mxu0 0.0
    %2258 = vmatpush1.msra.mxu0 0.0
    %2259 = vmatprep.subr.mxu0 0.0
    %2260 = vmatpush1.msra.mxu0 0.0
    %2261 = vmatprep.subr.mxu0 0.0
    %2262 = vmatpush1.msra.mxu0 0.0
    %2263 = vmatprep.subr.mxu0 0.0
    %2264 = vmatpush1.msra.mxu0 0.0
    %2265 = vmatprep.subr.mxu0 0.0
    %2266 = vmatpush1.msra.mxu0 0.0
    %2267 = vmatprep.subr.mxu0 0.0
    %2268 = vmatpush1.msra.mxu0 0.0
    %2269 = vmatprep.subr.mxu0 0.0
    %2270 = vmatpush1.msra.mxu0 0.0
    %2271 = vmatprep.subr.mxu0 0.0
    %2272 = vmatpush1.msra.mxu0 0.0
    %2273 = vmatprep.subr.mxu0 0.0
    %2274 = vmatpush1.msra.mxu0 0.0
    %2275 = vmatprep.subr.mxu0 0.0
    %2276 = vmatpush1.msra.mxu0 0.0
    %2277 = vmatprep.subr.mxu0 0.0
    %2278 = vmatpush1.msra.mxu0 0.0
    %2279 = vmatprep.subr.mxu0 0.0
    %2280 = vmatpush1.msra.mxu0 0.0
    %2281 = vmatprep.mubr.f32.mxu0 0.0
    %v2282 = vand.u32 %v2207, 4294901760
    %v2283 = vsub.f32 %v2207, %v2282
    %v2284 = vand.u32 %v2283, 4294901760
    %v2285 = vsub.f32 %v2283, %v2284
    %v2286 = vand.u32 %v2285, 4294901760
    %2287 = vmatmul.mubr.f32.gmra.mrb[0].mxu0 %v2286
    %v2288 = vpop.f32.mrb[0].mxu0
    %v2289 = vadd.f32 0.0, %v2288
    %v2290 = vpop.f32.mrb[0].mxu0
    %2291 = vdwg.mxu0
    %2292 = vmatprep.subr.mxu0 0.0
    %v2293 = vand.u32 %v16, 4294901760
    %v2294 = vsub.f32 %v16, %v2293
    %v2295 = vand.u32 %v2294, 4294901760
    %v2296 = vsub.f32 %v2294, %v2295
    %v2297 = vand.u32 %v2296, 4294901760
    %2298 = vmatpush1.msra.mxu0 %v2297
    %2299 = vmatprep.subr.mxu0 0.0
    %v2300 = vand.u32 %v17, 4294901760
    %v2301 = vsub.f32 %v17, %v2300
    %v2302 = vand.u32 %v2301, 4294901760
    %v2303 = vsub.f32 %v2301, %v2302
    %v2304 = vand.u32 %v2303, 4294901760
    %2305 = vmatpush1.msra.mxu0 %v2304
    %2306 = vmatprep.subr.mxu0 0.0
    %v2307 = vand.u32 %v18, 4294901760
    %v2308 = vsub.f32 %v18, %v2307
    %v2309 = vand.u32 %v2308, 4294901760
    %v2310 = vsub.f32 %v2308, %v2309
    %v2311 = vand.u32 %v2310, 4294901760
    %2312 = vmatpush1.msra.mxu0 %v2311
    %2313 = vmatprep.subr.mxu0 0.0
    %v2314 = vand.u32 %v19, 4294901760
    %v2315 = vsub.f32 %v19, %v2314
    %v2316 = vand.u32 %v2315, 4294901760
    %v2317 = vsub.f32 %v2315, %v2316
    %v2318 = vand.u32 %v2317, 4294901760
    %2319 = vmatpush1.msra.mxu0 %v2318
    %2320 = vmatprep.subr.mxu0 0.0
    %v2321 = vand.u32 %v20, 4294901760
    %v2322 = vsub.f32 %v20, %v2321
    %v2323 = vand.u32 %v2322, 4294901760
    %v2324 = vsub.f32 %v2322, %v2323
    %v2325 = vand.u32 %v2324, 4294901760
    %2326 = vmatpush1.msra.mxu0 %v2325
    %2327 = vmatprep.subr.mxu0 0.0
    %v2328 = vand.u32 %v21, 4294901760
    %v2329 = vsub.f32 %v21, %v2328
    %v2330 = vand.u32 %v2329, 4294901760
    %v2331 = vsub.f32 %v2329, %v2330
    %v2332 = vand.u32 %v2331, 4294901760
    %2333 = vmatpush1.msra.mxu0 %v2332
    %2334 = vmatprep.subr.mxu0 0.0
    %v2335 = vand.u32 %v22, 4294901760
    %v2336 = vsub.f32 %v22, %v2335
    %v2337 = vand.u32 %v2336, 4294901760
    %v2338 = vsub.f32 %v2336, %v2337
    %v2339 = vand.u32 %v2338, 4294901760
    %2340 = vmatpush1.msra.mxu0 %v2339
    %2341 = vmatprep.subr.mxu0 0.0
    %v2342 = vand.u32 %v23, 4294901760
    %v2343 = vsub.f32 %v23, %v2342
    %v2344 = vand.u32 %v2343, 4294901760
    %v2345 = vsub.f32 %v2343, %v2344
    %v2346 = vand.u32 %v2345, 4294901760
    %2347 = vmatpush1.msra.mxu0 %v2346
    %2348 = vmatprep.subr.mxu0 0.0
    %2349 = vmatpush1.msra.mxu0 0.0
    %2350 = vmatprep.subr.mxu0 0.0
    %2351 = vmatpush1.msra.mxu0 0.0
    %2352 = vmatprep.subr.mxu0 0.0
    %2353 = vmatpush1.msra.mxu0 0.0
    %2354 = vmatprep.subr.mxu0 0.0
    %2355 = vmatpush1.msra.mxu0 0.0
    %2356 = vmatprep.subr.mxu0 0.0
    %2357 = vmatpush1.msra.mxu0 0.0
    %2358 = vmatprep.subr.mxu0 0.0
    %2359 = vmatpush1.msra.mxu0 0.0
    %2360 = vmatprep.subr.mxu0 0.0
    %2361 = vmatpush1.msra.mxu0 0.0
    %2362 = vmatprep.subr.mxu0 0.0
    %2363 = vmatpush1.msra.mxu0 0.0
    %2364 = vmatprep.subr.mxu0 0.0
    %2365 = vmatpush1.msra.mxu0 0.0
    %2366 = vmatprep.subr.mxu0 0.0
    %2367 = vmatpush1.msra.mxu0 0.0
    %2368 = vmatprep.subr.mxu0 0.0
    %2369 = vmatpush1.msra.mxu0 0.0
    %2370 = vmatprep.subr.mxu0 0.0
    %2371 = vmatpush1.msra.mxu0 0.0
    %2372 = vmatprep.subr.mxu0 0.0
    %2373 = vmatpush1.msra.mxu0 0.0
    %2374 = vmatprep.subr.mxu0 0.0
    %2375 = vmatpush1.msra.mxu0 0.0
    %2376 = vmatprep.subr.mxu0 0.0
    %2377 = vmatpush1.msra.mxu0 0.0
    %2378 = vmatprep.subr.mxu0 0.0
    %2379 = vmatpush1.msra.mxu0 0.0
    %2380 = vmatprep.subr.mxu0 0.0
    %2381 = vmatpush1.msra.mxu0 0.0
    %2382 = vmatprep.subr.mxu0 0.0
    %2383 = vmatpush1.msra.mxu0 0.0
    %2384 = vmatprep.subr.mxu0 0.0
    %2385 = vmatpush1.msra.mxu0 0.0
    %2386 = vmatprep.subr.mxu0 0.0
    %2387 = vmatpush1.msra.mxu0 0.0
    %2388 = vmatprep.subr.mxu0 0.0
    %2389 = vmatpush1.msra.mxu0 0.0
    %2390 = vmatprep.subr.mxu0 0.0
    %2391 = vmatpush1.msra.mxu0 0.0
    %2392 = vmatprep.subr.mxu0 0.0
    %2393 = vmatpush1.msra.mxu0 0.0
    %2394 = vmatprep.subr.mxu0 0.0
    %2395 = vmatpush1.msra.mxu0 0.0
    %2396 = vmatprep.mubr.f32.mxu0 0.0
    %v2397 = vand.u32 %v2207, 4294901760
    %2398 = vmatmul.mubr.f32.gmra.mrb[0].mxu0 %v2397
    %v2399 = vpop.f32.mrb[0].mxu0
    %v2400 = vadd.f32 %v2289, %v2399
    %v2401 = vpop.f32.mrb[0].mxu0
    %2402 = vdwg.mxu0
    %2403 = vmatprep.subr.mxu0 0.0
    %v2404 = vand.u32 %v16, 4294901760
    %v2405 = vsub.f32 %v16, %v2404
    %2406 = vmatpush1.msra.mxu0 %v2405
    %2407 = vmatprep.subr.mxu0 0.0
    %v2408 = vand.u32 %v17, 4294901760
    %v2409 = vsub.f32 %v17, %v2408
    %2410 = vmatpush1.msra.mxu0 %v2409
    %2411 = vmatprep.subr.mxu0 0.0
    %v2412 = vand.u32 %v18, 4294901760
    %v2413 = vsub.f32 %v18, %v2412
    %2414 = vmatpush1.msra.mxu0 %v2413
    %2415 = vmatprep.subr.mxu0 0.0
    %v2416 = vand.u32 %v19, 4294901760
    %v2417 = vsub.f32 %v19, %v2416
    %2418 = vmatpush1.msra.mxu0 %v2417
    %2419 = vmatprep.subr.mxu0 0.0
    %v2420 = vand.u32 %v20, 4294901760
    %v2421 = vsub.f32 %v20, %v2420
    %2422 = vmatpush1.msra.mxu0 %v2421
    %2423 = vmatprep.subr.mxu0 0.0
    %v2424 = vand.u32 %v21, 4294901760
    %v2425 = vsub.f32 %v21, %v2424
    %2426 = vmatpush1.msra.mxu0 %v2425
    %2427 = vmatprep.subr.mxu0 0.0
    %v2428 = vand.u32 %v22, 4294901760
    %v2429 = vsub.f32 %v22, %v2428
    %2430 = vmatpush1.msra.mxu0 %v2429
    %2431 = vmatprep.subr.mxu0 0.0
    %v2432 = vand.u32 %v23, 4294901760
    %v2433 = vsub.f32 %v23, %v2432
    %2434 = vmatpush1.msra.mxu0 %v2433
    %2435 = vmatprep.subr.mxu0 0.0
    %2436 = vmatpush1.msra.mxu0 0.0
    %2437 = vmatprep.subr.mxu0 0.0
    %2438 = vmatpush1.msra.mxu0 0.0
    %2439 = vmatprep.subr.mxu0 0.0
    %2440 = vmatpush1.msra.mxu0 0.0
    %2441 = vmatprep.subr.mxu0 0.0
    %2442 = vmatpush1.msra.mxu0 0.0
    %2443 = vmatprep.subr.mxu0 0.0
    %2444 = vmatpush1.msra.mxu0 0.0
    %2445 = vmatprep.subr.mxu0 0.0
    %2446 = vmatpush1.msra.mxu0 0.0
    %2447 = vmatprep.subr.mxu0 0.0
    %2448 = vmatpush1.msra.mxu0 0.0
    %2449 = vmatprep.subr.mxu0 0.0
    %2450 = vmatpush1.msra.mxu0 0.0
    %2451 = vmatprep.subr.mxu0 0.0
    %2452 = vmatpush1.msra.mxu0 0.0
    %2453 = vmatprep.subr.mxu0 0.0
    %2454 = vmatpush1.msra.mxu0 0.0
    %2455 = vmatprep.subr.mxu0 0.0
    %2456 = vmatpush1.msra.mxu0 0.0
    %2457 = vmatprep.subr.mxu0 0.0
    %2458 = vmatpush1.msra.mxu0 0.0
    %2459 = vmatprep.subr.mxu0 0.0
    %2460 = vmatpush1.msra.mxu0 0.0
    %2461 = vmatprep.subr.mxu0 0.0
    %2462 = vmatpush1.msra.mxu0 0.0
    %2463 = vmatprep.subr.mxu0 0.0
    %2464 = vmatpush1.msra.mxu0 0.0
    %2465 = vmatprep.subr.mxu0 0.0
    %2466 = vmatpush1.msra.mxu0 0.0
    %2467 = vmatprep.subr.mxu0 0.0
    %2468 = vmatpush1.msra.mxu0 0.0
    %2469 = vmatprep.subr.mxu0 0.0
    %2470 = vmatpush1.msra.mxu0 0.0
    %2471 = vmatprep.subr.mxu0 0.0
    %2472 = vmatpush1.msra.mxu0 0.0
    %2473 = vmatprep.subr.mxu0 0.0
    %2474 = vmatpush1.msra.mxu0 0.0
    %2475 = vmatprep.subr.mxu0 0.0
    %2476 = vmatpush1.msra.mxu0 0.0
    %2477 = vmatprep.subr.mxu0 0.0
    %2478 = vmatpush1.msra.mxu0 0.0
    %2479 = vmatprep.subr.mxu0 0.0
    %2480 = vmatpush1.msra.mxu0 0.0
    %2481 = vmatprep.subr.mxu0 0.0
    %2482 = vmatpush1.msra.mxu0 0.0
    %2483 = vmatprep.mubr.f32.mxu0 0.0
    %v2484 = vand.u32 %v2207, 4294901760
    %v2485 = vsub.f32 %v2207, %v2484
    %2486 = vmatmul.mubr.f32.gmra.mrb[0].mxu0 %v2485
    %v2487 = vpop.f32.mrb[0].mxu0
    %v2488 = vadd.f32 %v2400, %v2487
    %v2489 = vpop.f32.mrb[0].mxu0
    %2490 = vdwg.mxu0
    %2491 = vmatprep.subr.mxu0 0.0
    %v2492 = vand.u32 %v16, 4294901760
    %2493 = vmatpush1.msra.mxu0 %v2492
    %2494 = vmatprep.subr.mxu0 0.0
    %v2495 = vand.u32 %v17, 4294901760
    %2496 = vmatpush1.msra.mxu0 %v2495
    %2497 = vmatprep.subr.mxu0 0.0
    %v2498 = vand.u32 %v18, 4294901760
    %2499 = vmatpush1.msra.mxu0 %v2498
    %2500 = vmatprep.subr.mxu0 0.0
    %v2501 = vand.u32 %v19, 4294901760
    %2502 = vmatpush1.msra.mxu0 %v2501
    %2503 = vmatprep.subr.mxu0 0.0
    %v2504 = vand.u32 %v20, 4294901760
    %2505 = vmatpush1.msra.mxu0 %v2504
    %2506 = vmatprep.subr.mxu0 0.0
    %v2507 = vand.u32 %v21, 4294901760
    %2508 = vmatpush1.msra.mxu0 %v2507
    %2509 = vmatprep.subr.mxu0 0.0
    %v2510 = vand.u32 %v22, 4294901760
    %2511 = vmatpush1.msra.mxu0 %v2510
    %2512 = vmatprep.subr.mxu0 0.0
    %v2513 = vand.u32 %v23, 4294901760
    %2514 = vmatpush1.msra.mxu0 %v2513
    %2515 = vmatprep.subr.mxu0 0.0
    %2516 = vmatpush1.msra.mxu0 0.0
    %2517 = vmatprep.subr.mxu0 0.0
    %2518 = vmatpush1.msra.mxu0 0.0
    %2519 = vmatprep.subr.mxu0 0.0
    %2520 = vmatpush1.msra.mxu0 0.0
    %2521 = vmatprep.subr.mxu0 0.0
    %2522 = vmatpush1.msra.mxu0 0.0
    %2523 = vmatprep.subr.mxu0 0.0
    %2524 = vmatpush1.msra.mxu0 0.0
    %2525 = vmatprep.subr.mxu0 0.0
    %2526 = vmatpush1.msra.mxu0 0.0
    %2527 = vmatprep.subr.mxu0 0.0
    %2528 = vmatpush1.msra.mxu0 0.0
    %2529 = vmatprep.subr.mxu0 0.0
    %2530 = vmatpush1.msra.mxu0 0.0
    %2531 = vmatprep.subr.mxu0 0.0
    %2532 = vmatpush1.msra.mxu0 0.0
    %2533 = vmatprep.subr.mxu0 0.0
    %2534 = vmatpush1.msra.mxu0 0.0
    %2535 = vmatprep.subr.mxu0 0.0
    %2536 = vmatpush1.msra.mxu0 0.0
    %2537 = vmatprep.subr.mxu0 0.0
    %2538 = vmatpush1.msra.mxu0 0.0
    %2539 = vmatprep.subr.mxu0 0.0
    %2540 = vmatpush1.msra.mxu0 0.0
    %2541 = vmatprep.subr.mxu0 0.0
    %2542 = vmatpush1.msra.mxu0 0.0
    %2543 = vmatprep.subr.mxu0 0.0
    %2544 = vmatpush1.msra.mxu0 0.0
    %2545 = vmatprep.subr.mxu0 0.0
    %2546 = vmatpush1.msra.mxu0 0.0
    %2547 = vmatprep.subr.mxu0 0.0
    %2548 = vmatpush1.msra.mxu0 0.0
    %2549 = vmatprep.subr.mxu0 0.0
    %2550 = vmatpush1.msra.mxu0 0.0
    %2551 = vmatprep.subr.mxu0 0.0
    %2552 = vmatpush1.msra.mxu0 0.0
    %2553 = vmatprep.subr.mxu0 0.0
    %2554 = vmatpush1.msra.mxu0 0.0
    %2555 = vmatprep.subr.mxu0 0.0
    %2556 = vmatpush1.msra.mxu0 0.0
    %2557 = vmatprep.subr.mxu0 0.0
    %2558 = vmatpush1.msra.mxu0 0.0
    %2559 = vmatprep.subr.mxu0 0.0
    %2560 = vmatpush1.msra.mxu0 0.0
    %2561 = vmatprep.subr.mxu0 0.0
    %2562 = vmatpush1.msra.mxu0 0.0
    %2563 = vmatprep.mubr.f32.mxu0 0.0
    %v2564 = vand.u32 %v2207, 4294901760
    %v2565 = vsub.f32 %v2207, %v2564
    %v2566 = vand.u32 %v2565, 4294901760
    %2567 = vmatmul.mubr.f32.gmra.mrb[0].mxu0 %v2566
    %v2568 = vpop.f32.mrb[0].mxu0
    %v2569 = vadd.f32 %v2488, %v2568
    %v2570 = vpop.f32.mrb[0].mxu0
    %2571 = vdwg.mxu0
    %2572 = vmatprep.subr.mxu0 0.0
    %v2573 = vand.u32 %v16, 4294901760
    %v2574 = vsub.f32 %v16, %v2573
    %v2575 = vand.u32 %v2574, 4294901760
    %2576 = vmatpush1.msra.mxu0 %v2575
    %2577 = vmatprep.subr.mxu0 0.0
    %v2578 = vand.u32 %v17, 4294901760
    %v2579 = vsub.f32 %v17, %v2578
    %v2580 = vand.u32 %v2579, 4294901760
    %2581 = vmatpush1.msra.mxu0 %v2580
    %2582 = vmatprep.subr.mxu0 0.0
    %v2583 = vand.u32 %v18, 4294901760
    %v2584 = vsub.f32 %v18, %v2583
    %v2585 = vand.u32 %v2584, 4294901760
    %2586 = vmatpush1.msra.mxu0 %v2585
    %2587 = vmatprep.subr.mxu0 0.0
    %v2588 = vand.u32 %v19, 4294901760
    %v2589 = vsub.f32 %v19, %v2588
    %v2590 = vand.u32 %v2589, 4294901760
    %2591 = vmatpush1.msra.mxu0 %v2590
    %2592 = vmatprep.subr.mxu0 0.0
    %v2593 = vand.u32 %v20, 4294901760
    %v2594 = vsub.f32 %v20, %v2593
    %v2595 = vand.u32 %v2594, 4294901760
    %2596 = vmatpush1.msra.mxu0 %v2595
    %2597 = vmatprep.subr.mxu0 0.0
    %v2598 = vand.u32 %v21, 4294901760
    %v2599 = vsub.f32 %v21, %v2598
    %v2600 = vand.u32 %v2599, 4294901760
    %2601 = vmatpush1.msra.mxu0 %v2600
    %2602 = vmatprep.subr.mxu0 0.0
    %v2603 = vand.u32 %v22, 4294901760
    %v2604 = vsub.f32 %v22, %v2603
    %v2605 = vand.u32 %v2604, 4294901760
    %2606 = vmatpush1.msra.mxu0 %v2605
    %2607 = vmatprep.subr.mxu0 0.0
    %v2608 = vand.u32 %v23, 4294901760
    %v2609 = vsub.f32 %v23, %v2608
    %v2610 = vand.u32 %v2609, 4294901760
    %2611 = vmatpush1.msra.mxu0 %v2610
    %2612 = vmatprep.subr.mxu0 0.0
    %2613 = vmatpush1.msra.mxu0 0.0
    %2614 = vmatprep.subr.mxu0 0.0
    %2615 = vmatpush1.msra.mxu0 0.0
    %2616 = vmatprep.subr.mxu0 0.0
    %2617 = vmatpush1.msra.mxu0 0.0
    %2618 = vmatprep.subr.mxu0 0.0
    %2619 = vmatpush1.msra.mxu0 0.0
    %2620 = vmatprep.subr.mxu0 0.0
    %2621 = vmatpush1.msra.mxu0 0.0
    %2622 = vmatprep.subr.mxu0 0.0
    %2623 = vmatpush1.msra.mxu0 0.0
    %2624 = vmatprep.subr.mxu0 0.0
    %2625 = vmatpush1.msra.mxu0 0.0
    %2626 = vmatprep.subr.mxu0 0.0
    %2627 = vmatpush1.msra.mxu0 0.0
    %2628 = vmatprep.subr.mxu0 0.0
    %2629 = vmatpush1.msra.mxu0 0.0
    %2630 = vmatprep.subr.mxu0 0.0
    %2631 = vmatpush1.msra.mxu0 0.0
    %2632 = vmatprep.subr.mxu0 0.0
    %2633 = vmatpush1.msra.mxu0 0.0
    %2634 = vmatprep.subr.mxu0 0.0
    %2635 = vmatpush1.msra.mxu0 0.0
    %2636 = vmatprep.subr.mxu0 0.0
    %2637 = vmatpush1.msra.mxu0 0.0
    %2638 = vmatprep.subr.mxu0 0.0
    %2639 = vmatpush1.msra.mxu0 0.0
    %2640 = vmatprep.subr.mxu0 0.0
    %2641 = vmatpush1.msra.mxu0 0.0
    %2642 = vmatprep.subr.mxu0 0.0
    %2643 = vmatpush1.msra.mxu0 0.0
    %2644 = vmatprep.subr.mxu0 0.0
    %2645 = vmatpush1.msra.mxu0 0.0
    %2646 = vmatprep.subr.mxu0 0.0
    %2647 = vmatpush1.msra.mxu0 0.0
    %2648 = vmatprep.subr.mxu0 0.0
    %2649 = vmatpush1.msra.mxu0 0.0
    %2650 = vmatprep.subr.mxu0 0.0
    %2651 = vmatpush1.msra.mxu0 0.0
    %2652 = vmatprep.subr.mxu0 0.0
    %2653 = vmatpush1.msra.mxu0 0.0
    %2654 = vmatprep.subr.mxu0 0.0
    %2655 = vmatpush1.msra.mxu0 0.0
    %2656 = vmatprep.subr.mxu0 0.0
    %2657 = vmatpush1.msra.mxu0 0.0
    %2658 = vmatprep.subr.mxu0 0.0
    %2659 = vmatpush1.msra.mxu0 0.0
    %2660 = vmatprep.mubr.f32.mxu0 0.0
    %v2661 = vand.u32 %v2207, 4294901760
    %2662 = vmatmul.mubr.f32.gmra.mrb[0].mxu0 %v2661
    %v2663 = vpop.f32.mrb[0].mxu0
    %v2664 = vadd.f32 %v2569, %v2663
    %v2665 = vpop.f32.mrb[0].mxu0
    %2666 = vdwg.mxu0
    %2667 = vmatprep.subr.mxu0 0.0
    %v2668 = vand.u32 %v16, 4294901760
    %2669 = vmatpush1.msra.mxu0 %v2668
    %2670 = vmatprep.subr.mxu0 0.0
    %v2671 = vand.u32 %v17, 4294901760
    %2672 = vmatpush1.msra.mxu0 %v2671
    %2673 = vmatprep.subr.mxu0 0.0
    %v2674 = vand.u32 %v18, 4294901760
    %2675 = vmatpush1.msra.mxu0 %v2674
    %2676 = vmatprep.subr.mxu0 0.0
    %v2677 = vand.u32 %v19, 4294901760
    %2678 = vmatpush1.msra.mxu0 %v2677
    %2679 = vmatprep.subr.mxu0 0.0
    %v2680 = vand.u32 %v20, 4294901760
    %2681 = vmatpush1.msra.mxu0 %v2680
    %2682 = vmatprep.subr.mxu0 0.0
    %v2683 = vand.u32 %v21, 4294901760
    %2684 = vmatpush1.msra.mxu0 %v2683
    %2685 = vmatprep.subr.mxu0 0.0
    %v2686 = vand.u32 %v22, 4294901760
    %2687 = vmatpush1.msra.mxu0 %v2686
    %2688 = vmatprep.subr.mxu0 0.0
    %v2689 = vand.u32 %v23, 4294901760
    %2690 = vmatpush1.msra.mxu0 %v2689
    %2691 = vmatprep.subr.mxu0 0.0
    %2692 = vmatpush1.msra.mxu0 0.0
    %2693 = vmatprep.subr.mxu0 0.0
    %2694 = vmatpush1.msra.mxu0 0.0
    %2695 = vmatprep.subr.mxu0 0.0
    %2696 = vmatpush1.msra.mxu0 0.0
    %2697 = vmatprep.subr.mxu0 0.0
    %2698 = vmatpush1.msra.mxu0 0.0
    %2699 = vmatprep.subr.mxu0 0.0
    %2700 = vmatpush1.msra.mxu0 0.0
    %2701 = vmatprep.subr.mxu0 0.0
    %2702 = vmatpush1.msra.mxu0 0.0
    %2703 = vmatprep.subr.mxu0 0.0
    %2704 = vmatpush1.msra.mxu0 0.0
    %2705 = vmatprep.subr.mxu0 0.0
    %2706 = vmatpush1.msra.mxu0 0.0
    %2707 = vmatprep.subr.mxu0 0.0
    %2708 = vmatpush1.msra.mxu0 0.0
    %2709 = vmatprep.subr.mxu0 0.0
    %2710 = vmatpush1.msra.mxu0 0.0
    %2711 = vmatprep.subr.mxu0 0.0
    %2712 = vmatpush1.msra.mxu0 0.0
    %2713 = vmatprep.subr.mxu0 0.0
    %2714 = vmatpush1.msra.mxu0 0.0
    %2715 = vmatprep.subr.mxu0 0.0
    %2716 = vmatpush1.msra.mxu0 0.0
    %2717 = vmatprep.subr.mxu0 0.0
    %2718 = vmatpush1.msra.mxu0 0.0
    %2719 = vmatprep.subr.mxu0 0.0
    %2720 = vmatpush1.msra.mxu0 0.0
    %2721 = vmatprep.subr.mxu0 0.0
    %2722 = vmatpush1.msra.mxu0 0.0
    %2723 = vmatprep.subr.mxu0 0.0
    %2724 = vmatpush1.msra.mxu0 0.0
    %2725 = vmatprep.subr.mxu0 0.0
    %2726 = vmatpush1.msra.mxu0 0.0
    %2727 = vmatprep.subr.mxu0 0.0
    %2728 = vmatpush1.msra.mxu0 0.0
    %2729 = vmatprep.subr.mxu0 0.0
    %2730 = vmatpush1.msra.mxu0 0.0
    %2731 = vmatprep.subr.mxu0 0.0
    %2732 = vmatpush1.msra.mxu0 0.0
    %2733 = vmatprep.subr.mxu0 0.0
    %2734 = vmatpush1.msra.mxu0 0.0
    %2735 = vmatprep.subr.mxu0 0.0
    %2736 = vmatpush1.msra.mxu0 0.0
    %2737 = vmatprep.subr.mxu0 0.0
    %2738 = vmatpush1.msra.mxu0 0.0
    %2739 = vmatprep.mubr.f32.mxu0 0.0
    %v2740 = vand.u32 %v2207, 4294901760
    %2741 = vmatmul.mubr.f32.gmra.mrb[0].mxu0 %v2740
    %v2742 = vpop.f32.mrb[0].mxu0
    %v2743 = vadd.f32 %v2664, %v2742
    %v2744 = vpop.f32.mrb[0].mxu0
    %2745 = vdwg.mxu0
    %v2746 = vadd.f32 %v563, %v2743
    %v2747 = vtanh.pop %v2746
    %v2749 = vsel %vm567, %v2747, 0
    %2751 = vmatprep.subr.mxu0 0.0
    %v2752 = vand.u32 %v16, 4294901760
    %2753 = vmatpush1.msra.mxu0 %v2752
    %2754 = vmatprep.subr.mxu0 0.0
    %v2755 = vand.u32 %v17, 4294901760
    %2756 = vmatpush1.msra.mxu0 %v2755
    %2757 = vmatprep.subr.mxu0 0.0
    %v2758 = vand.u32 %v18, 4294901760
    %2759 = vmatpush1.msra.mxu0 %v2758
    %2760 = vmatprep.subr.mxu0 0.0
    %v2761 = vand.u32 %v19, 4294901760
    %2762 = vmatpush1.msra.mxu0 %v2761
    %2763 = vmatprep.subr.mxu0 0.0
    %v2764 = vand.u32 %v20, 4294901760
    %2765 = vmatpush1.msra.mxu0 %v2764
    %2766 = vmatprep.subr.mxu0 0.0
    %v2767 = vand.u32 %v21, 4294901760
    %2768 = vmatpush1.msra.mxu0 %v2767
    %2769 = vmatprep.subr.mxu0 0.0
    %v2770 = vand.u32 %v22, 4294901760
    %2771 = vmatpush1.msra.mxu0 %v2770
    %2772 = vmatprep.subr.mxu0 0.0
    %v2773 = vand.u32 %v23, 4294901760
    %2774 = vmatpush1.msra.mxu0 %v2773
    %2775 = vmatprep.subr.mxu0 0.0
    %2776 = vmatpush1.msra.mxu0 0.0
    %2777 = vmatprep.subr.mxu0 0.0
    %2778 = vmatpush1.msra.mxu0 0.0
    %2779 = vmatprep.subr.mxu0 0.0
    %2780 = vmatpush1.msra.mxu0 0.0
    %2781 = vmatprep.subr.mxu0 0.0
    %2782 = vmatpush1.msra.mxu0 0.0
    %2783 = vmatprep.subr.mxu0 0.0
    %2784 = vmatpush1.msra.mxu0 0.0
    %2785 = vmatprep.subr.mxu0 0.0
    %2786 = vmatpush1.msra.mxu0 0.0
    %2787 = vmatprep.subr.mxu0 0.0
    %2788 = vmatpush1.msra.mxu0 0.0
    %2789 = vmatprep.subr.mxu0 0.0
    %2790 = vmatpush1.msra.mxu0 0.0
    %2791 = vmatprep.subr.mxu0 0.0
    %2792 = vmatpush1.msra.mxu0 0.0
    %2793 = vmatprep.subr.mxu0 0.0
    %2794 = vmatpush1.msra.mxu0 0.0
    %2795 = vmatprep.subr.mxu0 0.0
    %2796 = vmatpush1.msra.mxu0 0.0
    %2797 = vmatprep.subr.mxu0 0.0
    %2798 = vmatpush1.msra.mxu0 0.0
    %2799 = vmatprep.subr.mxu0 0.0
    %2800 = vmatpush1.msra.mxu0 0.0
    %2801 = vmatprep.subr.mxu0 0.0
    %2802 = vmatpush1.msra.mxu0 0.0
    %2803 = vmatprep.subr.mxu0 0.0
    %2804 = vmatpush1.msra.mxu0 0.0
    %2805 = vmatprep.subr.mxu0 0.0
    %2806 = vmatpush1.msra.mxu0 0.0
    %2807 = vmatprep.subr.mxu0 0.0
    %2808 = vmatpush1.msra.mxu0 0.0
    %2809 = vmatprep.subr.mxu0 0.0
    %2810 = vmatpush1.msra.mxu0 0.0
    %2811 = vmatprep.subr.mxu0 0.0
    %2812 = vmatpush1.msra.mxu0 0.0
    %2813 = vmatprep.subr.mxu0 0.0
    %2814 = vmatpush1.msra.mxu0 0.0
    %2815 = vmatprep.subr.mxu0 0.0
    %2816 = vmatpush1.msra.mxu0 0.0
    %2817 = vmatprep.subr.mxu0 0.0
    %2818 = vmatpush1.msra.mxu0 0.0
    %2819 = vmatprep.subr.mxu0 0.0
    %2820 = vmatpush1.msra.mxu0 0.0
    %2821 = vmatprep.subr.mxu0 0.0
    %2822 = vmatpush1.msra.mxu0 0.0
    %2823 = vmatprep.mubr.f32.mxu0 0.0
    %v2824 = vand.u32 %v2749, 4294901760
    %v2825 = vsub.f32 %v2749, %v2824
    %v2826 = vand.u32 %v2825, 4294901760
    %v2827 = vsub.f32 %v2825, %v2826
    %v2828 = vand.u32 %v2827, 4294901760
    %2829 = vmatmul.mubr.f32.gmra.mrb[0].mxu0 %v2828
    %v2830 = vpop.f32.mrb[0].mxu0
    %v2831 = vadd.f32 0.0, %v2830
    %v2832 = vpop.f32.mrb[0].mxu0
    %2833 = vdwg.mxu0
    %2834 = vmatprep.subr.mxu0 0.0
    %v2835 = vand.u32 %v16, 4294901760
    %v2836 = vsub.f32 %v16, %v2835
    %v2837 = vand.u32 %v2836, 4294901760
    %v2838 = vsub.f32 %v2836, %v2837
    %v2839 = vand.u32 %v2838, 4294901760
    %2840 = vmatpush1.msra.mxu0 %v2839
    %2841 = vmatprep.subr.mxu0 0.0
    %v2842 = vand.u32 %v17, 4294901760
    %v2843 = vsub.f32 %v17, %v2842
    %v2844 = vand.u32 %v2843, 4294901760
    %v2845 = vsub.f32 %v2843, %v2844
    %v2846 = vand.u32 %v2845, 4294901760
    %2847 = vmatpush1.msra.mxu0 %v2846
    %2848 = vmatprep.subr.mxu0 0.0
    %v2849 = vand.u32 %v18, 4294901760
    %v2850 = vsub.f32 %v18, %v2849
    %v2851 = vand.u32 %v2850, 4294901760
    %v2852 = vsub.f32 %v2850, %v2851
    %v2853 = vand.u32 %v2852, 4294901760
    %2854 = vmatpush1.msra.mxu0 %v2853
    %2855 = vmatprep.subr.mxu0 0.0
    %v2856 = vand.u32 %v19, 4294901760
    %v2857 = vsub.f32 %v19, %v2856
    %v2858 = vand.u32 %v2857, 4294901760
    %v2859 = vsub.f32 %v2857, %v2858
    %v2860 = vand.u32 %v2859, 4294901760
    %2861 = vmatpush1.msra.mxu0 %v2860
    %2862 = vmatprep.subr.mxu0 0.0
    %v2863 = vand.u32 %v20, 4294901760
    %v2864 = vsub.f32 %v20, %v2863
    %v2865 = vand.u32 %v2864, 4294901760
    %v2866 = vsub.f32 %v2864, %v2865
    %v2867 = vand.u32 %v2866, 4294901760
    %2868 = vmatpush1.msra.mxu0 %v2867
    %2869 = vmatprep.subr.mxu0 0.0
    %v2870 = vand.u32 %v21, 4294901760
    %v2871 = vsub.f32 %v21, %v2870
    %v2872 = vand.u32 %v2871, 4294901760
    %v2873 = vsub.f32 %v2871, %v2872
    %v2874 = vand.u32 %v2873, 4294901760
    %2875 = vmatpush1.msra.mxu0 %v2874
    %2876 = vmatprep.subr.mxu0 0.0
    %v2877 = vand.u32 %v22, 4294901760
    %v2878 = vsub.f32 %v22, %v2877
    %v2879 = vand.u32 %v2878, 4294901760
    %v2880 = vsub.f32 %v2878, %v2879
    %v2881 = vand.u32 %v2880, 4294901760
    %2882 = vmatpush1.msra.mxu0 %v2881
    %2883 = vmatprep.subr.mxu0 0.0
    %v2884 = vand.u32 %v23, 4294901760
    %v2885 = vsub.f32 %v23, %v2884
    %v2886 = vand.u32 %v2885, 4294901760
    %v2887 = vsub.f32 %v2885, %v2886
    %v2888 = vand.u32 %v2887, 4294901760
    %2889 = vmatpush1.msra.mxu0 %v2888
    %2890 = vmatprep.subr.mxu0 0.0
    %2891 = vmatpush1.msra.mxu0 0.0
    %2892 = vmatprep.subr.mxu0 0.0
    %2893 = vmatpush1.msra.mxu0 0.0
    %2894 = vmatprep.subr.mxu0 0.0
    %2895 = vmatpush1.msra.mxu0 0.0
    %2896 = vmatprep.subr.mxu0 0.0
    %2897 = vmatpush1.msra.mxu0 0.0
    %2898 = vmatprep.subr.mxu0 0.0
    %2899 = vmatpush1.msra.mxu0 0.0
    %2900 = vmatprep.subr.mxu0 0.0
    %2901 = vmatpush1.msra.mxu0 0.0
    %2902 = vmatprep.subr.mxu0 0.0
    %2903 = vmatpush1.msra.mxu0 0.0
    %2904 = vmatprep.subr.mxu0 0.0
    %2905 = vmatpush1.msra.mxu0 0.0
    %2906 = vmatprep.subr.mxu0 0.0
    %2907 = vmatpush1.msra.mxu0 0.0
    %2908 = vmatprep.subr.mxu0 0.0
    %2909 = vmatpush1.msra.mxu0 0.0
    %2910 = vmatprep.subr.mxu0 0.0
    %2911 = vmatpush1.msra.mxu0 0.0
    %2912 = vmatprep.subr.mxu0 0.0
    %2913 = vmatpush1.msra.mxu0 0.0
    %2914 = vmatprep.subr.mxu0 0.0
    %2915 = vmatpush1.msra.mxu0 0.0
    %2916 = vmatprep.subr.mxu0 0.0
    %2917 = vmatpush1.msra.mxu0 0.0
    %2918 = vmatprep.subr.mxu0 0.0
    %2919 = vmatpush1.msra.mxu0 0.0
    %2920 = vmatprep.subr.mxu0 0.0
    %2921 = vmatpush1.msra.mxu0 0.0
    %2922 = vmatprep.subr.mxu0 0.0
    %2923 = vmatpush1.msra.mxu0 0.0
    %2924 = vmatprep.subr.mxu0 0.0
    %2925 = vmatpush1.msra.mxu0 0.0
    %2926 = vmatprep.subr.mxu0 0.0
    %2927 = vmatpush1.msra.mxu0 0.0
    %2928 = vmatprep.subr.mxu0 0.0
    %2929 = vmatpush1.msra.mxu0 0.0
    %2930 = vmatprep.subr.mxu0 0.0
    %2931 = vmatpush1.msra.mxu0 0.0
    %2932 = vmatprep.subr.mxu0 0.0
    %2933 = vmatpush1.msra.mxu0 0.0
    %2934 = vmatprep.subr.mxu0 0.0
    %2935 = vmatpush1.msra.mxu0 0.0
    %2936 = vmatprep.subr.mxu0 0.0
    %2937 = vmatpush1.msra.mxu0 0.0
    %2938 = vmatprep.mubr.f32.mxu0 0.0
    %v2939 = vand.u32 %v2749, 4294901760
    %2940 = vmatmul.mubr.f32.gmra.mrb[0].mxu0 %v2939
    %v2941 = vpop.f32.mrb[0].mxu0
    %v2942 = vadd.f32 %v2831, %v2941
    %v2943 = vpop.f32.mrb[0].mxu0
    %2944 = vdwg.mxu0
    %2945 = vmatprep.subr.mxu0 0.0
    %v2946 = vand.u32 %v16, 4294901760
    %v2947 = vsub.f32 %v16, %v2946
    %2948 = vmatpush1.msra.mxu0 %v2947
    %2949 = vmatprep.subr.mxu0 0.0
    %v2950 = vand.u32 %v17, 4294901760
    %v2951 = vsub.f32 %v17, %v2950
    %2952 = vmatpush1.msra.mxu0 %v2951
    %2953 = vmatprep.subr.mxu0 0.0
    %v2954 = vand.u32 %v18, 4294901760
    %v2955 = vsub.f32 %v18, %v2954
    %2956 = vmatpush1.msra.mxu0 %v2955
    %2957 = vmatprep.subr.mxu0 0.0
    %v2958 = vand.u32 %v19, 4294901760
    %v2959 = vsub.f32 %v19, %v2958
    %2960 = vmatpush1.msra.mxu0 %v2959
    %2961 = vmatprep.subr.mxu0 0.0
    %v2962 = vand.u32 %v20, 4294901760
    %v2963 = vsub.f32 %v20, %v2962
    %2964 = vmatpush1.msra.mxu0 %v2963
    %2965 = vmatprep.subr.mxu0 0.0
    %v2966 = vand.u32 %v21, 4294901760
    %v2967 = vsub.f32 %v21, %v2966
    %2968 = vmatpush1.msra.mxu0 %v2967
    %2969 = vmatprep.subr.mxu0 0.0
    %v2970 = vand.u32 %v22, 4294901760
    %v2971 = vsub.f32 %v22, %v2970
    %2972 = vmatpush1.msra.mxu0 %v2971
    %2973 = vmatprep.subr.mxu0 0.0
    %v2974 = vand.u32 %v23, 4294901760
    %v2975 = vsub.f32 %v23, %v2974
    %2976 = vmatpush1.msra.mxu0 %v2975
    %2977 = vmatprep.subr.mxu0 0.0
    %2978 = vmatpush1.msra.mxu0 0.0
    %2979 = vmatprep.subr.mxu0 0.0
    %2980 = vmatpush1.msra.mxu0 0.0
    %2981 = vmatprep.subr.mxu0 0.0
    %2982 = vmatpush1.msra.mxu0 0.0
    %2983 = vmatprep.subr.mxu0 0.0
    %2984 = vmatpush1.msra.mxu0 0.0
    %2985 = vmatprep.subr.mxu0 0.0
    %2986 = vmatpush1.msra.mxu0 0.0
    %2987 = vmatprep.subr.mxu0 0.0
    %2988 = vmatpush1.msra.mxu0 0.0
    %2989 = vmatprep.subr.mxu0 0.0
    %2990 = vmatpush1.msra.mxu0 0.0
    %2991 = vmatprep.subr.mxu0 0.0
    %2992 = vmatpush1.msra.mxu0 0.0
    %2993 = vmatprep.subr.mxu0 0.0
    %2994 = vmatpush1.msra.mxu0 0.0
    %2995 = vmatprep.subr.mxu0 0.0
    %2996 = vmatpush1.msra.mxu0 0.0
    %2997 = vmatprep.subr.mxu0 0.0
    %2998 = vmatpush1.msra.mxu0 0.0
    %2999 = vmatprep.subr.mxu0 0.0
    %3000 = vmatpush1.msra.mxu0 0.0
    %3001 = vmatprep.subr.mxu0 0.0
    %3002 = vmatpush1.msra.mxu0 0.0
    %3003 = vmatprep.subr.mxu0 0.0
    %3004 = vmatpush1.msra.mxu0 0.0
    %3005 = vmatprep.subr.mxu0 0.0
    %3006 = vmatpush1.msra.mxu0 0.0
    %3007 = vmatprep.subr.mxu0 0.0
    %3008 = vmatpush1.msra.mxu0 0.0
    %3009 = vmatprep.subr.mxu0 0.0
    %3010 = vmatpush1.msra.mxu0 0.0
    %3011 = vmatprep.subr.mxu0 0.0
    %3012 = vmatpush1.msra.mxu0 0.0
    %3013 = vmatprep.subr.mxu0 0.0
    %3014 = vmatpush1.msra.mxu0 0.0
    %3015 = vmatprep.subr.mxu0 0.0
    %3016 = vmatpush1.msra.mxu0 0.0
    %3017 = vmatprep.subr.mxu0 0.0
    %3018 = vmatpush1.msra.mxu0 0.0
    %3019 = vmatprep.subr.mxu0 0.0
    %3020 = vmatpush1.msra.mxu0 0.0
    %3021 = vmatprep.subr.mxu0 0.0
    %3022 = vmatpush1.msra.mxu0 0.0
    %3023 = vmatprep.subr.mxu0 0.0
    %3024 = vmatpush1.msra.mxu0 0.0
    %3025 = vmatprep.mubr.f32.mxu0 0.0
    %v3026 = vand.u32 %v2749, 4294901760
    %v3027 = vsub.f32 %v2749, %v3026
    %3028 = vmatmul.mubr.f32.gmra.mrb[0].mxu0 %v3027
    %v3029 = vpop.f32.mrb[0].mxu0
    %v3030 = vadd.f32 %v2942, %v3029
    %v3031 = vpop.f32.mrb[0].mxu0
    %3032 = vdwg.mxu0
    %3033 = vmatprep.subr.mxu0 0.0
    %v3034 = vand.u32 %v16, 4294901760
    %3035 = vmatpush1.msra.mxu0 %v3034
    %3036 = vmatprep.subr.mxu0 0.0
    %v3037 = vand.u32 %v17, 4294901760
    %3038 = vmatpush1.msra.mxu0 %v3037
    %3039 = vmatprep.subr.mxu0 0.0
    %v3040 = vand.u32 %v18, 4294901760
    %3041 = vmatpush1.msra.mxu0 %v3040
    %3042 = vmatprep.subr.mxu0 0.0
    %v3043 = vand.u32 %v19, 4294901760
    %3044 = vmatpush1.msra.mxu0 %v3043
    %3045 = vmatprep.subr.mxu0 0.0
    %v3046 = vand.u32 %v20, 4294901760
    %3047 = vmatpush1.msra.mxu0 %v3046
    %3048 = vmatprep.subr.mxu0 0.0
    %v3049 = vand.u32 %v21, 4294901760
    %3050 = vmatpush1.msra.mxu0 %v3049
    %3051 = vmatprep.subr.mxu0 0.0
    %v3052 = vand.u32 %v22, 4294901760
    %3053 = vmatpush1.msra.mxu0 %v3052
    %3054 = vmatprep.subr.mxu0 0.0
    %v3055 = vand.u32 %v23, 4294901760
    %3056 = vmatpush1.msra.mxu0 %v3055
    %3057 = vmatprep.subr.mxu0 0.0
    %3058 = vmatpush1.msra.mxu0 0.0
    %3059 = vmatprep.subr.mxu0 0.0
    %3060 = vmatpush1.msra.mxu0 0.0
    %3061 = vmatprep.subr.mxu0 0.0
    %3062 = vmatpush1.msra.mxu0 0.0
    %3063 = vmatprep.subr.mxu0 0.0
    %3064 = vmatpush1.msra.mxu0 0.0
    %3065 = vmatprep.subr.mxu0 0.0
    %3066 = vmatpush1.msra.mxu0 0.0
    %3067 = vmatprep.subr.mxu0 0.0
    %3068 = vmatpush1.msra.mxu0 0.0
    %3069 = vmatprep.subr.mxu0 0.0
    %3070 = vmatpush1.msra.mxu0 0.0
    %3071 = vmatprep.subr.mxu0 0.0
    %3072 = vmatpush1.msra.mxu0 0.0
    %3073 = vmatprep.subr.mxu0 0.0
    %3074 = vmatpush1.msra.mxu0 0.0
    %3075 = vmatprep.subr.mxu0 0.0
    %3076 = vmatpush1.msra.mxu0 0.0
    %3077 = vmatprep.subr.mxu0 0.0
    %3078 = vmatpush1.msra.mxu0 0.0
    %3079 = vmatprep.subr.mxu0 0.0
    %3080 = vmatpush1.msra.mxu0 0.0
    %3081 = vmatprep.subr.mxu0 0.0
    %3082 = vmatpush1.msra.mxu0 0.0
    %3083 = vmatprep.subr.mxu0 0.0
    %3084 = vmatpush1.msra.mxu0 0.0
    %3085 = vmatprep.subr.mxu0 0.0
    %3086 = vmatpush1.msra.mxu0 0.0
    %3087 = vmatprep.subr.mxu0 0.0
    %3088 = vmatpush1.msra.mxu0 0.0
    %3089 = vmatprep.subr.mxu0 0.0
    %3090 = vmatpush1.msra.mxu0 0.0
    %3091 = vmatprep.subr.mxu0 0.0
    %3092 = vmatpush1.msra.mxu0 0.0
    %3093 = vmatprep.subr.mxu0 0.0
    %3094 = vmatpush1.msra.mxu0 0.0
    %3095 = vmatprep.subr.mxu0 0.0
    %3096 = vmatpush1.msra.mxu0 0.0
    %3097 = vmatprep.subr.mxu0 0.0
    %3098 = vmatpush1.msra.mxu0 0.0
    %3099 = vmatprep.subr.mxu0 0.0
    %3100 = vmatpush1.msra.mxu0 0.0
    %3101 = vmatprep.subr.mxu0 0.0
    %3102 = vmatpush1.msra.mxu0 0.0
    %3103 = vmatprep.subr.mxu0 0.0
    %3104 = vmatpush1.msra.mxu0 0.0
    %3105 = vmatprep.mubr.f32.mxu0 0.0
    %v3106 = vand.u32 %v2749, 4294901760
    %v3107 = vsub.f32 %v2749, %v3106
    %v3108 = vand.u32 %v3107, 4294901760
    %3109 = vmatmul.mubr.f32.gmra.mrb[0].mxu0 %v3108
    %v3110 = vpop.f32.mrb[0].mxu0
    %v3111 = vadd.f32 %v3030, %v3110
    %v3112 = vpop.f32.mrb[0].mxu0
    %3113 = vdwg.mxu0
    %3114 = vmatprep.subr.mxu0 0.0
    %v3115 = vand.u32 %v16, 4294901760
    %v3116 = vsub.f32 %v16, %v3115
    %v3117 = vand.u32 %v3116, 4294901760
    %3118 = vmatpush1.msra.mxu0 %v3117
    %3119 = vmatprep.subr.mxu0 0.0
    %v3120 = vand.u32 %v17, 4294901760
    %v3121 = vsub.f32 %v17, %v3120
    %v3122 = vand.u32 %v3121, 4294901760
    %3123 = vmatpush1.msra.mxu0 %v3122
    %3124 = vmatprep.subr.mxu0 0.0
    %v3125 = vand.u32 %v18, 4294901760
    %v3126 = vsub.f32 %v18, %v3125
    %v3127 = vand.u32 %v3126, 4294901760
    %3128 = vmatpush1.msra.mxu0 %v3127
    %3129 = vmatprep.subr.mxu0 0.0
    %v3130 = vand.u32 %v19, 4294901760
    %v3131 = vsub.f32 %v19, %v3130
    %v3132 = vand.u32 %v3131, 4294901760
    %3133 = vmatpush1.msra.mxu0 %v3132
    %3134 = vmatprep.subr.mxu0 0.0
    %v3135 = vand.u32 %v20, 4294901760
    %v3136 = vsub.f32 %v20, %v3135
    %v3137 = vand.u32 %v3136, 4294901760
    %3138 = vmatpush1.msra.mxu0 %v3137
    %3139 = vmatprep.subr.mxu0 0.0
    %v3140 = vand.u32 %v21, 4294901760
    %v3141 = vsub.f32 %v21, %v3140
    %v3142 = vand.u32 %v3141, 4294901760
    %3143 = vmatpush1.msra.mxu0 %v3142
    %3144 = vmatprep.subr.mxu0 0.0
    %v3145 = vand.u32 %v22, 4294901760
    %v3146 = vsub.f32 %v22, %v3145
    %v3147 = vand.u32 %v3146, 4294901760
    %3148 = vmatpush1.msra.mxu0 %v3147
    %3149 = vmatprep.subr.mxu0 0.0
    %v3150 = vand.u32 %v23, 4294901760
    %v3151 = vsub.f32 %v23, %v3150
    %v3152 = vand.u32 %v3151, 4294901760
    %3153 = vmatpush1.msra.mxu0 %v3152
    %3154 = vmatprep.subr.mxu0 0.0
    %3155 = vmatpush1.msra.mxu0 0.0
    %3156 = vmatprep.subr.mxu0 0.0
    %3157 = vmatpush1.msra.mxu0 0.0
    %3158 = vmatprep.subr.mxu0 0.0
    %3159 = vmatpush1.msra.mxu0 0.0
    %3160 = vmatprep.subr.mxu0 0.0
    %3161 = vmatpush1.msra.mxu0 0.0
    %3162 = vmatprep.subr.mxu0 0.0
    %3163 = vmatpush1.msra.mxu0 0.0
    %3164 = vmatprep.subr.mxu0 0.0
    %3165 = vmatpush1.msra.mxu0 0.0
    %3166 = vmatprep.subr.mxu0 0.0
    %3167 = vmatpush1.msra.mxu0 0.0
    %3168 = vmatprep.subr.mxu0 0.0
    %3169 = vmatpush1.msra.mxu0 0.0
    %3170 = vmatprep.subr.mxu0 0.0
    %3171 = vmatpush1.msra.mxu0 0.0
    %3172 = vmatprep.subr.mxu0 0.0
    %3173 = vmatpush1.msra.mxu0 0.0
    %3174 = vmatprep.subr.mxu0 0.0
    %3175 = vmatpush1.msra.mxu0 0.0
    %3176 = vmatprep.subr.mxu0 0.0
    %3177 = vmatpush1.msra.mxu0 0.0
    %3178 = vmatprep.subr.mxu0 0.0
    %3179 = vmatpush1.msra.mxu0 0.0
    %3180 = vmatprep.subr.mxu0 0.0
    %3181 = vmatpush1.msra.mxu0 0.0
    %3182 = vmatprep.subr.mxu0 0.0
    %3183 = vmatpush1.msra.mxu0 0.0
    %3184 = vmatprep.subr.mxu0 0.0
    %3185 = vmatpush1.msra.mxu0 0.0
    %3186 = vmatprep.subr.mxu0 0.0
    %3187 = vmatpush1.msra.mxu0 0.0
    %3188 = vmatprep.subr.mxu0 0.0
    %3189 = vmatpush1.msra.mxu0 0.0
    %3190 = vmatprep.subr.mxu0 0.0
    %3191 = vmatpush1.msra.mxu0 0.0
    %3192 = vmatprep.subr.mxu0 0.0
    %3193 = vmatpush1.msra.mxu0 0.0
    %3194 = vmatprep.subr.mxu0 0.0
    %3195 = vmatpush1.msra.mxu0 0.0
    %3196 = vmatprep.subr.mxu0 0.0
    %3197 = vmatpush1.msra.mxu0 0.0
    %3198 = vmatprep.subr.mxu0 0.0
    %3199 = vmatpush1.msra.mxu0 0.0
    %3200 = vmatprep.subr.mxu0 0.0
    %3201 = vmatpush1.msra.mxu0 0.0
    %3202 = vmatprep.mubr.f32.mxu0 0.0
    %v3203 = vand.u32 %v2749, 4294901760
    %3204 = vmatmul.mubr.f32.gmra.mrb[0].mxu0 %v3203
    %v3205 = vpop.f32.mrb[0].mxu0
    %v3206 = vadd.f32 %v3111, %v3205
    %v3207 = vpop.f32.mrb[0].mxu0
    %3208 = vdwg.mxu0
    %3209 = vmatprep.subr.mxu0 0.0
    %v3210 = vand.u32 %v16, 4294901760
    %3211 = vmatpush1.msra.mxu0 %v3210
    %3212 = vmatprep.subr.mxu0 0.0
    %v3213 = vand.u32 %v17, 4294901760
    %3214 = vmatpush1.msra.mxu0 %v3213
    %3215 = vmatprep.subr.mxu0 0.0
    %v3216 = vand.u32 %v18, 4294901760
    %3217 = vmatpush1.msra.mxu0 %v3216
    %3218 = vmatprep.subr.mxu0 0.0
    %v3219 = vand.u32 %v19, 4294901760
    %3220 = vmatpush1.msra.mxu0 %v3219
    %3221 = vmatprep.subr.mxu0 0.0
    %v3222 = vand.u32 %v20, 4294901760
    %3223 = vmatpush1.msra.mxu0 %v3222
    %3224 = vmatprep.subr.mxu0 0.0
    %v3225 = vand.u32 %v21, 4294901760
    %3226 = vmatpush1.msra.mxu0 %v3225
    %3227 = vmatprep.subr.mxu0 0.0
    %v3228 = vand.u32 %v22, 4294901760
    %3229 = vmatpush1.msra.mxu0 %v3228
    %3230 = vmatprep.subr.mxu0 0.0
    %v3231 = vand.u32 %v23, 4294901760
    %3232 = vmatpush1.msra.mxu0 %v3231
    %3233 = vmatprep.subr.mxu0 0.0
    %3234 = vmatpush1.msra.mxu0 0.0
    %3235 = vmatprep.subr.mxu0 0.0
    %3236 = vmatpush1.msra.mxu0 0.0
    %3237 = vmatprep.subr.mxu0 0.0
    %3238 = vmatpush1.msra.mxu0 0.0
    %3239 = vmatprep.subr.mxu0 0.0
    %3240 = vmatpush1.msra.mxu0 0.0
    %3241 = vmatprep.subr.mxu0 0.0
    %3242 = vmatpush1.msra.mxu0 0.0
    %3243 = vmatprep.subr.mxu0 0.0
    %3244 = vmatpush1.msra.mxu0 0.0
    %3245 = vmatprep.subr.mxu0 0.0
    %3246 = vmatpush1.msra.mxu0 0.0
    %3247 = vmatprep.subr.mxu0 0.0
    %3248 = vmatpush1.msra.mxu0 0.0
    %3249 = vmatprep.subr.mxu0 0.0
    %3250 = vmatpush1.msra.mxu0 0.0
    %3251 = vmatprep.subr.mxu0 0.0
    %3252 = vmatpush1.msra.mxu0 0.0
    %3253 = vmatprep.subr.mxu0 0.0
    %3254 = vmatpush1.msra.mxu0 0.0
    %3255 = vmatprep.subr.mxu0 0.0
    %3256 = vmatpush1.msra.mxu0 0.0
    %3257 = vmatprep.subr.mxu0 0.0
    %3258 = vmatpush1.msra.mxu0 0.0
    %3259 = vmatprep.subr.mxu0 0.0
    %3260 = vmatpush1.msra.mxu0 0.0
    %3261 = vmatprep.subr.mxu0 0.0
    %3262 = vmatpush1.msra.mxu0 0.0
    %3263 = vmatprep.subr.mxu0 0.0
    %3264 = vmatpush1.msra.mxu0 0.0
    %3265 = vmatprep.subr.mxu0 0.0
    %3266 = vmatpush1.msra.mxu0 0.0
    %3267 = vmatprep.subr.mxu0 0.0
    %3268 = vmatpush1.msra.mxu0 0.0
    %3269 = vmatprep.subr.mxu0 0.0
    %3270 = vmatpush1.msra.mxu0 0.0
    %3271 = vmatprep.subr.mxu0 0.0
    %3272 = vmatpush1.msra.mxu0 0.0
    %3273 = vmatprep.subr.mxu0 0.0
    %3274 = vmatpush1.msra.mxu0 0.0
    %3275 = vmatprep.subr.mxu0 0.0
    %3276 = vmatpush1.msra.mxu0 0.0
    %3277 = vmatprep.subr.mxu0 0.0
    %3278 = vmatpush1.msra.mxu0 0.0
    %3279 = vmatprep.subr.mxu0 0.0
    %3280 = vmatpush1.msra.mxu0 0.0
    %3281 = vmatprep.mubr.f32.mxu0 0.0
    %v3282 = vand.u32 %v2749, 4294901760
    %3283 = vmatmul.mubr.f32.gmra.mrb[0].mxu0 %v3282
    %v3284 = vpop.f32.mrb[0].mxu0
    %v3285 = vadd.f32 %v3206, %v3284
    %v3286 = vpop.f32.mrb[0].mxu0
    %3287 = vdwg.mxu0
    %v3289 = vrot.slane %v3285, 6
    %v3291 = vadd.f32 %v563, %v3289
    %v3292 = vtanh.pop %v3291
    %v3294 = vrot.slane %v3292, 2
    %v3295 = vsel %vm567, %v3294, 0
    %3297 = vmatprep.subr.mxu0 0.0
    %v3298 = vand.u32 %v16, 4294901760
    %3299 = vmatpush1.msra.mxu0 %v3298
    %3300 = vmatprep.subr.mxu0 0.0
    %v3301 = vand.u32 %v17, 4294901760
    %3302 = vmatpush1.msra.mxu0 %v3301
    %3303 = vmatprep.subr.mxu0 0.0
    %v3304 = vand.u32 %v18, 4294901760
    %3305 = vmatpush1.msra.mxu0 %v3304
    %3306 = vmatprep.subr.mxu0 0.0
    %v3307 = vand.u32 %v19, 4294901760
    %3308 = vmatpush1.msra.mxu0 %v3307
    %3309 = vmatprep.subr.mxu0 0.0
    %v3310 = vand.u32 %v20, 4294901760
    %3311 = vmatpush1.msra.mxu0 %v3310
    %3312 = vmatprep.subr.mxu0 0.0
    %v3313 = vand.u32 %v21, 4294901760
    %3314 = vmatpush1.msra.mxu0 %v3313
    %3315 = vmatprep.subr.mxu0 0.0
    %v3316 = vand.u32 %v22, 4294901760
    %3317 = vmatpush1.msra.mxu0 %v3316
    %3318 = vmatprep.subr.mxu0 0.0
    %v3319 = vand.u32 %v23, 4294901760
    %3320 = vmatpush1.msra.mxu0 %v3319
    %3321 = vmatprep.subr.mxu0 0.0
    %3322 = vmatpush1.msra.mxu0 0.0
    %3323 = vmatprep.subr.mxu0 0.0
    %3324 = vmatpush1.msra.mxu0 0.0
    %3325 = vmatprep.subr.mxu0 0.0
    %3326 = vmatpush1.msra.mxu0 0.0
    %3327 = vmatprep.subr.mxu0 0.0
    %3328 = vmatpush1.msra.mxu0 0.0
    %3329 = vmatprep.subr.mxu0 0.0
    %3330 = vmatpush1.msra.mxu0 0.0
    %3331 = vmatprep.subr.mxu0 0.0
    %3332 = vmatpush1.msra.mxu0 0.0
    %3333 = vmatprep.subr.mxu0 0.0
    %3334 = vmatpush1.msra.mxu0 0.0
    %3335 = vmatprep.subr.mxu0 0.0
    %3336 = vmatpush1.msra.mxu0 0.0
    %3337 = vmatprep.subr.mxu0 0.0
    %3338 = vmatpush1.msra.mxu0 0.0
    %3339 = vmatprep.subr.mxu0 0.0
    %3340 = vmatpush1.msra.mxu0 0.0
    %3341 = vmatprep.subr.mxu0 0.0
    %3342 = vmatpush1.msra.mxu0 0.0
    %3343 = vmatprep.subr.mxu0 0.0
    %3344 = vmatpush1.msra.mxu0 0.0
    %3345 = vmatprep.subr.mxu0 0.0
    %3346 = vmatpush1.msra.mxu0 0.0
    %3347 = vmatprep.subr.mxu0 0.0
    %3348 = vmatpush1.msra.mxu0 0.0
    %3349 = vmatprep.subr.mxu0 0.0
    %3350 = vmatpush1.msra.mxu0 0.0
    %3351 = vmatprep.subr.mxu0 0.0
    %3352 = vmatpush1.msra.mxu0 0.0
    %3353 = vmatprep.subr.mxu0 0.0
    %3354 = vmatpush1.msra.mxu0 0.0
    %3355 = vmatprep.subr.mxu0 0.0
    %3356 = vmatpush1.msra.mxu0 0.0
    %3357 = vmatprep.subr.mxu0 0.0
    %3358 = vmatpush1.msra.mxu0 0.0
    %3359 = vmatprep.subr.mxu0 0.0
    %3360 = vmatpush1.msra.mxu0 0.0
    %3361 = vmatprep.subr.mxu0 0.0
    %3362 = vmatpush1.msra.mxu0 0.0
    %3363 = vmatprep.subr.mxu0 0.0
    %3364 = vmatpush1.msra.mxu0 0.0
    %3365 = vmatprep.subr.mxu0 0.0
    %3366 = vmatpush1.msra.mxu0 0.0
    %3367 = vmatprep.subr.mxu0 0.0
    %3368 = vmatpush1.msra.mxu0 0.0
    %3369 = vmatprep.mubr.f32.mxu0 0.0
    %v3370 = vand.u32 %v3295, 4294901760
    %v3371 = vsub.f32 %v3295, %v3370
    %v3372 = vand.u32 %v3371, 4294901760
    %v3373 = vsub.f32 %v3371, %v3372
    %v3374 = vand.u32 %v3373, 4294901760
    %3375 = vmatmul.mubr.f32.gmra.mrb[0].mxu0 %v3374
    %v3376 = vpop.f32.mrb[0].mxu0
    %v3377 = vadd.f32 0.0, %v3376
    %v3378 = vpop.f32.mrb[0].mxu0
    %3379 = vdwg.mxu0
    %3380 = vmatprep.subr.mxu0 0.0
    %v3381 = vand.u32 %v16, 4294901760
    %v3382 = vsub.f32 %v16, %v3381
    %v3383 = vand.u32 %v3382, 4294901760
    %v3384 = vsub.f32 %v3382, %v3383
    %v3385 = vand.u32 %v3384, 4294901760
    %3386 = vmatpush1.msra.mxu0 %v3385
    %3387 = vmatprep.subr.mxu0 0.0
    %v3388 = vand.u32 %v17, 4294901760
    %v3389 = vsub.f32 %v17, %v3388
    %v3390 = vand.u32 %v3389, 4294901760
    %v3391 = vsub.f32 %v3389, %v3390
    %v3392 = vand.u32 %v3391, 4294901760
    %3393 = vmatpush1.msra.mxu0 %v3392
    %3394 = vmatprep.subr.mxu0 0.0
    %v3395 = vand.u32 %v18, 4294901760
    %v3396 = vsub.f32 %v18, %v3395
    %v3397 = vand.u32 %v3396, 4294901760
    %v3398 = vsub.f32 %v3396, %v3397
    %v3399 = vand.u32 %v3398, 4294901760
    %3400 = vmatpush1.msra.mxu0 %v3399
    %3401 = vmatprep.subr.mxu0 0.0
    %v3402 = vand.u32 %v19, 4294901760
    %v3403 = vsub.f32 %v19, %v3402
    %v3404 = vand.u32 %v3403, 4294901760
    %v3405 = vsub.f32 %v3403, %v3404
    %v3406 = vand.u32 %v3405, 4294901760
    %3407 = vmatpush1.msra.mxu0 %v3406
    %3408 = vmatprep.subr.mxu0 0.0
    %v3409 = vand.u32 %v20, 4294901760
    %v3410 = vsub.f32 %v20, %v3409
    %v3411 = vand.u32 %v3410, 4294901760
    %v3412 = vsub.f32 %v3410, %v3411
    %v3413 = vand.u32 %v3412, 4294901760
    %3414 = vmatpush1.msra.mxu0 %v3413
    %3415 = vmatprep.subr.mxu0 0.0
    %v3416 = vand.u32 %v21, 4294901760
    %v3417 = vsub.f32 %v21, %v3416
    %v3418 = vand.u32 %v3417, 4294901760
    %v3419 = vsub.f32 %v3417, %v3418
    %v3420 = vand.u32 %v3419, 4294901760
    %3421 = vmatpush1.msra.mxu0 %v3420
    %3422 = vmatprep.subr.mxu0 0.0
    %v3423 = vand.u32 %v22, 4294901760
    %v3424 = vsub.f32 %v22, %v3423
    %v3425 = vand.u32 %v3424, 4294901760
    %v3426 = vsub.f32 %v3424, %v3425
    %v3427 = vand.u32 %v3426, 4294901760
    %3428 = vmatpush1.msra.mxu0 %v3427
    %3429 = vmatprep.subr.mxu0 0.0
    %v3430 = vand.u32 %v23, 4294901760
    %v3431 = vsub.f32 %v23, %v3430
    %v3432 = vand.u32 %v3431, 4294901760
    %v3433 = vsub.f32 %v3431, %v3432
    %v3434 = vand.u32 %v3433, 4294901760
    %3435 = vmatpush1.msra.mxu0 %v3434
    %3436 = vmatprep.subr.mxu0 0.0
    %3437 = vmatpush1.msra.mxu0 0.0
    %3438 = vmatprep.subr.mxu0 0.0
    %3439 = vmatpush1.msra.mxu0 0.0
    %3440 = vmatprep.subr.mxu0 0.0
    %3441 = vmatpush1.msra.mxu0 0.0
    %3442 = vmatprep.subr.mxu0 0.0
    %3443 = vmatpush1.msra.mxu0 0.0
    %3444 = vmatprep.subr.mxu0 0.0
    %3445 = vmatpush1.msra.mxu0 0.0
    %3446 = vmatprep.subr.mxu0 0.0
    %3447 = vmatpush1.msra.mxu0 0.0
    %3448 = vmatprep.subr.mxu0 0.0
    %3449 = vmatpush1.msra.mxu0 0.0
    %3450 = vmatprep.subr.mxu0 0.0
    %3451 = vmatpush1.msra.mxu0 0.0
    %3452 = vmatprep.subr.mxu0 0.0
    %3453 = vmatpush1.msra.mxu0 0.0
    %3454 = vmatprep.subr.mxu0 0.0
    %3455 = vmatpush1.msra.mxu0 0.0
    %3456 = vmatprep.subr.mxu0 0.0
    %3457 = vmatpush1.msra.mxu0 0.0
    %3458 = vmatprep.subr.mxu0 0.0
    %3459 = vmatpush1.msra.mxu0 0.0
    %3460 = vmatprep.subr.mxu0 0.0
    %3461 = vmatpush1.msra.mxu0 0.0
    %3462 = vmatprep.subr.mxu0 0.0
    %3463 = vmatpush1.msra.mxu0 0.0
    %3464 = vmatprep.subr.mxu0 0.0
    %3465 = vmatpush1.msra.mxu0 0.0
    %3466 = vmatprep.subr.mxu0 0.0
    %3467 = vmatpush1.msra.mxu0 0.0
    %3468 = vmatprep.subr.mxu0 0.0
    %3469 = vmatpush1.msra.mxu0 0.0
    %3470 = vmatprep.subr.mxu0 0.0
    %3471 = vmatpush1.msra.mxu0 0.0
    %3472 = vmatprep.subr.mxu0 0.0
    %3473 = vmatpush1.msra.mxu0 0.0
    %3474 = vmatprep.subr.mxu0 0.0
    %3475 = vmatpush1.msra.mxu0 0.0
    %3476 = vmatprep.subr.mxu0 0.0
    %3477 = vmatpush1.msra.mxu0 0.0
    %3478 = vmatprep.subr.mxu0 0.0
    %3479 = vmatpush1.msra.mxu0 0.0
    %3480 = vmatprep.subr.mxu0 0.0
    %3481 = vmatpush1.msra.mxu0 0.0
    %3482 = vmatprep.subr.mxu0 0.0
    %3483 = vmatpush1.msra.mxu0 0.0
    %3484 = vmatprep.mubr.f32.mxu0 0.0
    %v3485 = vand.u32 %v3295, 4294901760
    %3486 = vmatmul.mubr.f32.gmra.mrb[0].mxu0 %v3485
    %v3487 = vpop.f32.mrb[0].mxu0
    %v3488 = vadd.f32 %v3377, %v3487
    %v3489 = vpop.f32.mrb[0].mxu0
    %3490 = vdwg.mxu0
    %3491 = vmatprep.subr.mxu0 0.0
    %v3492 = vand.u32 %v16, 4294901760
    %v3493 = vsub.f32 %v16, %v3492
    %3494 = vmatpush1.msra.mxu0 %v3493
    %3495 = vmatprep.subr.mxu0 0.0
    %v3496 = vand.u32 %v17, 4294901760
    %v3497 = vsub.f32 %v17, %v3496
    %3498 = vmatpush1.msra.mxu0 %v3497
    %3499 = vmatprep.subr.mxu0 0.0
    %v3500 = vand.u32 %v18, 4294901760
    %v3501 = vsub.f32 %v18, %v3500
    %3502 = vmatpush1.msra.mxu0 %v3501
    %3503 = vmatprep.subr.mxu0 0.0
    %v3504 = vand.u32 %v19, 4294901760
    %v3505 = vsub.f32 %v19, %v3504
    %3506 = vmatpush1.msra.mxu0 %v3505
    %3507 = vmatprep.subr.mxu0 0.0
    %v3508 = vand.u32 %v20, 4294901760
    %v3509 = vsub.f32 %v20, %v3508
    %3510 = vmatpush1.msra.mxu0 %v3509
    %3511 = vmatprep.subr.mxu0 0.0
    %v3512 = vand.u32 %v21, 4294901760
    %v3513 = vsub.f32 %v21, %v3512
    %3514 = vmatpush1.msra.mxu0 %v3513
    %3515 = vmatprep.subr.mxu0 0.0
    %v3516 = vand.u32 %v22, 4294901760
    %v3517 = vsub.f32 %v22, %v3516
    %3518 = vmatpush1.msra.mxu0 %v3517
    %3519 = vmatprep.subr.mxu0 0.0
    %v3520 = vand.u32 %v23, 4294901760
    %v3521 = vsub.f32 %v23, %v3520
    %3522 = vmatpush1.msra.mxu0 %v3521
    %3523 = vmatprep.subr.mxu0 0.0
    %3524 = vmatpush1.msra.mxu0 0.0
    %3525 = vmatprep.subr.mxu0 0.0
    %3526 = vmatpush1.msra.mxu0 0.0
    %3527 = vmatprep.subr.mxu0 0.0
    %3528 = vmatpush1.msra.mxu0 0.0
    %3529 = vmatprep.subr.mxu0 0.0
    %3530 = vmatpush1.msra.mxu0 0.0
    %3531 = vmatprep.subr.mxu0 0.0
    %3532 = vmatpush1.msra.mxu0 0.0
    %3533 = vmatprep.subr.mxu0 0.0
    %3534 = vmatpush1.msra.mxu0 0.0
    %3535 = vmatprep.subr.mxu0 0.0
    %3536 = vmatpush1.msra.mxu0 0.0
    %3537 = vmatprep.subr.mxu0 0.0
    %3538 = vmatpush1.msra.mxu0 0.0
    %3539 = vmatprep.subr.mxu0 0.0
    %3540 = vmatpush1.msra.mxu0 0.0
    %3541 = vmatprep.subr.mxu0 0.0
    %3542 = vmatpush1.msra.mxu0 0.0
    %3543 = vmatprep.subr.mxu0 0.0
    %3544 = vmatpush1.msra.mxu0 0.0
    %3545 = vmatprep.subr.mxu0 0.0
    %3546 = vmatpush1.msra.mxu0 0.0
    %3547 = vmatprep.subr.mxu0 0.0
    %3548 = vmatpush1.msra.mxu0 0.0
    %3549 = vmatprep.subr.mxu0 0.0
    %3550 = vmatpush1.msra.mxu0 0.0
    %3551 = vmatprep.subr.mxu0 0.0
    %3552 = vmatpush1.msra.mxu0 0.0
    %3553 = vmatprep.subr.mxu0 0.0
    %3554 = vmatpush1.msra.mxu0 0.0
    %3555 = vmatprep.subr.mxu0 0.0
    %3556 = vmatpush1.msra.mxu0 0.0
    %3557 = vmatprep.subr.mxu0 0.0
    %3558 = vmatpush1.msra.mxu0 0.0
    %3559 = vmatprep.subr.mxu0 0.0
    %3560 = vmatpush1.msra.mxu0 0.0
    %3561 = vmatprep.subr.mxu0 0.0
    %3562 = vmatpush1.msra.mxu0 0.0
    %3563 = vmatprep.subr.mxu0 0.0
    %3564 = vmatpush1.msra.mxu0 0.0
    %3565 = vmatprep.subr.mxu0 0.0
    %3566 = vmatpush1.msra.mxu0 0.0
    %3567 = vmatprep.subr.mxu0 0.0
    %3568 = vmatpush1.msra.mxu0 0.0
    %3569 = vmatprep.subr.mxu0 0.0
    %3570 = vmatpush1.msra.mxu0 0.0
    %3571 = vmatprep.mubr.f32.mxu0 0.0
    %v3572 = vand.u32 %v3295, 4294901760
    %v3573 = vsub.f32 %v3295, %v3572
    %3574 = vmatmul.mubr.f32.gmra.mrb[0].mxu0 %v3573
    %v3575 = vpop.f32.mrb[0].mxu0
    %v3576 = vadd.f32 %v3488, %v3575
    %v3577 = vpop.f32.mrb[0].mxu0
    %3578 = vdwg.mxu0
    %3579 = vmatprep.subr.mxu0 0.0
    %v3580 = vand.u32 %v16, 4294901760
    %3581 = vmatpush1.msra.mxu0 %v3580
    %3582 = vmatprep.subr.mxu0 0.0
    %v3583 = vand.u32 %v17, 4294901760
    %3584 = vmatpush1.msra.mxu0 %v3583
    %3585 = vmatprep.subr.mxu0 0.0
    %v3586 = vand.u32 %v18, 4294901760
    %3587 = vmatpush1.msra.mxu0 %v3586
    %3588 = vmatprep.subr.mxu0 0.0
    %v3589 = vand.u32 %v19, 4294901760
    %3590 = vmatpush1.msra.mxu0 %v3589
    %3591 = vmatprep.subr.mxu0 0.0
    %v3592 = vand.u32 %v20, 4294901760
    %3593 = vmatpush1.msra.mxu0 %v3592
    %3594 = vmatprep.subr.mxu0 0.0
    %v3595 = vand.u32 %v21, 4294901760
    %3596 = vmatpush1.msra.mxu0 %v3595
    %3597 = vmatprep.subr.mxu0 0.0
    %v3598 = vand.u32 %v22, 4294901760
    %3599 = vmatpush1.msra.mxu0 %v3598
    %3600 = vmatprep.subr.mxu0 0.0
    %v3601 = vand.u32 %v23, 4294901760
    %3602 = vmatpush1.msra.mxu0 %v3601
    %3603 = vmatprep.subr.mxu0 0.0
    %3604 = vmatpush1.msra.mxu0 0.0
    %3605 = vmatprep.subr.mxu0 0.0
    %3606 = vmatpush1.msra.mxu0 0.0
    %3607 = vmatprep.subr.mxu0 0.0
    %3608 = vmatpush1.msra.mxu0 0.0
    %3609 = vmatprep.subr.mxu0 0.0
    %3610 = vmatpush1.msra.mxu0 0.0
    %3611 = vmatprep.subr.mxu0 0.0
    %3612 = vmatpush1.msra.mxu0 0.0
    %3613 = vmatprep.subr.mxu0 0.0
    %3614 = vmatpush1.msra.mxu0 0.0
    %3615 = vmatprep.subr.mxu0 0.0
    %3616 = vmatpush1.msra.mxu0 0.0
    %3617 = vmatprep.subr.mxu0 0.0
    %3618 = vmatpush1.msra.mxu0 0.0
    %3619 = vmatprep.subr.mxu0 0.0
    %3620 = vmatpush1.msra.mxu0 0.0
    %3621 = vmatprep.subr.mxu0 0.0
    %3622 = vmatpush1.msra.mxu0 0.0
    %3623 = vmatprep.subr.mxu0 0.0
    %3624 = vmatpush1.msra.mxu0 0.0
    %3625 = vmatprep.subr.mxu0 0.0
    %3626 = vmatpush1.msra.mxu0 0.0
    %3627 = vmatprep.subr.mxu0 0.0
    %3628 = vmatpush1.msra.mxu0 0.0
    %3629 = vmatprep.subr.mxu0 0.0
    %3630 = vmatpush1.msra.mxu0 0.0
    %3631 = vmatprep.subr.mxu0 0.0
    %3632 = vmatpush1.msra.mxu0 0.0
    %3633 = vmatprep.subr.mxu0 0.0
    %3634 = vmatpush1.msra.mxu0 0.0
    %3635 = vmatprep.subr.mxu0 0.0
    %3636 = vmatpush1.msra.mxu0 0.0
    %3637 = vmatprep.subr.mxu0 0.0
    %3638 = vmatpush1.msra.mxu0 0.0
    %3639 = vmatprep.subr.mxu0 0.0
    %3640 = vmatpush1.msra.mxu0 0.0
    %3641 = vmatprep.subr.mxu0 0.0
    %3642 = vmatpush1.msra.mxu0 0.0
    %3643 = vmatprep.subr.mxu0 0.0
    %3644 = vmatpush1.msra.mxu0 0.0
    %3645 = vmatprep.subr.mxu0 0.0
    %3646 = vmatpush1.msra.mxu0 0.0
    %3647 = vmatprep.subr.mxu0 0.0
    %3648 = vmatpush1.msra.mxu0 0.0
    %3649 = vmatprep.subr.mxu0 0.0
    %3650 = vmatpush1.msra.mxu0 0.0
    %3651 = vmatprep.mubr.f32.mxu0 0.0
    %v3652 = vand.u32 %v3295, 4294901760
    %v3653 = vsub.f32 %v3295, %v3652
    %v3654 = vand.u32 %v3653, 4294901760
    %3655 = vmatmul.mubr.f32.gmra.mrb[0].mxu0 %v3654
    %v3656 = vpop.f32.mrb[0].mxu0
    %v3657 = vadd.f32 %v3576, %v3656
    %v3658 = vpop.f32.mrb[0].mxu0
    %3659 = vdwg.mxu0
    %3660 = vmatprep.subr.mxu0 0.0
    %v3661 = vand.u32 %v16, 4294901760
    %v3662 = vsub.f32 %v16, %v3661
    %v3663 = vand.u32 %v3662, 4294901760
    %3664 = vmatpush1.msra.mxu0 %v3663
    %3665 = vmatprep.subr.mxu0 0.0
    %v3666 = vand.u32 %v17, 4294901760
    %v3667 = vsub.f32 %v17, %v3666
    %v3668 = vand.u32 %v3667, 4294901760
    %3669 = vmatpush1.msra.mxu0 %v3668
    %3670 = vmatprep.subr.mxu0 0.0
    %v3671 = vand.u32 %v18, 4294901760
    %v3672 = vsub.f32 %v18, %v3671
    %v3673 = vand.u32 %v3672, 4294901760
    %3674 = vmatpush1.msra.mxu0 %v3673
    %3675 = vmatprep.subr.mxu0 0.0
    %v3676 = vand.u32 %v19, 4294901760
    %v3677 = vsub.f32 %v19, %v3676
    %v3678 = vand.u32 %v3677, 4294901760
    %3679 = vmatpush1.msra.mxu0 %v3678
    %3680 = vmatprep.subr.mxu0 0.0
    %v3681 = vand.u32 %v20, 4294901760
    %v3682 = vsub.f32 %v20, %v3681
    %v3683 = vand.u32 %v3682, 4294901760
    %3684 = vmatpush1.msra.mxu0 %v3683
    %3685 = vmatprep.subr.mxu0 0.0
    %v3686 = vand.u32 %v21, 4294901760
    %v3687 = vsub.f32 %v21, %v3686
    %v3688 = vand.u32 %v3687, 4294901760
    %3689 = vmatpush1.msra.mxu0 %v3688
    %3690 = vmatprep.subr.mxu0 0.0
    %v3691 = vand.u32 %v22, 4294901760
    %v3692 = vsub.f32 %v22, %v3691
    %v3693 = vand.u32 %v3692, 4294901760
    %3694 = vmatpush1.msra.mxu0 %v3693
    %3695 = vmatprep.subr.mxu0 0.0
    %v3696 = vand.u32 %v23, 4294901760
    %v3697 = vsub.f32 %v23, %v3696
    %v3698 = vand.u32 %v3697, 4294901760
    %3699 = vmatpush1.msra.mxu0 %v3698
    %3700 = vmatprep.subr.mxu0 0.0
    %3701 = vmatpush1.msra.mxu0 0.0
    %3702 = vmatprep.subr.mxu0 0.0
    %3703 = vmatpush1.msra.mxu0 0.0
    %3704 = vmatprep.subr.mxu0 0.0
    %3705 = vmatpush1.msra.mxu0 0.0
    %3706 = vmatprep.subr.mxu0 0.0
    %3707 = vmatpush1.msra.mxu0 0.0
    %3708 = vmatprep.subr.mxu0 0.0
    %3709 = vmatpush1.msra.mxu0 0.0
    %3710 = vmatprep.subr.mxu0 0.0
    %3711 = vmatpush1.msra.mxu0 0.0
    %3712 = vmatprep.subr.mxu0 0.0
    %3713 = vmatpush1.msra.mxu0 0.0
    %3714 = vmatprep.subr.mxu0 0.0
    %3715 = vmatpush1.msra.mxu0 0.0
    %3716 = vmatprep.subr.mxu0 0.0
    %3717 = vmatpush1.msra.mxu0 0.0
    %3718 = vmatprep.subr.mxu0 0.0
    %3719 = vmatpush1.msra.mxu0 0.0
    %3720 = vmatprep.subr.mxu0 0.0
    %3721 = vmatpush1.msra.mxu0 0.0
    %3722 = vmatprep.subr.mxu0 0.0
    %3723 = vmatpush1.msra.mxu0 0.0
    %3724 = vmatprep.subr.mxu0 0.0
    %3725 = vmatpush1.msra.mxu0 0.0
    %3726 = vmatprep.subr.mxu0 0.0
    %3727 = vmatpush1.msra.mxu0 0.0
    %3728 = vmatprep.subr.mxu0 0.0
    %3729 = vmatpush1.msra.mxu0 0.0
    %3730 = vmatprep.subr.mxu0 0.0
    %3731 = vmatpush1.msra.mxu0 0.0
    %3732 = vmatprep.subr.mxu0 0.0
    %3733 = vmatpush1.msra.mxu0 0.0
    %3734 = vmatprep.subr.mxu0 0.0
    %3735 = vmatpush1.msra.mxu0 0.0
    %3736 = vmatprep.subr.mxu0 0.0
    %3737 = vmatpush1.msra.mxu0 0.0
    %3738 = vmatprep.subr.mxu0 0.0
    %3739 = vmatpush1.msra.mxu0 0.0
    %3740 = vmatprep.subr.mxu0 0.0
    %3741 = vmatpush1.msra.mxu0 0.0
    %3742 = vmatprep.subr.mxu0 0.0
    %3743 = vmatpush1.msra.mxu0 0.0
    %3744 = vmatprep.subr.mxu0 0.0
    %3745 = vmatpush1.msra.mxu0 0.0
    %3746 = vmatprep.subr.mxu0 0.0
    %3747 = vmatpush1.msra.mxu0 0.0
    %3748 = vmatprep.mubr.f32.mxu0 0.0
    %v3749 = vand.u32 %v3295, 4294901760
    %3750 = vmatmul.mubr.f32.gmra.mrb[0].mxu0 %v3749
    %v3751 = vpop.f32.mrb[0].mxu0
    %v3752 = vadd.f32 %v3657, %v3751
    %v3753 = vpop.f32.mrb[0].mxu0
    %3754 = vdwg.mxu0
    %3755 = vmatprep.subr.mxu0 0.0
    %v3756 = vand.u32 %v16, 4294901760
    %3757 = vmatpush1.msra.mxu0 %v3756
    %3758 = vmatprep.subr.mxu0 0.0
    %v3759 = vand.u32 %v17, 4294901760
    %3760 = vmatpush1.msra.mxu0 %v3759
    %3761 = vmatprep.subr.mxu0 0.0
    %v3762 = vand.u32 %v18, 4294901760
    %3763 = vmatpush1.msra.mxu0 %v3762
    %3764 = vmatprep.subr.mxu0 0.0
    %v3765 = vand.u32 %v19, 4294901760
    %3766 = vmatpush1.msra.mxu0 %v3765
    %3767 = vmatprep.subr.mxu0 0.0
    %v3768 = vand.u32 %v20, 4294901760
    %3769 = vmatpush1.msra.mxu0 %v3768
    %3770 = vmatprep.subr.mxu0 0.0
    %v3771 = vand.u32 %v21, 4294901760
    %3772 = vmatpush1.msra.mxu0 %v3771
    %3773 = vmatprep.subr.mxu0 0.0
    %v3774 = vand.u32 %v22, 4294901760
    %3775 = vmatpush1.msra.mxu0 %v3774
    %3776 = vmatprep.subr.mxu0 0.0
    %v3777 = vand.u32 %v23, 4294901760
    %3778 = vmatpush1.msra.mxu0 %v3777
    %3779 = vmatprep.subr.mxu0 0.0
    %3780 = vmatpush1.msra.mxu0 0.0
    %3781 = vmatprep.subr.mxu0 0.0
    %3782 = vmatpush1.msra.mxu0 0.0
    %3783 = vmatprep.subr.mxu0 0.0
    %3784 = vmatpush1.msra.mxu0 0.0
    %3785 = vmatprep.subr.mxu0 0.0
    %3786 = vmatpush1.msra.mxu0 0.0
    %3787 = vmatprep.subr.mxu0 0.0
    %3788 = vmatpush1.msra.mxu0 0.0
    %3789 = vmatprep.subr.mxu0 0.0
    %3790 = vmatpush1.msra.mxu0 0.0
    %3791 = vmatprep.subr.mxu0 0.0
    %3792 = vmatpush1.msra.mxu0 0.0
    %3793 = vmatprep.subr.mxu0 0.0
    %3794 = vmatpush1.msra.mxu0 0.0
    %3795 = vmatprep.subr.mxu0 0.0
    %3796 = vmatpush1.msra.mxu0 0.0
    %3797 = vmatprep.subr.mxu0 0.0
    %3798 = vmatpush1.msra.mxu0 0.0
    %3799 = vmatprep.subr.mxu0 0.0
    %3800 = vmatpush1.msra.mxu0 0.0
    %3801 = vmatprep.subr.mxu0 0.0
    %3802 = vmatpush1.msra.mxu0 0.0
    %3803 = vmatprep.subr.mxu0 0.0
    %3804 = vmatpush1.msra.mxu0 0.0
    %3805 = vmatprep.subr.mxu0 0.0
    %3806 = vmatpush1.msra.mxu0 0.0
    %3807 = vmatprep.subr.mxu0 0.0
    %3808 = vmatpush1.msra.mxu0 0.0
    %3809 = vmatprep.subr.mxu0 0.0
    %3810 = vmatpush1.msra.mxu0 0.0
    %3811 = vmatprep.subr.mxu0 0.0
    %3812 = vmatpush1.msra.mxu0 0.0
    %3813 = vmatprep.subr.mxu0 0.0
    %3814 = vmatpush1.msra.mxu0 0.0
    %3815 = vmatprep.subr.mxu0 0.0
    %3816 = vmatpush1.msra.mxu0 0.0
    %3817 = vmatprep.subr.mxu0 0.0
    %3818 = vmatpush1.msra.mxu0 0.0
    %3819 = vmatprep.subr.mxu0 0.0
    %3820 = vmatpush1.msra.mxu0 0.0
    %3821 = vmatprep.subr.mxu0 0.0
    %3822 = vmatpush1.msra.mxu0 0.0
    %3823 = vmatprep.subr.mxu0 0.0
    %3824 = vmatpush1.msra.mxu0 0.0
    %3825 = vmatprep.subr.mxu0 0.0
    %3826 = vmatpush1.msra.mxu0 0.0
    %3827 = vmatprep.mubr.f32.mxu0 0.0
    %v3828 = vand.u32 %v3295, 4294901760
    %3829 = vmatmul.mubr.f32.gmra.mrb[0].mxu0 %v3828
    %v3830 = vpop.f32.mrb[0].mxu0
    %v3831 = vadd.f32 %v3752, %v3830
    %v3832 = vpop.f32.mrb[0].mxu0
    %3833 = vdwg.mxu0
    %v3835 = vrot.slane %v3831, 4
    %v3837 = vadd.f32 %v563, %v3835
    %v3838 = vtanh.pop %v3837
    %v3840 = vrot.slane %v3838, 4
    %v3841 = vsel %vm567, %v3840, 0
    %3843 = vmatprep.subr.mxu0 0.0
    %v3844 = vand.u32 %v16, 4294901760
    %3845 = vmatpush1.msra.mxu0 %v3844
    %3846 = vmatprep.subr.mxu0 0.0
    %v3847 = vand.u32 %v17, 4294901760
    %3848 = vmatpush1.msra.mxu0 %v3847
    %3849 = vmatprep.subr.mxu0 0.0
    %v3850 = vand.u32 %v18, 4294901760
    %3851 = vmatpush1.msra.mxu0 %v3850
    %3852 = vmatprep.subr.mxu0 0.0
    %v3853 = vand.u32 %v19, 4294901760
    %3854 = vmatpush1.msra.mxu0 %v3853
    %3855 = vmatprep.subr.mxu0 0.0
    %v3856 = vand.u32 %v20, 4294901760
    %3857 = vmatpush1.msra.mxu0 %v3856
    %3858 = vmatprep.subr.mxu0 0.0
    %v3859 = vand.u32 %v21, 4294901760
    %3860 = vmatpush1.msra.mxu0 %v3859
    %3861 = vmatprep.subr.mxu0 0.0
    %v3862 = vand.u32 %v22, 4294901760
    %3863 = vmatpush1.msra.mxu0 %v3862
    %3864 = vmatprep.subr.mxu0 0.0
    %v3865 = vand.u32 %v23, 4294901760
    %3866 = vmatpush1.msra.mxu0 %v3865
    %3867 = vmatprep.subr.mxu0 0.0
    %3868 = vmatpush1.msra.mxu0 0.0
    %3869 = vmatprep.subr.mxu0 0.0
    %3870 = vmatpush1.msra.mxu0 0.0
    %3871 = vmatprep.subr.mxu0 0.0
    %3872 = vmatpush1.msra.mxu0 0.0
    %3873 = vmatprep.subr.mxu0 0.0
    %3874 = vmatpush1.msra.mxu0 0.0
    %3875 = vmatprep.subr.mxu0 0.0
    %3876 = vmatpush1.msra.mxu0 0.0
    %3877 = vmatprep.subr.mxu0 0.0
    %3878 = vmatpush1.msra.mxu0 0.0
    %3879 = vmatprep.subr.mxu0 0.0
    %3880 = vmatpush1.msra.mxu0 0.0
    %3881 = vmatprep.subr.mxu0 0.0
    %3882 = vmatpush1.msra.mxu0 0.0
    %3883 = vmatprep.subr.mxu0 0.0
    %3884 = vmatpush1.msra.mxu0 0.0
    %3885 = vmatprep.subr.mxu0 0.0
    %3886 = vmatpush1.msra.mxu0 0.0
    %3887 = vmatprep.subr.mxu0 0.0
    %3888 = vmatpush1.msra.mxu0 0.0
    %3889 = vmatprep.subr.mxu0 0.0
    %3890 = vmatpush1.msra.mxu0 0.0
    %3891 = vmatprep.subr.mxu0 0.0
    %3892 = vmatpush1.msra.mxu0 0.0
    %3893 = vmatprep.subr.mxu0 0.0
    %3894 = vmatpush1.msra.mxu0 0.0
    %3895 = vmatprep.subr.mxu0 0.0
    %3896 = vmatpush1.msra.mxu0 0.0
    %3897 = vmatprep.subr.mxu0 0.0
    %3898 = vmatpush1.msra.mxu0 0.0
    %3899 = vmatprep.subr.mxu0 0.0
    %3900 = vmatpush1.msra.mxu0 0.0
    %3901 = vmatprep.subr.mxu0 0.0
    %3902 = vmatpush1.msra.mxu0 0.0
    %3903 = vmatprep.subr.mxu0 0.0
    %3904 = vmatpush1.msra.mxu0 0.0
    %3905 = vmatprep.subr.mxu0 0.0
    %3906 = vmatpush1.msra.mxu0 0.0
    %3907 = vmatprep.subr.mxu0 0.0
    %3908 = vmatpush1.msra.mxu0 0.0
    %3909 = vmatprep.subr.mxu0 0.0
    %3910 = vmatpush1.msra.mxu0 0.0
    %3911 = vmatprep.subr.mxu0 0.0
    %3912 = vmatpush1.msra.mxu0 0.0
    %3913 = vmatprep.subr.mxu0 0.0
    %3914 = vmatpush1.msra.mxu0 0.0
    %3915 = vmatprep.mubr.f32.mxu0 0.0
    %v3916 = vand.u32 %v3841, 4294901760
    %v3917 = vsub.f32 %v3841, %v3916
    %v3918 = vand.u32 %v3917, 4294901760
    %v3919 = vsub.f32 %v3917, %v3918
    %v3920 = vand.u32 %v3919, 4294901760
    %3921 = vmatmul.mubr.f32.gmra.mrb[0].mxu0 %v3920
    %v3922 = vpop.f32.mrb[0].mxu0
    %v3923 = vadd.f32 0.0, %v3922
    %v3924 = vpop.f32.mrb[0].mxu0
    %3925 = vdwg.mxu0
    %3926 = vmatprep.subr.mxu0 0.0
    %v3927 = vand.u32 %v16, 4294901760
    %v3928 = vsub.f32 %v16, %v3927
    %v3929 = vand.u32 %v3928, 4294901760
    %v3930 = vsub.f32 %v3928, %v3929
    %v3931 = vand.u32 %v3930, 4294901760
    %3932 = vmatpush1.msra.mxu0 %v3931
    %3933 = vmatprep.subr.mxu0 0.0
    %v3934 = vand.u32 %v17, 4294901760
    %v3935 = vsub.f32 %v17, %v3934
    %v3936 = vand.u32 %v3935, 4294901760
    %v3937 = vsub.f32 %v3935, %v3936
    %v3938 = vand.u32 %v3937, 4294901760
    %3939 = vmatpush1.msra.mxu0 %v3938
    %3940 = vmatprep.subr.mxu0 0.0
    %v3941 = vand.u32 %v18, 4294901760
    %v3942 = vsub.f32 %v18, %v3941
    %v3943 = vand.u32 %v3942, 4294901760
    %v3944 = vsub.f32 %v3942, %v3943
    %v3945 = vand.u32 %v3944, 4294901760
    %3946 = vmatpush1.msra.mxu0 %v3945
    %3947 = vmatprep.subr.mxu0 0.0
    %v3948 = vand.u32 %v19, 4294901760
    %v3949 = vsub.f32 %v19, %v3948
    %v3950 = vand.u32 %v3949, 4294901760
    %v3951 = vsub.f32 %v3949, %v3950
    %v3952 = vand.u32 %v3951, 4294901760
    %3953 = vmatpush1.msra.mxu0 %v3952
    %3954 = vmatprep.subr.mxu0 0.0
    %v3955 = vand.u32 %v20, 4294901760
    %v3956 = vsub.f32 %v20, %v3955
    %v3957 = vand.u32 %v3956, 4294901760
    %v3958 = vsub.f32 %v3956, %v3957
    %v3959 = vand.u32 %v3958, 4294901760
    %3960 = vmatpush1.msra.mxu0 %v3959
    %3961 = vmatprep.subr.mxu0 0.0
    %v3962 = vand.u32 %v21, 4294901760
    %v3963 = vsub.f32 %v21, %v3962
    %v3964 = vand.u32 %v3963, 4294901760
    %v3965 = vsub.f32 %v3963, %v3964
    %v3966 = vand.u32 %v3965, 4294901760
    %3967 = vmatpush1.msra.mxu0 %v3966
    %3968 = vmatprep.subr.mxu0 0.0
    %v3969 = vand.u32 %v22, 4294901760
    %v3970 = vsub.f32 %v22, %v3969
    %v3971 = vand.u32 %v3970, 4294901760
    %v3972 = vsub.f32 %v3970, %v3971
    %v3973 = vand.u32 %v3972, 4294901760
    %3974 = vmatpush1.msra.mxu0 %v3973
    %3975 = vmatprep.subr.mxu0 0.0
    %v3976 = vand.u32 %v23, 4294901760
    %v3977 = vsub.f32 %v23, %v3976
    %v3978 = vand.u32 %v3977, 4294901760
    %v3979 = vsub.f32 %v3977, %v3978
    %v3980 = vand.u32 %v3979, 4294901760
    %3981 = vmatpush1.msra.mxu0 %v3980
    %3982 = vmatprep.subr.mxu0 0.0
    %3983 = vmatpush1.msra.mxu0 0.0
    %3984 = vmatprep.subr.mxu0 0.0
    %3985 = vmatpush1.msra.mxu0 0.0
    %3986 = vmatprep.subr.mxu0 0.0
    %3987 = vmatpush1.msra.mxu0 0.0
    %3988 = vmatprep.subr.mxu0 0.0
    %3989 = vmatpush1.msra.mxu0 0.0
    %3990 = vmatprep.subr.mxu0 0.0
    %3991 = vmatpush1.msra.mxu0 0.0
    %3992 = vmatprep.subr.mxu0 0.0
    %3993 = vmatpush1.msra.mxu0 0.0
    %3994 = vmatprep.subr.mxu0 0.0
    %3995 = vmatpush1.msra.mxu0 0.0
    %3996 = vmatprep.subr.mxu0 0.0
    %3997 = vmatpush1.msra.mxu0 0.0
    %3998 = vmatprep.subr.mxu0 0.0
    %3999 = vmatpush1.msra.mxu0 0.0
    %4000 = vmatprep.subr.mxu0 0.0
    %4001 = vmatpush1.msra.mxu0 0.0
    %4002 = vmatprep.subr.mxu0 0.0
    %4003 = vmatpush1.msra.mxu0 0.0
    %4004 = vmatprep.subr.mxu0 0.0
    %4005 = vmatpush1.msra.mxu0 0.0
    %4006 = vmatprep.subr.mxu0 0.0
    %4007 = vmatpush1.msra.mxu0 0.0
    %4008 = vmatprep.subr.mxu0 0.0
    %4009 = vmatpush1.msra.mxu0 0.0
    %4010 = vmatprep.subr.mxu0 0.0
    %4011 = vmatpush1.msra.mxu0 0.0
    %4012 = vmatprep.subr.mxu0 0.0
    %4013 = vmatpush1.msra.mxu0 0.0
    %4014 = vmatprep.subr.mxu0 0.0
    %4015 = vmatpush1.msra.mxu0 0.0
    %4016 = vmatprep.subr.mxu0 0.0
    %4017 = vmatpush1.msra.mxu0 0.0
    %4018 = vmatprep.subr.mxu0 0.0
    %4019 = vmatpush1.msra.mxu0 0.0
    %4020 = vmatprep.subr.mxu0 0.0
    %4021 = vmatpush1.msra.mxu0 0.0
    %4022 = vmatprep.subr.mxu0 0.0
    %4023 = vmatpush1.msra.mxu0 0.0
    %4024 = vmatprep.subr.mxu0 0.0
    %4025 = vmatpush1.msra.mxu0 0.0
    %4026 = vmatprep.subr.mxu0 0.0
    %4027 = vmatpush1.msra.mxu0 0.0
    %4028 = vmatprep.subr.mxu0 0.0
    %4029 = vmatpush1.msra.mxu0 0.0
    %4030 = vmatprep.mubr.f32.mxu0 0.0
    %v4031 = vand.u32 %v3841, 4294901760
    %4032 = vmatmul.mubr.f32.gmra.mrb[0].mxu0 %v4031
    %v4033 = vpop.f32.mrb[0].mxu0
    %v4034 = vadd.f32 %v3923, %v4033
    %v4035 = vpop.f32.mrb[0].mxu0
    %4036 = vdwg.mxu0
    %4037 = vmatprep.subr.mxu0 0.0
    %v4038 = vand.u32 %v16, 4294901760
    %v4039 = vsub.f32 %v16, %v4038
    %4040 = vmatpush1.msra.mxu0 %v4039
    %4041 = vmatprep.subr.mxu0 0.0
    %v4042 = vand.u32 %v17, 4294901760
    %v4043 = vsub.f32 %v17, %v4042
    %4044 = vmatpush1.msra.mxu0 %v4043
    %4045 = vmatprep.subr.mxu0 0.0
    %v4046 = vand.u32 %v18, 4294901760
    %v4047 = vsub.f32 %v18, %v4046
    %4048 = vmatpush1.msra.mxu0 %v4047
    %4049 = vmatprep.subr.mxu0 0.0
    %v4050 = vand.u32 %v19, 4294901760
    %v4051 = vsub.f32 %v19, %v4050
    %4052 = vmatpush1.msra.mxu0 %v4051
    %4053 = vmatprep.subr.mxu0 0.0
    %v4054 = vand.u32 %v20, 4294901760
    %v4055 = vsub.f32 %v20, %v4054
    %4056 = vmatpush1.msra.mxu0 %v4055
    %4057 = vmatprep.subr.mxu0 0.0
    %v4058 = vand.u32 %v21, 4294901760
    %v4059 = vsub.f32 %v21, %v4058
    %4060 = vmatpush1.msra.mxu0 %v4059
    %4061 = vmatprep.subr.mxu0 0.0
    %v4062 = vand.u32 %v22, 4294901760
    %v4063 = vsub.f32 %v22, %v4062
    %4064 = vmatpush1.msra.mxu0 %v4063
    %4065 = vmatprep.subr.mxu0 0.0
    %v4066 = vand.u32 %v23, 4294901760
    %v4067 = vsub.f32 %v23, %v4066
    %4068 = vmatpush1.msra.mxu0 %v4067
    %4069 = vmatprep.subr.mxu0 0.0
    %4070 = vmatpush1.msra.mxu0 0.0
    %4071 = vmatprep.subr.mxu0 0.0
    %4072 = vmatpush1.msra.mxu0 0.0
    %4073 = vmatprep.subr.mxu0 0.0
    %4074 = vmatpush1.msra.mxu0 0.0
    %4075 = vmatprep.subr.mxu0 0.0
    %4076 = vmatpush1.msra.mxu0 0.0
    %4077 = vmatprep.subr.mxu0 0.0
    %4078 = vmatpush1.msra.mxu0 0.0
    %4079 = vmatprep.subr.mxu0 0.0
    %4080 = vmatpush1.msra.mxu0 0.0
    %4081 = vmatprep.subr.mxu0 0.0
    %4082 = vmatpush1.msra.mxu0 0.0
    %4083 = vmatprep.subr.mxu0 0.0
    %4084 = vmatpush1.msra.mxu0 0.0
    %4085 = vmatprep.subr.mxu0 0.0
    %4086 = vmatpush1.msra.mxu0 0.0
    %4087 = vmatprep.subr.mxu0 0.0
    %4088 = vmatpush1.msra.mxu0 0.0
    %4089 = vmatprep.subr.mxu0 0.0
    %4090 = vmatpush1.msra.mxu0 0.0
    %4091 = vmatprep.subr.mxu0 0.0
    %4092 = vmatpush1.msra.mxu0 0.0
    %4093 = vmatprep.subr.mxu0 0.0
    %4094 = vmatpush1.msra.mxu0 0.0
    %4095 = vmatprep.subr.mxu0 0.0
    %4096 = vmatpush1.msra.mxu0 0.0
    %4097 = vmatprep.subr.mxu0 0.0
    %4098 = vmatpush1.msra.mxu0 0.0
    %4099 = vmatprep.subr.mxu0 0.0
    %4100 = vmatpush1.msra.mxu0 0.0
    %4101 = vmatprep.subr.mxu0 0.0
    %4102 = vmatpush1.msra.mxu0 0.0
    %4103 = vmatprep.subr.mxu0 0.0
    %4104 = vmatpush1.msra.mxu0 0.0
    %4105 = vmatprep.subr.mxu0 0.0
    %4106 = vmatpush1.msra.mxu0 0.0
    %4107 = vmatprep.subr.mxu0 0.0
    %4108 = vmatpush1.msra.mxu0 0.0
    %4109 = vmatprep.subr.mxu0 0.0
    %4110 = vmatpush1.msra.mxu0 0.0
    %4111 = vmatprep.subr.mxu0 0.0
    %4112 = vmatpush1.msra.mxu0 0.0
    %4113 = vmatprep.subr.mxu0 0.0
    %4114 = vmatpush1.msra.mxu0 0.0
    %4115 = vmatprep.subr.mxu0 0.0
    %4116 = vmatpush1.msra.mxu0 0.0
    %4117 = vmatprep.mubr.f32.mxu0 0.0
    %v4118 = vand.u32 %v3841, 4294901760
    %v4119 = vsub.f32 %v3841, %v4118
    %4120 = vmatmul.mubr.f32.gmra.mrb[0].mxu0 %v4119
    %v4121 = vpop.f32.mrb[0].mxu0
    %v4122 = vadd.f32 %v4034, %v4121
    %v4123 = vpop.f32.mrb[0].mxu0
    %4124 = vdwg.mxu0
    %4125 = vmatprep.subr.mxu0 0.0
    %v4126 = vand.u32 %v16, 4294901760
    %4127 = vmatpush1.msra.mxu0 %v4126
    %4128 = vmatprep.subr.mxu0 0.0
    %v4129 = vand.u32 %v17, 4294901760
    %4130 = vmatpush1.msra.mxu0 %v4129
    %4131 = vmatprep.subr.mxu0 0.0
    %v4132 = vand.u32 %v18, 4294901760
    %4133 = vmatpush1.msra.mxu0 %v4132
    %4134 = vmatprep.subr.mxu0 0.0
    %v4135 = vand.u32 %v19, 4294901760
    %4136 = vmatpush1.msra.mxu0 %v4135
    %4137 = vmatprep.subr.mxu0 0.0
    %v4138 = vand.u32 %v20, 4294901760
    %4139 = vmatpush1.msra.mxu0 %v4138
    %4140 = vmatprep.subr.mxu0 0.0
    %v4141 = vand.u32 %v21, 4294901760
    %4142 = vmatpush1.msra.mxu0 %v4141
    %4143 = vmatprep.subr.mxu0 0.0
    %v4144 = vand.u32 %v22, 4294901760
    %4145 = vmatpush1.msra.mxu0 %v4144
    %4146 = vmatprep.subr.mxu0 0.0
    %v4147 = vand.u32 %v23, 4294901760
    %4148 = vmatpush1.msra.mxu0 %v4147
    %4149 = vmatprep.subr.mxu0 0.0
    %4150 = vmatpush1.msra.mxu0 0.0
    %4151 = vmatprep.subr.mxu0 0.0
    %4152 = vmatpush1.msra.mxu0 0.0
    %4153 = vmatprep.subr.mxu0 0.0
    %4154 = vmatpush1.msra.mxu0 0.0
    %4155 = vmatprep.subr.mxu0 0.0
    %4156 = vmatpush1.msra.mxu0 0.0
    %4157 = vmatprep.subr.mxu0 0.0
    %4158 = vmatpush1.msra.mxu0 0.0
    %4159 = vmatprep.subr.mxu0 0.0
    %4160 = vmatpush1.msra.mxu0 0.0
    %4161 = vmatprep.subr.mxu0 0.0
    %4162 = vmatpush1.msra.mxu0 0.0
    %4163 = vmatprep.subr.mxu0 0.0
    %4164 = vmatpush1.msra.mxu0 0.0
    %4165 = vmatprep.subr.mxu0 0.0
    %4166 = vmatpush1.msra.mxu0 0.0
    %4167 = vmatprep.subr.mxu0 0.0
    %4168 = vmatpush1.msra.mxu0 0.0
    %4169 = vmatprep.subr.mxu0 0.0
    %4170 = vmatpush1.msra.mxu0 0.0
    %4171 = vmatprep.subr.mxu0 0.0
    %4172 = vmatpush1.msra.mxu0 0.0
    %4173 = vmatprep.subr.mxu0 0.0
    %4174 = vmatpush1.msra.mxu0 0.0
    %4175 = vmatprep.subr.mxu0 0.0
    %4176 = vmatpush1.msra.mxu0 0.0
    %4177 = vmatprep.subr.mxu0 0.0
    %4178 = vmatpush1.msra.mxu0 0.0
    %4179 = vmatprep.subr.mxu0 0.0
    %4180 = vmatpush1.msra.mxu0 0.0
    %4181 = vmatprep.subr.mxu0 0.0
    %4182 = vmatpush1.msra.mxu0 0.0
    %4183 = vmatprep.subr.mxu0 0.0
    %4184 = vmatpush1.msra.mxu0 0.0
    %4185 = vmatprep.subr.mxu0 0.0
    %4186 = vmatpush1.msra.mxu0 0.0
    %4187 = vmatprep.subr.mxu0 0.0
    %4188 = vmatpush1.msra.mxu0 0.0
    %4189 = vmatprep.subr.mxu0 0.0
    %4190 = vmatpush1.msra.mxu0 0.0
    %4191 = vmatprep.subr.mxu0 0.0
    %4192 = vmatpush1.msra.mxu0 0.0
    %4193 = vmatprep.subr.mxu0 0.0
    %4194 = vmatpush1.msra.mxu0 0.0
    %4195 = vmatprep.subr.mxu0 0.0
    %4196 = vmatpush1.msra.mxu0 0.0
    %4197 = vmatprep.mubr.f32.mxu0 0.0
    %v4198 = vand.u32 %v3841, 4294901760
    %v4199 = vsub.f32 %v3841, %v4198
    %v4200 = vand.u32 %v4199, 4294901760
    %4201 = vmatmul.mubr.f32.gmra.mrb[0].mxu0 %v4200
    %v4202 = vpop.f32.mrb[0].mxu0
    %v4203 = vadd.f32 %v4122, %v4202
    %v4204 = vpop.f32.mrb[0].mxu0
    %4205 = vdwg.mxu0
    %4206 = vmatprep.subr.mxu0 0.0
    %v4207 = vand.u32 %v16, 4294901760
    %v4208 = vsub.f32 %v16, %v4207
    %v4209 = vand.u32 %v4208, 4294901760
    %4210 = vmatpush1.msra.mxu0 %v4209
    %4211 = vmatprep.subr.mxu0 0.0
    %v4212 = vand.u32 %v17, 4294901760
    %v4213 = vsub.f32 %v17, %v4212
    %v4214 = vand.u32 %v4213, 4294901760
    %4215 = vmatpush1.msra.mxu0 %v4214
    %4216 = vmatprep.subr.mxu0 0.0
    %v4217 = vand.u32 %v18, 4294901760
    %v4218 = vsub.f32 %v18, %v4217
    %v4219 = vand.u32 %v4218, 4294901760
    %4220 = vmatpush1.msra.mxu0 %v4219
    %4221 = vmatprep.subr.mxu0 0.0
    %v4222 = vand.u32 %v19, 4294901760
    %v4223 = vsub.f32 %v19, %v4222
    %v4224 = vand.u32 %v4223, 4294901760
    %4225 = vmatpush1.msra.mxu0 %v4224
    %4226 = vmatprep.subr.mxu0 0.0
    %v4227 = vand.u32 %v20, 4294901760
    %v4228 = vsub.f32 %v20, %v4227
    %v4229 = vand.u32 %v4228, 4294901760
    %4230 = vmatpush1.msra.mxu0 %v4229
    %4231 = vmatprep.subr.mxu0 0.0
    %v4232 = vand.u32 %v21, 4294901760
    %v4233 = vsub.f32 %v21, %v4232
    %v4234 = vand.u32 %v4233, 4294901760
    %4235 = vmatpush1.msra.mxu0 %v4234
    %4236 = vmatprep.subr.mxu0 0.0
    %v4237 = vand.u32 %v22, 4294901760
    %v4238 = vsub.f32 %v22, %v4237
    %v4239 = vand.u32 %v4238, 4294901760
    %4240 = vmatpush1.msra.mxu0 %v4239
    %4241 = vmatprep.subr.mxu0 0.0
    %v4242 = vand.u32 %v23, 4294901760
    %v4243 = vsub.f32 %v23, %v4242
    %v4244 = vand.u32 %v4243, 4294901760
    %4245 = vmatpush1.msra.mxu0 %v4244
    %4246 = vmatprep.subr.mxu0 0.0
    %4247 = vmatpush1.msra.mxu0 0.0
    %4248 = vmatprep.subr.mxu0 0.0
    %4249 = vmatpush1.msra.mxu0 0.0
    %4250 = vmatprep.subr.mxu0 0.0
    %4251 = vmatpush1.msra.mxu0 0.0
    %4252 = vmatprep.subr.mxu0 0.0
    %4253 = vmatpush1.msra.mxu0 0.0
    %4254 = vmatprep.subr.mxu0 0.0
    %4255 = vmatpush1.msra.mxu0 0.0
    %4256 = vmatprep.subr.mxu0 0.0
    %4257 = vmatpush1.msra.mxu0 0.0
    %4258 = vmatprep.subr.mxu0 0.0
    %4259 = vmatpush1.msra.mxu0 0.0
    %4260 = vmatprep.subr.mxu0 0.0
    %4261 = vmatpush1.msra.mxu0 0.0
    %4262 = vmatprep.subr.mxu0 0.0
    %4263 = vmatpush1.msra.mxu0 0.0
    %4264 = vmatprep.subr.mxu0 0.0
    %4265 = vmatpush1.msra.mxu0 0.0
    %4266 = vmatprep.subr.mxu0 0.0
    %4267 = vmatpush1.msra.mxu0 0.0
    %4268 = vmatprep.subr.mxu0 0.0
    %4269 = vmatpush1.msra.mxu0 0.0
    %4270 = vmatprep.subr.mxu0 0.0
    %4271 = vmatpush1.msra.mxu0 0.0
    %4272 = vmatprep.subr.mxu0 0.0
    %4273 = vmatpush1.msra.mxu0 0.0
    %4274 = vmatprep.subr.mxu0 0.0
    %4275 = vmatpush1.msra.mxu0 0.0
    %4276 = vmatprep.subr.mxu0 0.0
    %4277 = vmatpush1.msra.mxu0 0.0
    %4278 = vmatprep.subr.mxu0 0.0
    %4279 = vmatpush1.msra.mxu0 0.0
    %4280 = vmatprep.subr.mxu0 0.0
    %4281 = vmatpush1.msra.mxu0 0.0
    %4282 = vmatprep.subr.mxu0 0.0
    %4283 = vmatpush1.msra.mxu0 0.0
    %4284 = vmatprep.subr.mxu0 0.0
    %4285 = vmatpush1.msra.mxu0 0.0
    %4286 = vmatprep.subr.mxu0 0.0
    %4287 = vmatpush1.msra.mxu0 0.0
    %4288 = vmatprep.subr.mxu0 0.0
    %4289 = vmatpush1.msra.mxu0 0.0
    %4290 = vmatprep.subr.mxu0 0.0
    %4291 = vmatpush1.msra.mxu0 0.0
    %4292 = vmatprep.subr.mxu0 0.0
    %4293 = vmatpush1.msra.mxu0 0.0
    %4294 = vmatprep.mubr.f32.mxu0 0.0
    %v4295 = vand.u32 %v3841, 4294901760
    %4296 = vmatmul.mubr.f32.gmra.mrb[0].mxu0 %v4295
    %v4297 = vpop.f32.mrb[0].mxu0
    %v4298 = vadd.f32 %v4203, %v4297
    %v4299 = vpop.f32.mrb[0].mxu0
    %4300 = vdwg.mxu0
    %4301 = vmatprep.subr.mxu0 0.0
    %v4302 = vand.u32 %v16, 4294901760
    %4303 = vmatpush1.msra.mxu0 %v4302
    %4304 = vmatprep.subr.mxu0 0.0
    %v4305 = vand.u32 %v17, 4294901760
    %4306 = vmatpush1.msra.mxu0 %v4305
    %4307 = vmatprep.subr.mxu0 0.0
    %v4308 = vand.u32 %v18, 4294901760
    %4309 = vmatpush1.msra.mxu0 %v4308
    %4310 = vmatprep.subr.mxu0 0.0
    %v4311 = vand.u32 %v19, 4294901760
    %4312 = vmatpush1.msra.mxu0 %v4311
    %4313 = vmatprep.subr.mxu0 0.0
    %v4314 = vand.u32 %v20, 4294901760
    %4315 = vmatpush1.msra.mxu0 %v4314
    %4316 = vmatprep.subr.mxu0 0.0
    %v4317 = vand.u32 %v21, 4294901760
    %4318 = vmatpush1.msra.mxu0 %v4317
    %4319 = vmatprep.subr.mxu0 0.0
    %v4320 = vand.u32 %v22, 4294901760
    %4321 = vmatpush1.msra.mxu0 %v4320
    %4322 = vmatprep.subr.mxu0 0.0
    %v4323 = vand.u32 %v23, 4294901760
    %4324 = vmatpush1.msra.mxu0 %v4323
    %4325 = vmatprep.subr.mxu0 0.0
    %4326 = vmatpush1.msra.mxu0 0.0
    %4327 = vmatprep.subr.mxu0 0.0
    %4328 = vmatpush1.msra.mxu0 0.0
    %4329 = vmatprep.subr.mxu0 0.0
    %4330 = vmatpush1.msra.mxu0 0.0
    %4331 = vmatprep.subr.mxu0 0.0
    %4332 = vmatpush1.msra.mxu0 0.0
    %4333 = vmatprep.subr.mxu0 0.0
    %4334 = vmatpush1.msra.mxu0 0.0
    %4335 = vmatprep.subr.mxu0 0.0
    %4336 = vmatpush1.msra.mxu0 0.0
    %4337 = vmatprep.subr.mxu0 0.0
    %4338 = vmatpush1.msra.mxu0 0.0
    %4339 = vmatprep.subr.mxu0 0.0
    %4340 = vmatpush1.msra.mxu0 0.0
    %4341 = vmatprep.subr.mxu0 0.0
    %4342 = vmatpush1.msra.mxu0 0.0
    %4343 = vmatprep.subr.mxu0 0.0
    %4344 = vmatpush1.msra.mxu0 0.0
    %4345 = vmatprep.subr.mxu0 0.0
    %4346 = vmatpush1.msra.mxu0 0.0
    %4347 = vmatprep.subr.mxu0 0.0
    %4348 = vmatpush1.msra.mxu0 0.0
    %4349 = vmatprep.subr.mxu0 0.0
    %4350 = vmatpush1.msra.mxu0 0.0
    %4351 = vmatprep.subr.mxu0 0.0
    %4352 = vmatpush1.msra.mxu0 0.0
    %4353 = vmatprep.subr.mxu0 0.0
    %4354 = vmatpush1.msra.mxu0 0.0
    %4355 = vmatprep.subr.mxu0 0.0
    %4356 = vmatpush1.msra.mxu0 0.0
    %4357 = vmatprep.subr.mxu0 0.0
    %4358 = vmatpush1.msra.mxu0 0.0
    %4359 = vmatprep.subr.mxu0 0.0
    %4360 = vmatpush1.msra.mxu0 0.0
    %4361 = vmatprep.subr.mxu0 0.0
    %4362 = vmatpush1.msra.mxu0 0.0
    %4363 = vmatprep.subr.mxu0 0.0
    %4364 = vmatpush1.msra.mxu0 0.0
    %4365 = vmatprep.subr.mxu0 0.0
    %4366 = vmatpush1.msra.mxu0 0.0
    %4367 = vmatprep.subr.mxu0 0.0
    %4368 = vmatpush1.msra.mxu0 0.0
    %4369 = vmatprep.subr.mxu0 0.0
    %4370 = vmatpush1.msra.mxu0 0.0
    %4371 = vmatprep.subr.mxu0 0.0
    %4372 = vmatpush1.msra.mxu0 0.0
    %4373 = vmatprep.mubr.f32.mxu0 0.0
    %v4374 = vand.u32 %v3841, 4294901760
    %4375 = vmatmul.mubr.f32.gmra.mrb[0].mxu0 %v4374
    %v4376 = vpop.f32.mrb[0].mxu0
    %v4377 = vadd.f32 %v4298, %v4376
    %v4378 = vpop.f32.mrb[0].mxu0
    %4379 = vdwg.mxu0
    %v4381 = vrot.slane %v4377, 2
    %v4383 = vadd.f32 %v563, %v4381
    %v4384 = vtanh.pop %v4383
    %vm4385 = vcmask 1041408
    %v4386 = vsel %vm4385, %v566, %v1112
    %vm4387 = vcmask 1043456
    %v4388 = vsel %vm4387, %v4386, %v1658
    %vm4389 = vcmask 1045504
    %v4390 = vsel %vm4389, %v4388, %v2204
    %v4391 = vsel %vm4385, %v2747, %v3292
    %v4392 = vsel %vm4387, %v4391, %v3838
    %v4393 = vsel %vm4389, %v4392, %v4384
    %4394 = vst.msk [vmem:[#allocation2] sm:$0xff] %vm567, %v4390
    %4395 = vst.msk [vmem:[#allocation2 + $0x8] sm:$0xff] %vm567, %v4393
    // Predicated region
    $region10: #{tpu_custom_call.1} parent=1 // pred_check
      _
    $region11: #{tpu_custom_call.1} parent=1 // pred_check_branch
      %4397 = sbr.rel (0) target = $region13
    $region12: #{tpu_custom_call.1} parent=1 // pred_region
      %s4399 = ssub.s32 256, 256
      %4400 = vsyncadd [#allocation3], %s4399
      %s4401 = sshll.u32 [#allocation2], 4
      %s4402 = int_to_ptr.vmem [resolvable:$true] %s4401
      %4407 = dma.vmem_to_hbm [thread:$0]  %s4402, 256, %s2, [#allocation3], 128, 128, 8
    $region13: #{tpu_custom_call.1} parent=1 // pred_fallthru
      _
    // Predicated region
    $region14: #{tpu_custom_call.1} parent=1 // pred_check
      _
    $region15: #{tpu_custom_call.1} parent=1 // pred_check_branch
      %4409 = sbr.rel (0) target = $region17
    $region16: #{tpu_custom_call.1} parent=1 // pred_region
      %4410 = dma.done [#allocation3], 256
    $region17: #{tpu_custom_call.1} parent=1 // pred_fallthru
      _
    %4411 = vsyncpa [#allocation3], 1

</llo_original>
